<compile_context>
chip_gen: v6e
topology: v6e:2x2x1
jax: 0.10.0
libtpu: 0.0.40
codegen_flags: <defaults>
</compile_context>

<pallas_src>
import functools

import jax
import jax.numpy as jnp
from jax.experimental import pallas as pl
from jax.experimental.pallas import tpu as pltpu

EPS = 1e-5
LANES = 128  # pad channel dims to full vreg lane width


def _round_up(x, m):
    return (x + m - 1) // m * m


def _cparams():
    return pltpu.CompilerParams(
        dimension_semantics=("parallel",),
        vmem_limit_bytes=48 * 1024 * 1024,
    )


def _pick_tn(n, hw, cdims, target_rows=1024, vmem_budget=32 * 1024 * 1024):
    """Images per grid step: fill the MXU M-dim (~1024 rows) while keeping
    double-buffered bf16 activation blocks inside a conservative VMEM budget
    (valid on v5e/v6e/v7x)."""
    per_row_bytes = 4 * sum(cdims)  # bf16 * double-buffered in/out blocks (rough)
    cap_rows = max(hw, vmem_budget // max(per_row_bytes, 1))
    cap = max(1, min(target_rows, cap_rows) // hw)
    tn = 1
    for d in range(1, min(cap, n) + 1):
        if n % d == 0:
            tn = d
    return tn


def _sum_sq(y):
    # Per-group partial BN statistics: [1, 2, C] = (sum, sum of squares) over rows.
    s = jnp.sum(y, axis=0, keepdims=True)
    sq = jnp.sum(y * y, axis=0, keepdims=True)
    return jnp.concatenate([s, sq], axis=0)[None]


def _bn_affine(stats, count, gamma, beta):
    # Fold global batch stats (train mode, biased variance) into y*scale + bias.
    s = jnp.sum(stats[:, 0, :], axis=0)
    sq = jnp.sum(stats[:, 1, :], axis=0)
    mean = s / count
    var = jnp.maximum(sq / count - mean * mean, 0.0)
    scale = gamma * jax.lax.rsqrt(var + EPS)
    bias = beta - mean * scale
    return scale[None, :].astype(jnp.float32), bias[None, :].astype(jnp.float32)


# ----------------------------------------------------------------------------
# Stage A: conv1 (1x1) + shortcut (1x1) merged into ONE matmul (shared LHS,
# N = c1p + c3p fills the 256-wide MXU on v6e/v7x); split at a lane boundary.
# ----------------------------------------------------------------------------
def _conv1_sc_kernel(x_ref, w_ref, y1_ref, sc_ref, st1_ref, sts_ref, *, c1p):
    x = x_ref[0]                                            # [M, cip] bf16
    y = jnp.dot(x, w_ref[...], preferred_element_type=jnp.float32)
    y1, sc = y[:, :c1p], y[:, c1p:]
    y1_ref[...] = y1.astype(y1_ref.dtype)[None]
    sc_ref[...] = sc.astype(sc_ref.dtype)[None]
    st1_ref[...] = _sum_sq(y1)
    sts_ref[...] = _sum_sq(sc)


def _conv1_kernel(x_ref, w1_ref, y1_ref, st1_ref):
    x = x_ref[0]
    y1 = jnp.dot(x, w1_ref[...], preferred_element_type=jnp.float32)
    y1_ref[...] = y1.astype(y1_ref.dtype)[None]
    st1_ref[...] = _sum_sq(y1)


# ----------------------------------------------------------------------------
# Stage B: BN1+ReLU (fused, one bf16 cast) -> 3x3 conv (pad=1).
#   The padded tile lives in a bf16 VMEM scratch ref (halo zeroed once at grid
#   step 0, interior stored once per step).  kx taps are folded along K: three
#   matmuls with K = 3*c1p; the lane-aligned concat of tap loads is free.
# ----------------------------------------------------------------------------
def _conv2_kernel(y1_ref, s1_ref, b1_ref, w2_ref, y2_ref, st2_ref, xp_ref,
                  *, tn, hs, ws):
    hw = hs * ws
    m = tn * hw
    c1 = s1_ref.shape[-1]
    c2 = y2_ref.shape[-1]

    x = jnp.maximum(y1_ref[0].astype(jnp.float32) * s1_ref[...] + b1_ref[...], 0.0)
    x = x.astype(jnp.bfloat16).reshape(tn, hs, ws, c1)      # cast once

    @pl.when(pl.program_id(0) == 0)
    def _():  # halo rows/cols stay zero across grid steps; interior overwritten
        xp_ref[...] = jnp.zeros_like(xp_ref)

    xp_ref[:, 1:hs + 1, 1:ws + 1, :] = x

    acc = jnp.zeros((m, c2), jnp.float32)
    for dy in range(3):
        lhs = jnp.concatenate(
            [xp_ref[:, dy:dy + hs, dx:dx + ws, :] for dx in range(3)], axis=-1
        ).reshape(m, 3 * c1)
        acc = acc + jnp.dot(lhs, w2_ref[dy], preferred_element_type=jnp.float32)

    y2_ref[...] = acc.astype(y2_ref.dtype)[None]
    st2_ref[...] = _sum_sq(acc)


# ----------------------------------------------------------------------------
# Stage C: BN2+ReLU (fused) -> conv3 (1x1) + BN3 partial stats.
# ----------------------------------------------------------------------------
def _conv3_kernel(y2_ref, s2_ref, b2_ref, w3_ref, y3_ref, st3_ref):
    x = jnp.maximum(y2_ref[0].astype(jnp.float32) * s2_ref[...] + b2_ref[...], 0.0)
    y3 = jnp.dot(x.astype(jnp.bfloat16), w3_ref[...],
                 preferred_element_type=jnp.float32)
    y3_ref[...] = y3.astype(y3_ref.dtype)[None]
    st3_ref[...] = _sum_sq(y3)


# ----------------------------------------------------------------------------
# Stage D: BN3 + SE (per-image pool -> FC -> ReLU -> FC -> sigmoid) +
#          shortcut BN + residual + final ReLU, fused.  Output aliases the
#          shortcut buffer (same shape/dtype; XLA copies if the shortcut is a
#          non-donated input, which is fine).
# ----------------------------------------------------------------------------
def _se_tail_kernel(y3_ref, sc_ref, s3_ref, b3_ref, ss_ref, bs_ref,
                    sw1_ref, sb1_ref, sw2_ref, sb2_ref, o_ref, *, tn, hw):
    c3 = s3_ref.shape[-1]
    y3 = (y3_ref[0].astype(jnp.float32) * s3_ref[...] + b3_ref[...]).reshape(tn, hw, c3)
    pooled = jnp.mean(y3, axis=1)                           # per-image GAP [tn, c3]
    h = jnp.maximum(
        jnp.dot(pooled.astype(jnp.bfloat16), sw1_ref[...],
                preferred_element_type=jnp.float32) + sb1_ref[...], 0.0)
    g = jax.nn.sigmoid(
        jnp.dot(h.astype(jnp.bfloat16), sw2_ref[...],
                preferred_element_type=jnp.float32) + sb2_ref[...])   # [tn, c3]
    sc = (sc_ref[0].astype(jnp.float32) * ss_ref[...] + bs_ref[...]).reshape(tn, hw, c3)
    out = jnp.maximum(y3 * g[:, None, :] + sc, 0.0)
    o_ref[...] = out.reshape(1, tn * hw, c3).astype(o_ref.dtype)


# ----------------------------------------------------------------------------
# Block forward
# ----------------------------------------------------------------------------
def block_forward(x_nchw, params, *, stride=1, is_1x1conv=True):
    n, cin, h, w = x_nchw.shape
    f1 = params["w1"].shape[1]
    f2 = params["w2"].shape[3]
    f3 = params["w3"].shape[1]
    fr = params["se_w1"].shape[1]
    if not is_1x1conv:
        assert stride == 1 and cin == f3, "identity shortcut needs stride=1 and Cin == filter3"

    hs = (h - 1) // stride + 1
    wd = (w - 1) // stride + 1
    hw = hs * wd
    cip, c1p = _round_up(cin, LANES), _round_up(f1, LANES)
    c2p, c3p = _round_up(f2, LANES), _round_up(f3, LANES)
    frp = _round_up(fr, 8)
    f32, bf16 = jnp.float32, jnp.bfloat16

    tn = _pick_tn(n, hw, (cip, c1p, c2p, 2 * c3p))
    g = n // tn
    m = tn * hw

    # Prologue: NCHW -> NHWC, stride subsample, channel pad, group TN images
    # per grid step, bf16 store (single XLA fusion).
    xs = jnp.transpose(x_nchw, (0, 2, 3, 1))[:, ::stride, ::stride, :]
    xs = jnp.pad(xs, ((0, 0), (0, 0), (0, 0), (0, cip - cin)))
    xs = xs.reshape(g, m, cip).astype(bf16)

    # Pack weights/BN params: pad channel dims to 128 lanes, bf16 for the MXU.
    def pad2(a, r, c):
        return jnp.pad(a, ((0, r - a.shape[0]), (0, c - a.shape[1])))

    def pad1(a, c):
        return jnp.pad(a, ((0, c - a.shape[0]),))

    w1 = pad2(params["w1"], cip, c1p)
    w2 = jnp.pad(params["w2"], ((0, 0), (0, 0), (0, c1p - f1), (0, c2p - f2)))
    w2 = w2.reshape(3, 3 * c1p, c2p).astype(bf16)           # kx-folded: K = 3*c1p
    w3 = pad2(params["w3"], c2p, c3p).astype(bf16)
    sew1 = pad2(params["se_w1"], c3p, frp).astype(bf16)
    sew2 = pad2(params["se_w2"], frp, c3p).astype(bf16)
    seb1 = pad1(params["se_b1"], frp).reshape(1, frp).astype(f32)
    seb2 = pad1(params["se_b2"], c3p).reshape(1, c3p).astype(f32)
    g1, b1 = pad1(params["g1"], c1p), pad1(params["b1"], c1p)
    g2, b2 = pad1(params["g2"], c2p), pad1(params["b2"], c2p)
    g3, b3 = pad1(params["g3"], c3p), pad1(params["b3"], c3p)

    act = lambda c: pl.BlockSpec((1, m, c), lambda i: (i, 0, 0))
    stat = lambda c: pl.BlockSpec((1, 2, c), lambda i: (i, 0, 0))
    full = lambda *s: pl.BlockSpec(s, lambda i, _s=s: (0,) * len(_s))

    # ---- Stage A: conv1 + shortcut conv merged into one matmul --------------
    if is_1x1conv:
        wsc = pad2(params["ws"], cip, c3p)
        w1cat = jnp.concatenate([w1, wsc], axis=1).astype(bf16)   # (cip, c1p+c3p)
        y1_raw, sc_raw, st1, sts = pl.pallas_call(
            functools.partial(_conv1_sc_kernel, c1p=c1p),
            grid=(g,),
            in_specs=[act(cip), full(cip, c1p + c3p)],
            out_specs=(act(c1p), act(c3p), stat(c1p), stat(c3p)),
            out_shape=(jax.ShapeDtypeStruct((g, m, c1p), bf16),
                       jax.ShapeDtypeStruct((g, m, c3p), bf16),
                       jax.ShapeDtypeStruct((g, 2, c1p), f32),
                       jax.ShapeDtypeStruct((g, 2, c3p), f32)),
            compiler_params=_cparams(),
        )(xs, w1cat)
        gs, bs = pad1(params["gs"], c3p), pad1(params["bs"], c3p)
        scale_s, bias_s = _bn_affine(sts, n * hw, gs, bs)
    else:
        y1_raw, st1 = pl.pallas_call(
            _conv1_kernel,
            grid=(g,),
            in_specs=[act(cip), full(cip, c1p)],
            out_specs=(act(c1p), stat(c1p)),
            out_shape=(jax.ShapeDtypeStruct((g, m, c1p), bf16),
                       jax.ShapeDtypeStruct((g, 2, c1p), f32)),
            compiler_params=_cparams(),
        )(xs, w1.astype(bf16))
        sc_raw = xs                              # identity shortcut (cip == c3p)
        scale_s = jnp.ones((1, c3p), f32)
        bias_s = jnp.zeros((1, c3p), f32)
    scale1, bias1 = _bn_affine(st1, n * hw, g1, b1)

    # ---- Stage B: BN1+ReLU fused into the 3x3 conv (scratch-staged taps) ----
    y2_raw, st2 = pl.pallas_call(
        functools.partial(_conv2_kernel, tn=tn, hs=hs, ws=wd),
        grid=(g,),
        in_specs=[act(c1p), full(1, c1p), full(1, c1p), full(3, 3 * c1p, c2p)],
        out_specs=(act(c2p), stat(c2p)),
        out_shape=(jax.ShapeDtypeStruct((g, m, c2p), bf16),
                   jax.ShapeDtypeStruct((g, 2, c2p), f32)),
        scratch_shapes=[pltpu.VMEM((tn, hs + 2, wd + 2, c1p), bf16)],
        compiler_params=_cparams(),
    )(y1_raw, scale1, bias1, w2)
    scale2, bias2 = _bn_affine(st2, n * hw, g2, b2)

    # ---- Stage C: BN2+ReLU fused into conv3 ----------------------------------
    y3_raw, st3 = pl.pallas_call(
        _conv3_kernel,
        grid=(g,),
        in_specs=[act(c2p), full(1, c2p), full(1, c2p), full(c2p, c3p)],
        out_specs=(act(c3p), stat(c3p)),
        out_shape=(jax.ShapeDtypeStruct((g, m, c3p), bf16),
                   jax.ShapeDtypeStruct((g, 2, c3p), f32)),
        compiler_params=_cparams(),
    )(y2_raw, scale2, bias2, w3)
    scale3, bias3 = _bn_affine(st3, n * hw, g3, b3)

    # ---- Stage D: BN3 + SE + shortcut BN + residual + ReLU (fused epilogue) --
    out = pl.pallas_call(
        functools.partial(_se_tail_kernel, tn=tn, hw=hw),
        grid=(g,),
        in_specs=[act(c3p), act(c3p),
                  full(1, c3p), full(1, c3p), full(1, c3p), full(1, c3p),
                  full(c3p, frp), full(1, frp), full(frp, c3p), full(1, c3p)],
        out_specs=act(c3p),
        out_shape=jax.ShapeDtypeStruct((g, m, c3p), bf16),
        input_output_aliases={1: 0},            # write result over the shortcut buffer
        compiler_params=_cparams(),
    )(y3_raw, sc_raw, scale3, bias3, scale_s, bias_s, sew1, seb1, sew2, seb2)

    out = out.reshape(n, hw, c3p)[:, :, :f3].astype(f32).reshape(n, hs, wd, f3)
    return jnp.transpose(out, (0, 3, 1, 2))     # NHWC -> NCHW


# ----------------------------------------------------------------------------
# Deterministic parameters (matmul/HWIO layouts; PyTorch OIHW -> transpose(2,3,1,0))
# ----------------------------------------------------------------------------
def make_params(key, in_channels, filters):
    f1, f2, f3 = filters
    fr = max(f3 // 16, 1)
    ks = jax.random.split(key, 12)
    rnd = lambda k, shape, s=0.1: (s * jax.random.normal(k, shape)).astype(jnp.float32)
    return {
        "w1": rnd(ks[0], (in_channels, f1)),
        "g1": 1.0 + rnd(ks[1], (f1,)), "b1": rnd(ks[2], (f1,)),
        "w2": rnd(ks[3], (3, 3, f1, f2)),                   # (ky, kx, cin, cout)
        "g2": 1.0 + rnd(ks[4], (f2,)), "b2": rnd(ks[5], (f2,)),
        "w3": rnd(ks[6], (f2, f3)),
        "g3": 1.0 + rnd(ks[7], (f3,)), "b3": rnd(ks[8], (f3,)),
        "ws": rnd(ks[9], (in_channels, f3)),
        "gs": jnp.ones((f3,), jnp.float32), "bs": jnp.zeros((f3,), jnp.float32),
        "se_w1": rnd(ks[10], (f3, fr)), "se_b1": jnp.zeros((fr,), jnp.float32),
        "se_w2": rnd(ks[11], (fr, f3)), "se_b2": jnp.zeros((f3,), jnp.float32),
    }


# Pure-JAX f32 reference (PyTorch train-mode semantics) for a structural check.
def reference_block(x_nchw, p, *, stride=1, is_1x1conv=True):
    x = jnp.transpose(x_nchw, (0, 2, 3, 1)).astype(jnp.float32)
    xs = x[:, ::stride, ::stride, :]

    def bn(y, g, b):
        mu = jnp.mean(y, axis=(0, 1, 2), keepdims=True)
        var = jnp.mean((y - mu) ** 2, axis=(0, 1, 2), keepdims=True)
        return (y - mu) * jax.lax.rsqrt(var + EPS) * g + b

    y1 = jnp.maximum(bn(jnp.einsum("nhwc,cd->nhwd", xs, p["w1"]), p["g1"], p["b1"]), 0.0)
    y2 = jax.lax.conv_general_dilated(
        y1, p["w2"], window_strides=(1, 1), padding=((1, 1), (1, 1)),
        dimension_numbers=("NHWC", "HWIO", "NHWC"))
    y2 = jnp.maximum(bn(y2, p["g2"], p["b2"]), 0.0)
    y3 = bn(jnp.einsum("nhwc,cd->nhwd", y2, p["w3"]), p["g3"], p["b3"])
    if is_1x1conv:
        sc = bn(jnp.einsum("nhwc,cd->nhwd", xs, p["ws"]), p["gs"], p["bs"])
    else:
        sc = xs
    pooled = jnp.mean(y3, axis=(1, 2))
    hdn = jnp.maximum(pooled @ p["se_w1"] + p["se_b1"], 0.0)
    gate = jax.nn.sigmoid(hdn @ p["se_w2"] + p["se_b2"])
    out = jnp.maximum(y3 * gate[:, None, None, :] + sc, 0.0)
    return jnp.transpose(out, (0, 3, 1, 2))


if __name__ == "__main__":
    key = jax.random.PRNGKey(0)
    k_x, k_p, k_x2, k_p2 = jax.random.split(key, 4)

    # Block(in_channels=16, filters=(16, 16, 32), stride=1, is_1x1conv=True)
    in_channels, filters, stride = 16, (16, 16, 32), 1
    x = jax.random.normal(k_x, (2, in_channels, 8, 8), dtype=jnp.float32)   # NCHW
    params = make_params(k_p, in_channels, filters)

    fwd = jax.jit(functools.partial(block_forward, stride=stride, is_1x1conv=True))
    out = fwd(x, params)
    jax.block_until_ready(out)

    ref = reference_block(x, params, stride=stride, is_1x1conv=True)
    max_err = float(jnp.max(jnp.abs(out - ref)))
    assert out.shape == (2, filters[2], 8, 8)
    assert bool(jnp.all(jnp.isfinite(out)))
    assert max_err < 0.25, f"mismatch vs f32 reference (bf16 tolerance): {max_err}"

    # Identity-shortcut path: Block(in_channels=32, filters=(8, 8, 32), is_1x1conv=False)
    in2, filt2 = 32, (8, 8, 32)
    x2 = jax.random.normal(k_x2, (2, in2, 8, 8), dtype=jnp.float32)
    params2 = make_params(k_p2, in2, filt2)
    fwd2 = jax.jit(functools.partial(block_forward, stride=1, is_1x1conv=False))
    out2 = fwd2(x2, params2)
    jax.block_until_ready(out2)
    ref2 = reference_block(x2, params2, stride=1, is_1x1conv=False)
    max_err2 = float(jnp.max(jnp.abs(out2 - ref2)))
    assert out2.shape == (2, filt2[2], 8, 8)
    assert bool(jnp.all(jnp.isfinite(out2)))
    assert max_err2 < 0.25, f"identity-path mismatch vs f32 reference: {max_err2}"

    print("KERNEL_OK")
</pallas_src>

<mosaic_0001>
module attributes {stable_mosaic.version = 11 : i64} {
  func.func @_conv2_kernel(%arg0: i32, %arg1: memref<1x128x128xbf16, #tpu.memory_space<vmem>>, %arg2: memref<1x128xf32, #tpu.memory_space<vmem>>, %arg3: memref<1x128xf32, #tpu.memory_space<vmem>>, %arg4: memref<3x384x128xbf16, #tpu.memory_space<vmem>>, %arg5: memref<1x128x128xbf16, #tpu.memory_space<vmem>>, %arg6: memref<1x2x128xf32, #tpu.memory_space<vmem>>, %arg7: memref<2x10x10x128xbf16, #tpu.memory_space<vmem>>) attributes {dimension_semantics = [#tpu.dimension_semantics<parallel>], iteration_bounds = array<i64: 1>, scalar_prefetch = 0 : i64, scratch_operands = 1 : i64, tpu.core_type = #tpu.core_type<tc>, window_params = [{transform_indices = @transform_0, window_bounds = array<i64: 1, 128, 128>}, {pipeline_mode = #tpu.pipeline_mode<synchronous>, transform_indices = @transform_1, window_bounds = array<i64: 1, 128>}, {pipeline_mode = #tpu.pipeline_mode<synchronous>, transform_indices = @transform_2, window_bounds = array<i64: 1, 128>}, {pipeline_mode = #tpu.pipeline_mode<synchronous>, transform_indices = @transform_3, window_bounds = array<i64: 3, 384, 128>}, {transform_indices = @transform_4, window_bounds = array<i64: 1, 128, 128>}, {transform_indices = @transform_5, window_bounds = array<i64: 1, 2, 128>}]} {
    %c0 = arith.constant 0 : index
    %c0_0 = arith.constant 0 : index
    %c0_1 = arith.constant 0 : index
    %0 = vector.load %arg1[%c0, %c0_0, %c0_1] : memref<1x128x128xbf16, #tpu.memory_space<vmem>>, vector<1x128x128xbf16>
    %1 = vector.shape_cast %0 : vector<1x128x128xbf16> to vector<128x128xbf16>
    %2 = arith.extf %1 : vector<128x128xbf16> to vector<128x128xf32>
    %c0_2 = arith.constant 0 : index
    %c0_3 = arith.constant 0 : index
    %3 = vector.load %arg2[%c0_2, %c0_3] : memref<1x128xf32, #tpu.memory_space<vmem>>, vector<1x128xf32>
    %4 = vector.broadcast %3 : vector<1x128xf32> to vector<128x128xf32>
    %5 = arith.mulf %2, %4 : vector<128x128xf32>
    %c0_4 = arith.constant 0 : index
    %c0_5 = arith.constant 0 : index
    %6 = vector.load %arg3[%c0_4, %c0_5] : memref<1x128xf32, #tpu.memory_space<vmem>>, vector<1x128xf32>
    %7 = vector.broadcast %6 : vector<1x128xf32> to vector<128x128xf32>
    %8 = arith.addf %5, %7 : vector<128x128xf32>
    %cst = arith.constant 0.000000e+00 : f32
    %9 = vector.broadcast %cst : f32 to vector<128x128xf32>
    %10 = arith.maximumf %8, %9 : vector<128x128xf32>
    %11 = arith.truncf %10 : vector<128x128xf32> to vector<128x128xbf16>
    %12 = vector.shape_cast %11 : vector<128x128xbf16> to vector<2x8x8x128xbf16>
    %c0_i32 = arith.constant 0 : i32
    %13 = arith.cmpi eq, %arg0, %c0_i32 : i32
    %14 = arith.extui %13 : i1 to i32
    %c0_i32_6 = arith.constant 0 : i32
    %15 = arith.cmpi ne, %14, %c0_i32_6 : i32
    scf.if %15 {
      %cst_66 = arith.constant 0.000000e+00 : bf16
      %56 = vector.broadcast %cst_66 : bf16 to vector<2x10x10x128xbf16>
      %c0_67 = arith.constant 0 : index
      %c0_68 = arith.constant 0 : index
      %c0_69 = arith.constant 0 : index
      %c0_70 = arith.constant 0 : index
      %57 = vector.load %arg7[%c0_67, %c0_68, %c0_69, %c0_70] : memref<2x10x10x128xbf16, #tpu.memory_space<vmem>>, vector<2x10x10x128xbf16>
      tpu.vector_store %arg7[%c0_67, %c0_68, %c0_69, %c0_70], %56 {strides = array<i32>} : memref<2x10x10x128xbf16, #tpu.memory_space<vmem>>, vector<2x10x10x128xbf16>,
    } else {
    }
    %c0_7 = arith.constant 0 : index
    %c1 = arith.constant 1 : index
    %c1_8 = arith.constant 1 : index
    %c0_9 = arith.constant 0 : index
    %16 = vector.load %arg7[%c0_7, %c1, %c1_8, %c0_9] : memref<2x10x10x128xbf16, #tpu.memory_space<vmem>>, vector<2x8x8x128xbf16>
    tpu.vector_store %arg7[%c0_7, %c1, %c1_8, %c0_9], %12 {strides = array<i32>} : memref<2x10x10x128xbf16, #tpu.memory_space<vmem>>, vector<2x8x8x128xbf16>,
    %cst_10 = arith.constant 0.000000e+00 : f32
    %17 = vector.broadcast %cst_10 : f32 to vector<128x128xf32>
    %c0_11 = arith.constant 0 : index
    %c0_12 = arith.constant 0 : index
    %c0_13 = arith.constant 0 : index
    %c0_14 = arith.constant 0 : index
    %18 = vector.load %arg7[%c0_11, %c0_12, %c0_13, %c0_14] : memref<2x10x10x128xbf16, #tpu.memory_space<vmem>>, vector<2x8x8x128xbf16>
    %c0_15 = arith.constant 0 : index
    %c0_16 = arith.constant 0 : index
    %c1_17 = arith.constant 1 : index
    %c0_18 = arith.constant 0 : index
    %19 = vector.load %arg7[%c0_15, %c0_16, %c1_17, %c0_18] : memref<2x10x10x128xbf16, #tpu.memory_space<vmem>>, vector<2x8x8x128xbf16>
    %c0_19 = arith.constant 0 : index
    %c0_20 = arith.constant 0 : index
    %c2 = arith.constant 2 : index
    %c0_21 = arith.constant 0 : index
    %20 = vector.load %arg7[%c0_19, %c0_20, %c2, %c0_21] : memref<2x10x10x128xbf16, #tpu.memory_space<vmem>>, vector<2x8x8x128xbf16>
    %21 = tpu.concatenate %18, %19, %20 in 3 : vector<2x8x8x128xbf16>, vector<2x8x8x128xbf16>, vector<2x8x8x128xbf16> -> vector<2x8x8x384xbf16>
    %22 = vector.shape_cast %21 : vector<2x8x8x384xbf16> to vector<128x384xbf16>
    %c0_22 = arith.constant 0 : index
    %c0_23 = arith.constant 0 : index
    %c0_24 = arith.constant 0 : index
    %23 = vector.load %arg4[%c0_22, %c0_23, %c0_24] : memref<3x384x128xbf16, #tpu.memory_space<vmem>>, vector<1x384x128xbf16>
    %24 = vector.shape_cast %23 : vector<1x384x128xbf16> to vector<384x128xbf16>
    %cst_25 = arith.constant dense<0.000000e+00> : vector<128x128xf32>
    %25 = tpu.matmul %22, %24, %cst_25 {dimension_numbers = #tpu.dot_dimension_numbers<[1], [0], [0], [1], [0, 0, 1, 1], [], []>} : vector<128x384xbf16>, vector<384x128xbf16>, vector<128x128xf32> -> vector<128x128xf32>
    %26 = arith.addf %17, %25 : vector<128x128xf32>
    %c0_26 = arith.constant 0 : index
    %c1_27 = arith.constant 1 : index
    %c0_28 = arith.constant 0 : index
    %c0_29 = arith.constant 0 : index
    %27 = vector.load %arg7[%c0_26, %c1_27, %c0_28, %c0_29] : memref<2x10x10x128xbf16, #tpu.memory_space<vmem>>, vector<2x8x8x128xbf16>
    %c0_30 = arith.constant 0 : index
    %c1_31 = arith.constant 1 : index
    %c1_32 = arith.constant 1 : index
    %c0_33 = arith.constant 0 : index
    %28 = vector.load %arg7[%c0_30, %c1_31, %c1_32, %c0_33] : memref<2x10x10x128xbf16, #tpu.memory_space<vmem>>, vector<2x8x8x128xbf16>
    %c0_34 = arith.constant 0 : index
    %c1_35 = arith.constant 1 : index
    %c2_36 = arith.constant 2 : index
    %c0_37 = arith.constant 0 : index
    %29 = vector.load %arg7[%c0_34, %c1_35, %c2_36, %c0_37] : memref<2x10x10x128xbf16, #tpu.memory_space<vmem>>, vector<2x8x8x128xbf16>
    %30 = tpu.concatenate %27, %28, %29 in 3 : vector<2x8x8x128xbf16>, vector<2x8x8x128xbf16>, vector<2x8x8x128xbf16> -> vector<2x8x8x384xbf16>
    %31 = vector.shape_cast %30 : vector<2x8x8x384xbf16> to vector<128x384xbf16>
    %c1_38 = arith.constant 1 : index
    %c0_39 = arith.constant 0 : index
    %c0_40 = arith.constant 0 : index
    %32 = vector.load %arg4[%c1_38, %c0_39, %c0_40] : memref<3x384x128xbf16, #tpu.memory_space<vmem>>, vector<1x384x128xbf16>
    %33 = vector.shape_cast %32 : vector<1x384x128xbf16> to vector<384x128xbf16>
    %cst_41 = arith.constant dense<0.000000e+00> : vector<128x128xf32>
    %34 = tpu.matmul %31, %33, %cst_41 {dimension_numbers = #tpu.dot_dimension_numbers<[1], [0], [0], [1], [0, 0, 1, 1], [], []>} : vector<128x384xbf16>, vector<384x128xbf16>, vector<128x128xf32> -> vector<128x128xf32>
    %35 = arith.addf %26, %34 : vector<128x128xf32>
    %c0_42 = arith.constant 0 : index
    %c2_43 = arith.constant 2 : index
    %c0_44 = arith.constant 0 : index
    %c0_45 = arith.constant 0 : index
    %36 = vector.load %arg7[%c0_42, %c2_43, %c0_44, %c0_45] : memref<2x10x10x128xbf16, #tpu.memory_space<vmem>>, vector<2x8x8x128xbf16>
    %c0_46 = arith.constant 0 : index
    %c2_47 = arith.constant 2 : index
    %c1_48 = arith.constant 1 : index
    %c0_49 = arith.constant 0 : index
    %37 = vector.load %arg7[%c0_46, %c2_47, %c1_48, %c0_49] : memref<2x10x10x128xbf16, #tpu.memory_space<vmem>>, vector<2x8x8x128xbf16>
    %c0_50 = arith.constant 0 : index
    %c2_51 = arith.constant 2 : index
    %c2_52 = arith.constant 2 : index
    %c0_53 = arith.constant 0 : index
    %38 = vector.load %arg7[%c0_50, %c2_51, %c2_52, %c0_53] : memref<2x10x10x128xbf16, #tpu.memory_space<vmem>>, vector<2x8x8x128xbf16>
    %39 = tpu.concatenate %36, %37, %38 in 3 : vector<2x8x8x128xbf16>, vector<2x8x8x128xbf16>, vector<2x8x8x128xbf16> -> vector<2x8x8x384xbf16>
    %40 = vector.shape_cast %39 : vector<2x8x8x384xbf16> to vector<128x384xbf16>
    %c2_54 = arith.constant 2 : index
    %c0_55 = arith.constant 0 : index
    %c0_56 = arith.constant 0 : index
    %41 = vector.load %arg4[%c2_54, %c0_55, %c0_56] : memref<3x384x128xbf16, #tpu.memory_space<vmem>>, vector<1x384x128xbf16>
    %42 = vector.shape_cast %41 : vector<1x384x128xbf16> to vector<384x128xbf16>
    %cst_57 = arith.constant dense<0.000000e+00> : vector<128x128xf32>
    %43 = tpu.matmul %40, %42, %cst_57 {dimension_numbers = #tpu.dot_dimension_numbers<[1], [0], [0], [1], [0, 0, 1, 1], [], []>} : vector<128x384xbf16>, vector<384x128xbf16>, vector<128x128xf32> -> vector<128x128xf32>
    %44 = arith.addf %35, %43 : vector<128x128xf32>
    %45 = arith.truncf %44 : vector<128x128xf32> to vector<128x128xbf16>
    %46 = vector.shape_cast %45 : vector<128x128xbf16> to vector<1x128x128xbf16>
    %c0_58 = arith.constant 0 : index
    %c0_59 = arith.constant 0 : index
    %c0_60 = arith.constant 0 : index
    %47 = vector.load %arg5[%c0_58, %c0_59, %c0_60] : memref<1x128x128xbf16, #tpu.memory_space<vmem>>, vector<1x128x128xbf16>
    tpu.vector_store %arg5[%c0_58, %c0_59, %c0_60], %46 {strides = array<i32>} : memref<1x128x128xbf16, #tpu.memory_space<vmem>>, vector<1x128x128xbf16>,
    %cst_61 = arith.constant dense<0.000000e+00> : vector<128xf32>
    %48 = vector.multi_reduction <add>, %44, %cst_61 [0] : vector<128x128xf32> to vector<128xf32>
    %49 = vector.shape_cast %48 : vector<128xf32> to vector<1x128xf32>
    %50 = arith.mulf %44, %44 : vector<128x128xf32>
    %cst_62 = arith.constant dense<0.000000e+00> : vector<128xf32>
    %51 = vector.multi_reduction <add>, %50, %cst_62 [0] : vector<128x128xf32> to vector<128xf32>
    %52 = vector.shape_cast %51 : vector<128xf32> to vector<1x128xf32>
    %53 = tpu.concatenate %49, %52 in 0 : vector<1x128xf32>, vector<1x128xf32> -> vector<2x128xf32>
    %54 = vector.shape_cast %53 : vector<2x128xf32> to vector<1x2x128xf32>
    %c0_63 = arith.constant 0 : index
    %c0_64 = arith.constant 0 : index
    %c0_65 = arith.constant 0 : index
    %55 = vector.load %arg6[%c0_63, %c0_64, %c0_65] : memref<1x2x128xf32, #tpu.memory_space<vmem>>, vector<1x2x128xf32>
    tpu.vector_store %arg6[%c0_63, %c0_64, %c0_65], %54 {strides = array<i32>} : memref<1x2x128xf32, #tpu.memory_space<vmem>>, vector<1x2x128xf32>,
    return
  }
  func.func @transform_0(%arg0: i32) -> (i32, i32, i32) {
    %c0_i32 = arith.constant 0 : i32
    %c0_i32_0 = arith.constant 0 : i32
    %c0_i32_1 = arith.constant 0 : i32
    return %arg0, %c0_i32, %c0_i32_0 : i32, i32, i32
  }
  func.func @transform_1(%arg0: i32) -> (i32, i32) {
    %c0_i32 = arith.constant 0 : i32
    %c0_i32_0 = arith.constant 0 : i32
    %c0_i32_1 = arith.constant 0 : i32
    return %c0_i32, %c0_i32_0 : i32, i32
  }
  func.func @transform_2(%arg0: i32) -> (i32, i32) {
    %c0_i32 = arith.constant 0 : i32
    %c0_i32_0 = arith.constant 0 : i32
    %c0_i32_1 = arith.constant 0 : i32
    return %c0_i32, %c0_i32_0 : i32, i32
  }
  func.func @transform_3(%arg0: i32) -> (i32, i32, i32) {
    %c0_i32 = arith.constant 0 : i32
    %c0_i32_0 = arith.constant 0 : i32
    %c0_i32_1 = arith.constant 0 : i32
    %c0_i32_2 = arith.constant 0 : i32
    return %c0_i32, %c0_i32_0, %c0_i32_1 : i32, i32, i32
  }
  func.func @transform_4(%arg0: i32) -> (i32, i32, i32) {
    %c0_i32 = arith.constant 0 : i32
    %c0_i32_0 = arith.constant 0 : i32
    %c0_i32_1 = arith.constant 0 : i32
    return %arg0, %c0_i32, %c0_i32_0 : i32, i32, i32
  }
  func.func @transform_5(%arg0: i32) -> (i32, i32, i32) {
    %c0_i32 = arith.constant 0 : i32
    %c0_i32_0 = arith.constant 0 : i32
    %c0_i32_1 = arith.constant 0 : i32
    return %arg0, %c0_i32, %c0_i32_0 : i32, i32, i32
  }
}

module attributes {stable_mosaic.version = 11 : i64} {
  func.func @_conv1_sc_kernel(%arg0: i32, %arg1: memref<1x128x128xbf16, #tpu.memory_space<vmem>>, %arg2: memref<128x256xbf16, #tpu.memory_space<vmem>>, %arg3: memref<1x128x128xbf16, #tpu.memory_space<vmem>>, %arg4: memref<1x128x128xbf16, #tpu.memory_space<vmem>>, %arg5: memref<1x2x128xf32, #tpu.memory_space<vmem>>, %arg6: memref<1x2x128xf32, #tpu.memory_space<vmem>>) attributes {dimension_semantics = [#tpu.dimension_semantics<parallel>], iteration_bounds = array<i64: 1>, scalar_prefetch = 0 : i64, scratch_operands = 0 : i64, tpu.core_type = #tpu.core_type<tc>, window_params = [{transform_indices = @transform_0, window_bounds = array<i64: 1, 128, 128>}, {pipeline_mode = #tpu.pipeline_mode<synchronous>, transform_indices = @transform_1, window_bounds = array<i64: 128, 256>}, {transform_indices = @transform_2, window_bounds = array<i64: 1, 128, 128>}, {transform_indices = @transform_3, window_bounds = array<i64: 1, 128, 128>}, {transform_indices = @transform_4, window_bounds = array<i64: 1, 2, 128>}, {transform_indices = @transform_5, window_bounds = array<i64: 1, 2, 128>}]} {
    %c0 = arith.constant 0 : index
    %c0_0 = arith.constant 0 : index
    %c0_1 = arith.constant 0 : index
    %0 = vector.load %arg1[%c0, %c0_0, %c0_1] : memref<1x128x128xbf16, #tpu.memory_space<vmem>>, vector<1x128x128xbf16>
    %1 = vector.shape_cast %0 : vector<1x128x128xbf16> to vector<128x128xbf16>
    %c0_2 = arith.constant 0 : index
    %c0_3 = arith.constant 0 : index
    %2 = vector.load %arg2[%c0_2, %c0_3] : memref<128x256xbf16, #tpu.memory_space<vmem>>, vector<128x256xbf16>
    %cst = arith.constant dense<0.000000e+00> : vector<128x256xf32>
    %3 = tpu.matmul %1, %2, %cst {dimension_numbers = #tpu.dot_dimension_numbers<[1], [0], [0], [1], [0, 0, 1, 1], [], []>} : vector<128x128xbf16>, vector<128x256xbf16>, vector<128x256xf32> -> vector<128x256xf32>
    %4 = vector.extract_strided_slice %3 {offsets = [0, 0], sizes = [128, 128], strides = [1, 1]} : vector<128x256xf32> to vector<128x128xf32>
    %5 = vector.extract_strided_slice %3 {offsets = [0, 128], sizes = [128, 128], strides = [1, 1]} : vector<128x256xf32> to vector<128x128xf32>
    %6 = arith.truncf %4 : vector<128x128xf32> to vector<128x128xbf16>
    %7 = vector.shape_cast %6 : vector<128x128xbf16> to vector<1x128x128xbf16>
    %c0_4 = arith.constant 0 : index
    %c0_5 = arith.constant 0 : index
    %c0_6 = arith.constant 0 : index
    %8 = vector.load %arg3[%c0_4, %c0_5, %c0_6] : memref<1x128x128xbf16, #tpu.memory_space<vmem>>, vector<1x128x128xbf16>
    tpu.vector_store %arg3[%c0_4, %c0_5, %c0_6], %7 {strides = array<i32>} : memref<1x128x128xbf16, #tpu.memory_space<vmem>>, vector<1x128x128xbf16>,
    %9 = arith.truncf %5 : vector<128x128xf32> to vector<128x128xbf16>
    %10 = vector.shape_cast %9 : vector<128x128xbf16> to vector<1x128x128xbf16>
    %c0_7 = arith.constant 0 : index
    %c0_8 = arith.constant 0 : index
    %c0_9 = arith.constant 0 : index
    %11 = vector.load %arg4[%c0_7, %c0_8, %c0_9] : memref<1x128x128xbf16, #tpu.memory_space<vmem>>, vector<1x128x128xbf16>
    tpu.vector_store %arg4[%c0_7, %c0_8, %c0_9], %10 {strides = array<i32>} : memref<1x128x128xbf16, #tpu.memory_space<vmem>>, vector<1x128x128xbf16>,
    %cst_10 = arith.constant dense<0.000000e+00> : vector<128xf32>
    %12 = vector.multi_reduction <add>, %4, %cst_10 [0] : vector<128x128xf32> to vector<128xf32>
    %13 = vector.shape_cast %12 : vector<128xf32> to vector<1x128xf32>
    %14 = arith.mulf %4, %4 : vector<128x128xf32>
    %cst_11 = arith.constant dense<0.000000e+00> : vector<128xf32>
    %15 = vector.multi_reduction <add>, %14, %cst_11 [0] : vector<128x128xf32> to vector<128xf32>
    %16 = vector.shape_cast %15 : vector<128xf32> to vector<1x128xf32>
    %17 = tpu.concatenate %13, %16 in 0 : vector<1x128xf32>, vector<1x128xf32> -> vector<2x128xf32>
    %18 = vector.shape_cast %17 : vector<2x128xf32> to vector<1x2x128xf32>
    %c0_12 = arith.constant 0 : index
    %c0_13 = arith.constant 0 : index
    %c0_14 = arith.constant 0 : index
    %19 = vector.load %arg5[%c0_12, %c0_13, %c0_14] : memref<1x2x128xf32, #tpu.memory_space<vmem>>, vector<1x2x128xf32>
    tpu.vector_store %arg5[%c0_12, %c0_13, %c0_14], %18 {strides = array<i32>} : memref<1x2x128xf32, #tpu.memory_space<vmem>>, vector<1x2x128xf32>,
    %cst_15 = arith.constant dense<0.000000e+00> : vector<128xf32>
    %20 = vector.multi_reduction <add>, %5, %cst_15 [0] : vector<128x128xf32> to vector<128xf32>
    %21 = vector.shape_cast %20 : vector<128xf32> to vector<1x128xf32>
    %22 = arith.mulf %5, %5 : vector<128x128xf32>
    %cst_16 = arith.constant dense<0.000000e+00> : vector<128xf32>
    %23 = vector.multi_reduction <add>, %22, %cst_16 [0] : vector<128x128xf32> to vector<128xf32>
    %24 = vector.shape_cast %23 : vector<128xf32> to vector<1x128xf32>
    %25 = tpu.concatenate %21, %24 in 0 : vector<1x128xf32>, vector<1x128xf32> -> vector<2x128xf32>
    %26 = vector.shape_cast %25 : vector<2x128xf32> to vector<1x2x128xf32>
    %c0_17 = arith.constant 0 : index
    %c0_18 = arith.constant 0 : index
    %c0_19 = arith.constant 0 : index
    %27 = vector.load %arg6[%c0_17, %c0_18, %c0_19] : memref<1x2x128xf32, #tpu.memory_space<vmem>>, vector<1x2x128xf32>
    tpu.vector_store %arg6[%c0_17, %c0_18, %c0_19], %26 {strides = array<i32>} : memref<1x2x128xf32, #tpu.memory_space<vmem>>, vector<1x2x128xf32>,
    return
  }
  func.func @transform_0(%arg0: i32) -> (i32, i32, i32) {
    %c0_i32 = arith.constant 0 : i32
    %c0_i32_0 = arith.constant 0 : i32
    %c0_i32_1 = arith.constant 0 : i32
    return %arg0, %c0_i32, %c0_i32_0 : i32, i32, i32
  }
  func.func @transform_1(%arg0: i32) -> (i32, i32) {
    %c0_i32 = arith.constant 0 : i32
    %c0_i32_0 = arith.constant 0 : i32
    %c0_i32_1 = arith.constant 0 : i32
    return %c0_i32, %c0_i32_0 : i32, i32
  }
  func.func @transform_2(%arg0: i32) -> (i32, i32, i32) {
    %c0_i32 = arith.constant 0 : i32
    %c0_i32_0 = arith.constant 0 : i32
    %c0_i32_1 = arith.constant 0 : i32
    return %arg0, %c0_i32, %c0_i32_0 : i32, i32, i32
  }
  func.func @transform_3(%arg0: i32) -> (i32, i32, i32) {
    %c0_i32 = arith.constant 0 : i32
    %c0_i32_0 = arith.constant 0 : i32
    %c0_i32_1 = arith.constant 0 : i32
    return %arg0, %c0_i32, %c0_i32_0 : i32, i32, i32
  }
  func.func @transform_4(%arg0: i32) -> (i32, i32, i32) {
    %c0_i32 = arith.constant 0 : i32
    %c0_i32_0 = arith.constant 0 : i32
    %c0_i32_1 = arith.constant 0 : i32
    return %arg0, %c0_i32, %c0_i32_0 : i32, i32, i32
  }
  func.func @transform_5(%arg0: i32) -> (i32, i32, i32) {
    %c0_i32 = arith.constant 0 : i32
    %c0_i32_0 = arith.constant 0 : i32
    %c0_i32_1 = arith.constant 0 : i32
    return %arg0, %c0_i32, %c0_i32_0 : i32, i32, i32
  }
}

module attributes {stable_mosaic.version = 11 : i64} {
  func.func @_conv3_kernel(%arg0: i32, %arg1: memref<1x128x128xbf16, #tpu.memory_space<vmem>>, %arg2: memref<1x128xf32, #tpu.memory_space<vmem>>, %arg3: memref<1x128xf32, #tpu.memory_space<vmem>>, %arg4: memref<128x128xbf16, #tpu.memory_space<vmem>>, %arg5: memref<1x128x128xbf16, #tpu.memory_space<vmem>>, %arg6: memref<1x2x128xf32, #tpu.memory_space<vmem>>) attributes {dimension_semantics = [#tpu.dimension_semantics<parallel>], iteration_bounds = array<i64: 1>, scalar_prefetch = 0 : i64, scratch_operands = 0 : i64, tpu.core_type = #tpu.core_type<tc>, window_params = [{transform_indices = @transform_0, window_bounds = array<i64: 1, 128, 128>}, {pipeline_mode = #tpu.pipeline_mode<synchronous>, transform_indices = @transform_1, window_bounds = array<i64: 1, 128>}, {pipeline_mode = #tpu.pipeline_mode<synchronous>, transform_indices = @transform_2, window_bounds = array<i64: 1, 128>}, {pipeline_mode = #tpu.pipeline_mode<synchronous>, transform_indices = @transform_3, window_bounds = array<i64: 128, 128>}, {transform_indices = @transform_4, window_bounds = array<i64: 1, 128, 128>}, {transform_indices = @transform_5, window_bounds = array<i64: 1, 2, 128>}]} {
    %c0 = arith.constant 0 : index
    %c0_0 = arith.constant 0 : index
    %c0_1 = arith.constant 0 : index
    %0 = vector.load %arg1[%c0, %c0_0, %c0_1] : memref<1x128x128xbf16, #tpu.memory_space<vmem>>, vector<1x128x128xbf16>
    %1 = vector.shape_cast %0 : vector<1x128x128xbf16> to vector<128x128xbf16>
    %2 = arith.extf %1 : vector<128x128xbf16> to vector<128x128xf32>
    %c0_2 = arith.constant 0 : index
    %c0_3 = arith.constant 0 : index
    %3 = vector.load %arg2[%c0_2, %c0_3] : memref<1x128xf32, #tpu.memory_space<vmem>>, vector<1x128xf32>
    %4 = vector.broadcast %3 : vector<1x128xf32> to vector<128x128xf32>
    %5 = arith.mulf %2, %4 : vector<128x128xf32>
    %c0_4 = arith.constant 0 : index
    %c0_5 = arith.constant 0 : index
    %6 = vector.load %arg3[%c0_4, %c0_5] : memref<1x128xf32, #tpu.memory_space<vmem>>, vector<1x128xf32>
    %7 = vector.broadcast %6 : vector<1x128xf32> to vector<128x128xf32>
    %8 = arith.addf %5, %7 : vector<128x128xf32>
    %cst = arith.constant 0.000000e+00 : f32
    %9 = vector.broadcast %cst : f32 to vector<128x128xf32>
    %10 = arith.maximumf %8, %9 : vector<128x128xf32>
    %11 = arith.truncf %10 : vector<128x128xf32> to vector<128x128xbf16>
    %c0_6 = arith.constant 0 : index
    %c0_7 = arith.constant 0 : index
    %12 = vector.load %arg4[%c0_6, %c0_7] : memref<128x128xbf16, #tpu.memory_space<vmem>>, vector<128x128xbf16>
    %cst_8 = arith.constant dense<0.000000e+00> : vector<128x128xf32>
    %13 = tpu.matmul %11, %12, %cst_8 {dimension_numbers = #tpu.dot_dimension_numbers<[1], [0], [0], [1], [0, 0, 1, 1], [], []>} : vector<128x128xbf16>, vector<128x128xbf16>, vector<128x128xf32> -> vector<128x128xf32>
    %14 = arith.truncf %13 : vector<128x128xf32> to vector<128x128xbf16>
    %15 = vector.shape_cast %14 : vector<128x128xbf16> to vector<1x128x128xbf16>
    %c0_9 = arith.constant 0 : index
    %c0_10 = arith.constant 0 : index
    %c0_11 = arith.constant 0 : index
    %16 = vector.load %arg5[%c0_9, %c0_10, %c0_11] : memref<1x128x128xbf16, #tpu.memory_space<vmem>>, vector<1x128x128xbf16>
    tpu.vector_store %arg5[%c0_9, %c0_10, %c0_11], %15 {strides = array<i32>} : memref<1x128x128xbf16, #tpu.memory_space<vmem>>, vector<1x128x128xbf16>,
    %cst_12 = arith.constant dense<0.000000e+00> : vector<128xf32>
    %17 = vector.multi_reduction <add>, %13, %cst_12 [0] : vector<128x128xf32> to vector<128xf32>
    %18 = vector.shape_cast %17 : vector<128xf32> to vector<1x128xf32>
    %19 = arith.mulf %13, %13 : vector<128x128xf32>
    %cst_13 = arith.constant dense<0.000000e+00> : vector<128xf32>
    %20 = vector.multi_reduction <add>, %19, %cst_13 [0] : vector<128x128xf32> to vector<128xf32>
    %21 = vector.shape_cast %20 : vector<128xf32> to vector<1x128xf32>
    %22 = tpu.concatenate %18, %21 in 0 : vector<1x128xf32>, vector<1x128xf32> -> vector<2x128xf32>
    %23 = vector.shape_cast %22 : vector<2x128xf32> to vector<1x2x128xf32>
    %c0_14 = arith.constant 0 : index
    %c0_15 = arith.constant 0 : index
    %c0_16 = arith.constant 0 : index
    %24 = vector.load %arg6[%c0_14, %c0_15, %c0_16] : memref<1x2x128xf32, #tpu.memory_space<vmem>>, vector<1x2x128xf32>
    tpu.vector_store %arg6[%c0_14, %c0_15, %c0_16], %23 {strides = array<i32>} : memref<1x2x128xf32, #tpu.memory_space<vmem>>, vector<1x2x128xf32>,
    return
  }
  func.func @transform_0(%arg0: i32) -> (i32, i32, i32) {
    %c0_i32 = arith.constant 0 : i32
    %c0_i32_0 = arith.constant 0 : i32
    %c0_i32_1 = arith.constant 0 : i32
    return %arg0, %c0_i32, %c0_i32_0 : i32, i32, i32
  }
  func.func @transform_1(%arg0: i32) -> (i32, i32) {
    %c0_i32 = arith.constant 0 : i32
    %c0_i32_0 = arith.constant 0 : i32
    %c0_i32_1 = arith.constant 0 : i32
    return %c0_i32, %c0_i32_0 : i32, i32
  }
  func.func @transform_2(%arg0: i32) -> (i32, i32) {
    %c0_i32 = arith.constant 0 : i32
    %c0_i32_0 = arith.constant 0 : i32
    %c0_i32_1 = arith.constant 0 : i32
    return %c0_i32, %c0_i32_0 : i32, i32
  }
  func.func @transform_3(%arg0: i32) -> (i32, i32) {
    %c0_i32 = arith.constant 0 : i32
    %c0_i32_0 = arith.constant 0 : i32
    %c0_i32_1 = arith.constant 0 : i32
    return %c0_i32, %c0_i32_0 : i32, i32
  }
  func.func @transform_4(%arg0: i32) -> (i32, i32, i32) {
    %c0_i32 = arith.constant 0 : i32
    %c0_i32_0 = arith.constant 0 : i32
    %c0_i32_1 = arith.constant 0 : i32
    return %arg0, %c0_i32, %c0_i32_0 : i32, i32, i32
  }
  func.func @transform_5(%arg0: i32) -> (i32, i32, i32) {
    %c0_i32 = arith.constant 0 : i32
    %c0_i32_0 = arith.constant 0 : i32
    %c0_i32_1 = arith.constant 0 : i32
    return %arg0, %c0_i32, %c0_i32_0 : i32, i32, i32
  }
}

module attributes {stable_mosaic.version = 11 : i64} {
  func.func @_se_tail_kernel(%arg0: i32, %arg1: memref<1x128x128xbf16, #tpu.memory_space<vmem>>, %arg2: memref<1x128x128xbf16, #tpu.memory_space<vmem>>, %arg3: memref<1x128xf32, #tpu.memory_space<vmem>>, %arg4: memref<1x128xf32, #tpu.memory_space<vmem>>, %arg5: memref<1x128xf32, #tpu.memory_space<vmem>>, %arg6: memref<1x128xf32, #tpu.memory_space<vmem>>, %arg7: memref<128x8xbf16, #tpu.memory_space<vmem>>, %arg8: memref<1x8xf32, #tpu.memory_space<vmem>>, %arg9: memref<8x128xbf16, #tpu.memory_space<vmem>>, %arg10: memref<1x128xf32, #tpu.memory_space<vmem>>, %arg11: memref<1x128x128xbf16, #tpu.memory_space<vmem>>) attributes {dimension_semantics = [#tpu.dimension_semantics<parallel>], iteration_bounds = array<i64: 1>, scalar_prefetch = 0 : i64, scratch_operands = 0 : i64, tpu.core_type = #tpu.core_type<tc>, window_params = [{transform_indices = @transform_0, window_bounds = array<i64: 1, 128, 128>}, {transform_indices = @transform_1, window_bounds = array<i64: 1, 128, 128>}, {pipeline_mode = #tpu.pipeline_mode<synchronous>, transform_indices = @transform_2, window_bounds = array<i64: 1, 128>}, {pipeline_mode = #tpu.pipeline_mode<synchronous>, transform_indices = @transform_3, window_bounds = array<i64: 1, 128>}, {pipeline_mode = #tpu.pipeline_mode<synchronous>, transform_indices = @transform_4, window_bounds = array<i64: 1, 128>}, {pipeline_mode = #tpu.pipeline_mode<synchronous>, transform_indices = @transform_5, window_bounds = array<i64: 1, 128>}, {pipeline_mode = #tpu.pipeline_mode<synchronous>, transform_indices = @transform_6, window_bounds = array<i64: 128, 8>}, {pipeline_mode = #tpu.pipeline_mode<synchronous>, transform_indices = @transform_7, window_bounds = array<i64: 1, 8>}, {pipeline_mode = #tpu.pipeline_mode<synchronous>, transform_indices = @transform_8, window_bounds = array<i64: 8, 128>}, {pipeline_mode = #tpu.pipeline_mode<synchronous>, transform_indices = @transform_9, window_bounds = array<i64: 1, 128>}, {transform_indices = @transform_10, window_bounds = array<i64: 1, 128, 128>}]} {
    %c0 = arith.constant 0 : index
    %c0_0 = arith.constant 0 : index
    %c0_1 = arith.constant 0 : index
    %0 = vector.load %arg1[%c0, %c0_0, %c0_1] : memref<1x128x128xbf16, #tpu.memory_space<vmem>>, vector<1x128x128xbf16>
    %1 = vector.shape_cast %0 : vector<1x128x128xbf16> to vector<128x128xbf16>
    %2 = arith.extf %1 : vector<128x128xbf16> to vector<128x128xf32>
    %c0_2 = arith.constant 0 : index
    %c0_3 = arith.constant 0 : index
    %3 = vector.load %arg3[%c0_2, %c0_3] : memref<1x128xf32, #tpu.memory_space<vmem>>, vector<1x128xf32>
    %4 = vector.broadcast %3 : vector<1x128xf32> to vector<128x128xf32>
    %5 = arith.mulf %2, %4 : vector<128x128xf32>
    %c0_4 = arith.constant 0 : index
    %c0_5 = arith.constant 0 : index
    %6 = vector.load %arg4[%c0_4, %c0_5] : memref<1x128xf32, #tpu.memory_space<vmem>>, vector<1x128xf32>
    %7 = vector.broadcast %6 : vector<1x128xf32> to vector<128x128xf32>
    %8 = arith.addf %5, %7 : vector<128x128xf32>
    %9 = vector.shape_cast %8 : vector<128x128xf32> to vector<2x64x128xf32>
    %cst = arith.constant dense<0.000000e+00> : vector<2x128xf32>
    %10 = vector.multi_reduction <add>, %9, %cst [1] : vector<2x64x128xf32> to vector<2x128xf32>
    %cst_6 = arith.constant 6.400000e+01 : f32
    %11 = vector.broadcast %cst_6 : f32 to vector<2x128xf32>
    %12 = arith.divf %10, %11 : vector<2x128xf32>
    %13 = arith.truncf %12 : vector<2x128xf32> to vector<2x128xbf16>
    %c0_7 = arith.constant 0 : index
    %c0_8 = arith.constant 0 : index
    %14 = vector.load %arg7[%c0_7, %c0_8] : memref<128x8xbf16, #tpu.memory_space<vmem>>, vector<128x8xbf16>
    %cst_9 = arith.constant dense<0.000000e+00> : vector<2x8xf32>
    %15 = tpu.matmul %13, %14, %cst_9 {dimension_numbers = #tpu.dot_dimension_numbers<[1], [0], [0], [1], [0, 0, 1, 1], [], []>} : vector<2x128xbf16>, vector<128x8xbf16>, vector<2x8xf32> -> vector<2x8xf32>
    %c0_10 = arith.constant 0 : index
    %c0_11 = arith.constant 0 : index
    %16 = vector.load %arg8[%c0_10, %c0_11] : memref<1x8xf32, #tpu.memory_space<vmem>>, vector<1x8xf32>
    %17 = vector.broadcast %16 : vector<1x8xf32> to vector<2x8xf32>
    %18 = arith.addf %15, %17 : vector<2x8xf32>
    %cst_12 = arith.constant 0.000000e+00 : f32
    %19 = vector.broadcast %cst_12 : f32 to vector<2x8xf32>
    %20 = arith.maximumf %18, %19 : vector<2x8xf32>
    %21 = arith.truncf %20 : vector<2x8xf32> to vector<2x8xbf16>
    %c0_13 = arith.constant 0 : index
    %c0_14 = arith.constant 0 : index
    %22 = vector.load %arg9[%c0_13, %c0_14] : memref<8x128xbf16, #tpu.memory_space<vmem>>, vector<8x128xbf16>
    %cst_15 = arith.constant dense<0.000000e+00> : vector<2x128xf32>
    %23 = tpu.matmul %21, %22, %cst_15 {dimension_numbers = #tpu.dot_dimension_numbers<[1], [0], [0], [1], [0, 0, 1, 1], [], []>} : vector<2x8xbf16>, vector<8x128xbf16>, vector<2x128xf32> -> vector<2x128xf32>
    %c0_16 = arith.constant 0 : index
    %c0_17 = arith.constant 0 : index
    %24 = vector.load %arg10[%c0_16, %c0_17] : memref<1x128xf32, #tpu.memory_space<vmem>>, vector<1x128xf32>
    %25 = vector.broadcast %24 : vector<1x128xf32> to vector<2x128xf32>
    %26 = arith.addf %23, %25 : vector<2x128xf32>
    %27 = arith.negf %26 : vector<2x128xf32>
    %28 = math.exp %27 : vector<2x128xf32>
    %cst_18 = arith.constant 1.000000e+00 : f32
    %29 = vector.broadcast %cst_18 : f32 to vector<2x128xf32>
    %30 = arith.addf %29, %28 : vector<2x128xf32>
    %31 = arith.divf %29, %30 : vector<2x128xf32>
    %c0_19 = arith.constant 0 : index
    %c0_20 = arith.constant 0 : index
    %c0_21 = arith.constant 0 : index
    %32 = vector.load %arg2[%c0_19, %c0_20, %c0_21] : memref<1x128x128xbf16, #tpu.memory_space<vmem>>, vector<1x128x128xbf16>
    %33 = vector.shape_cast %32 : vector<1x128x128xbf16> to vector<128x128xbf16>
    %34 = arith.extf %33 : vector<128x128xbf16> to vector<128x128xf32>
    %c0_22 = arith.constant 0 : index
    %c0_23 = arith.constant 0 : index
    %35 = vector.load %arg5[%c0_22, %c0_23] : memref<1x128xf32, #tpu.memory_space<vmem>>, vector<1x128xf32>
    %36 = vector.broadcast %35 : vector<1x128xf32> to vector<128x128xf32>
    %37 = arith.mulf %34, %36 : vector<128x128xf32>
    %c0_24 = arith.constant 0 : index
    %c0_25 = arith.constant 0 : index
    %38 = vector.load %arg6[%c0_24, %c0_25] : memref<1x128xf32, #tpu.memory_space<vmem>>, vector<1x128xf32>
    %39 = vector.broadcast %38 : vector<1x128xf32> to vector<128x128xf32>
    %40 = arith.addf %37, %39 : vector<128x128xf32>
    %41 = vector.shape_cast %40 : vector<128x128xf32> to vector<2x64x128xf32>
    %42 = vector.shape_cast %31 : vector<2x128xf32> to vector<2x1x128xf32>
    %43 = vector.broadcast %42 : vector<2x1x128xf32> to vector<2x64x128xf32>
    %44 = arith.mulf %9, %43 : vector<2x64x128xf32>
    %45 = arith.addf %44, %41 : vector<2x64x128xf32>
    %cst_26 = arith.constant 0.000000e+00 : f32
    %46 = vector.broadcast %cst_26 : f32 to vector<2x64x128xf32>
    %47 = arith.maximumf %45, %46 : vector<2x64x128xf32>
    %48 = vector.shape_cast %47 : vector<2x64x128xf32> to vector<1x128x128xf32>
    %49 = arith.truncf %48 : vector<1x128x128xf32> to vector<1x128x128xbf16>
    %c0_27 = arith.constant 0 : index
    %c0_28 = arith.constant 0 : index
    %c0_29 = arith.constant 0 : index
    %50 = vector.load %arg11[%c0_27, %c0_28, %c0_29] : memref<1x128x128xbf16, #tpu.memory_space<vmem>>, vector<1x128x128xbf16>
    tpu.vector_store %arg11[%c0_27, %c0_28, %c0_29], %49 {strides = array<i32>} : memref<1x128x128xbf16, #tpu.memory_space<vmem>>, vector<1x128x128xbf16>,
    return
  }
  func.func @transform_0(%arg0: i32) -> (i32, i32, i32) {
    %c0_i32 = arith.constant 0 : i32
    %c0_i32_0 = arith.constant 0 : i32
    %c0_i32_1 = arith.constant 0 : i32
    return %arg0, %c0_i32, %c0_i32_0 : i32, i32, i32
  }
  func.func @transform_1(%arg0: i32) -> (i32, i32, i32) {
    %c0_i32 = arith.constant 0 : i32
    %c0_i32_0 = arith.constant 0 : i32
    %c0_i32_1 = arith.constant 0 : i32
    return %arg0, %c0_i32, %c0_i32_0 : i32, i32, i32
  }
  func.func @transform_2(%arg0: i32) -> (i32, i32) {
    %c0_i32 = arith.constant 0 : i32
    %c0_i32_0 = arith.constant 0 : i32
    %c0_i32_1 = arith.constant 0 : i32
    return %c0_i32, %c0_i32_0 : i32, i32
  }
  func.func @transform_3(%arg0: i32) -> (i32, i32) {
    %c0_i32 = arith.constant 0 : i32
    %c0_i32_0 = arith.constant 0 : i32
    %c0_i32_1 = arith.constant 0 : i32
    return %c0_i32, %c0_i32_0 : i32, i32
  }
  func.func @transform_4(%arg0: i32) -> (i32, i32) {
    %c0_i32 = arith.constant 0 : i32
    %c0_i32_0 = arith.constant 0 : i32
    %c0_i32_1 = arith.constant 0 : i32
    return %c0_i32, %c0_i32_0 : i32, i32
  }
  func.func @transform_5(%arg0: i32) -> (i32, i32) {
    %c0_i32 = arith.constant 0 : i32
    %c0_i32_0 = arith.constant 0 : i32
    %c0_i32_1 = arith.constant 0 : i32
    return %c0_i32, %c0_i32_0 : i32, i32
  }
  func.func @transform_6(%arg0: i32) -> (i32, i32) {
    %c0_i32 = arith.constant 0 : i32
    %c0_i32_0 = arith.constant 0 : i32
    %c0_i32_1 = arith.constant 0 : i32
    return %c0_i32, %c0_i32_0 : i32, i32
  }
  func.func @transform_7(%arg0: i32) -> (i32, i32) {
    %c0_i32 = arith.constant 0 : i32
    %c0_i32_0 = arith.constant 0 : i32
    %c0_i32_1 = arith.constant 0 : i32
    return %c0_i32, %c0_i32_0 : i32, i32
  }
  func.func @transform_8(%arg0: i32) -> (i32, i32) {
    %c0_i32 = arith.constant 0 : i32
    %c0_i32_0 = arith.constant 0 : i32
    %c0_i32_1 = arith.constant 0 : i32
    return %c0_i32, %c0_i32_0 : i32, i32
  }
  func.func @transform_9(%arg0: i32) -> (i32, i32) {
    %c0_i32 = arith.constant 0 : i32
    %c0_i32_0 = arith.constant 0 : i32
    %c0_i32_1 = arith.constant 0 : i32
    return %c0_i32, %c0_i32_0 : i32, i32
  }
  func.func @transform_10(%arg0: i32) -> (i32, i32, i32) {
    %c0_i32 = arith.constant 0 : i32
    %c0_i32_0 = arith.constant 0 : i32
    %c0_i32_1 = arith.constant 0 : i32
    return %arg0, %c0_i32, %c0_i32_0 : i32, i32, i32
  }
}

</mosaic_0001>

<llo_original>
// kernel: block_forward.6
$region0: #{block_forward.6}
  #allocation0 [shape = 'u32[]', space=smem, size = 0x4, offset = 0x4, fixed_abs, tag = 'smem constant byte address 0x4 - core index']
  #allocation1 [shape = 'u32[144,128]{1,0:T(1,128)}', space=vmem, size = 0x12000, scoped, tag = 'internal scratch']
  %s0 = inlined_call_operand.vmem [shape: bf16[1,128,128], index: 0, kind: input, shape index: {}]
  %s1 = inlined_call_operand.vmem [shape: f32[1,128], index: 1, kind: input, shape index: {}]
  %s2 = inlined_call_operand.vmem [shape: f32[1,128], index: 2, kind: input, shape index: {}]
  %s3 = inlined_call_operand.vmem [shape: bf16[128,128], index: 3, kind: input, shape index: {}]
  %s4 = inlined_call_operand.vmem [shape: bf16[1,128,128], index: 4, kind: output, shape index: {0}]
  %s5 = inlined_call_operand.vmem [shape: f32[1,2,128], index: 5, kind: output, shape index: {1}]
  %6 = xla_tuple %s4, %s5
  %s7 = sld [smem:[#allocation0]]
  $region34: #{block_forward.6} parent=0
    _
  %s9 = ssub.s32 1, %s7
  %s10 = scalar_select 0, %s9, %s7
  // Predicated region
  $region2: #{block_forward.6} parent=0 // pred_check
    _
  $region3: #{block_forward.6} parent=0 // pred_check_branch
    %12 = sbr.rel (0) target = $region5
  $region4: #{block_forward.6} parent=0 // pred_region
    _
  $region5: #{block_forward.6} parent=0 // pred_fallthru
    _
  // Predicated region
  $region6: #{block_forward.6} parent=0 // pred_check
    _
  $region7: #{block_forward.6} parent=0 // pred_check_branch
    %14 = sbr.rel (0) target = $region9
  $region8: #{block_forward.6} parent=0 // pred_region
    _
  $region9: #{block_forward.6} parent=0 // pred_fallthru
    _
  // Predicated region
  $region10: #{block_forward.6} parent=0 // pred_check
    _
  $region11: #{block_forward.6} parent=0 // pred_check_branch
    %16 = sbr.rel (0) target = $region13
  $region12: #{block_forward.6} parent=0 // pred_region
    _
  $region13: #{block_forward.6} parent=0 // pred_fallthru
    _
  // Predicated region
  $region14: #{block_forward.6} parent=0 // pred_check
    _
  $region15: #{block_forward.6} parent=0 // pred_check_branch
    %18 = sbr.rel (0) target = $region17
  $region16: #{block_forward.6} parent=0 // pred_region
    _
  $region17: #{block_forward.6} parent=0 // pred_fallthru
    _
  %v20 = vld [vmem:[%s0] sm:$0xf]
  %v21 = vld [vmem:[%s0 + $0x4] sm:$0xf]
  %v22 = vld [vmem:[%s0 + $0x8] sm:$0xf]
  %v23 = vld [vmem:[%s0 + $0xc] sm:$0xf]
  %v24 = vld [vmem:[%s0 + $0x10] sm:$0xf]
  %v25 = vld [vmem:[%s0 + $0x14] sm:$0xf]
  %v26 = vld [vmem:[%s0 + $0x18] sm:$0xf]
  %v27 = vld [vmem:[%s0 + $0x1c] sm:$0xf]
  %v28 = vld [vmem:[%s0 + $0x20] sm:$0xf]
  %v29 = vld [vmem:[%s0 + $0x24] sm:$0xf]
  %v30 = vld [vmem:[%s0 + $0x28] sm:$0xf]
  %v31 = vld [vmem:[%s0 + $0x2c] sm:$0xf]
  %v32 = vld [vmem:[%s0 + $0x30] sm:$0xf]
  %v33 = vld [vmem:[%s0 + $0x34] sm:$0xf]
  %v34 = vld [vmem:[%s0 + $0x38] sm:$0xf]
  %v35 = vld [vmem:[%s0 + $0x3c] sm:$0xf]
  %v36 = vunpack.c.l.bf16 %v20
  %v37 = vunpack.c.l.bf16 %v21
  %v38 = vunpack.c.l.bf16 %v22
  %v39 = vunpack.c.l.bf16 %v23
  %v40 = vunpack.c.l.bf16 %v24
  %v41 = vunpack.c.l.bf16 %v25
  %v42 = vunpack.c.l.bf16 %v26
  %v43 = vunpack.c.l.bf16 %v27
  %v44 = vunpack.c.l.bf16 %v28
  %v45 = vunpack.c.l.bf16 %v29
  %v46 = vunpack.c.l.bf16 %v30
  %v47 = vunpack.c.l.bf16 %v31
  %v48 = vunpack.c.l.bf16 %v32
  %v49 = vunpack.c.l.bf16 %v33
  %v50 = vunpack.c.l.bf16 %v34
  %v51 = vunpack.c.l.bf16 %v35
  %v52 = vld [vmem:[%s1] sm:$0x1]
  %v54 = vlaneseq
  %v55 = vshrl.u32 %v54, 7
  %v56 = vsub.s32 0, %v55
  %v57 = vrot.slane %v52, %v56
  %v59 = vmul.f32 %v36, %v57
  %v60 = vmul.f32 %v37, %v57
  %v61 = vmul.f32 %v38, %v57
  %v62 = vmul.f32 %v39, %v57
  %v63 = vmul.f32 %v40, %v57
  %v64 = vmul.f32 %v41, %v57
  %v65 = vmul.f32 %v42, %v57
  %v66 = vmul.f32 %v43, %v57
  %v67 = vmul.f32 %v44, %v57
  %v68 = vmul.f32 %v45, %v57
  %v69 = vmul.f32 %v46, %v57
  %v70 = vmul.f32 %v47, %v57
  %v71 = vmul.f32 %v48, %v57
  %v72 = vmul.f32 %v49, %v57
  %v73 = vmul.f32 %v50, %v57
  %v74 = vmul.f32 %v51, %v57
  %v75 = vld [vmem:[%s2] sm:$0x1]
  %v77 = vlaneseq
  %v78 = vshrl.u32 %v77, 7
  %v79 = vsub.s32 0, %v78
  %v80 = vrot.slane %v75, %v79
  %v82 = vadd.f32 %v59, %v80
  %v83 = vadd.f32 %v60, %v80
  %v84 = vadd.f32 %v61, %v80
  %v85 = vadd.f32 %v62, %v80
  %v86 = vadd.f32 %v63, %v80
  %v87 = vadd.f32 %v64, %v80
  %v88 = vadd.f32 %v65, %v80
  %v89 = vadd.f32 %v66, %v80
  %v90 = vadd.f32 %v67, %v80
  %v91 = vadd.f32 %v68, %v80
  %v92 = vadd.f32 %v69, %v80
  %v93 = vadd.f32 %v70, %v80
  %v94 = vadd.f32 %v71, %v80
  %v95 = vadd.f32 %v72, %v80
  %v96 = vadd.f32 %v73, %v80
  %v97 = vadd.f32 %v74, %v80
  %v98 = vmax.f32 %v82, 0.0
  %v99 = vmax.f32 %v83, 0.0
  %v100 = vmax.f32 %v84, 0.0
  %v101 = vmax.f32 %v85, 0.0
  %v102 = vmax.f32 %v86, 0.0
  %v103 = vmax.f32 %v87, 0.0
  %v104 = vmax.f32 %v88, 0.0
  %v105 = vmax.f32 %v89, 0.0
  %v106 = vmax.f32 %v90, 0.0
  %v107 = vmax.f32 %v91, 0.0
  %v108 = vmax.f32 %v92, 0.0
  %v109 = vmax.f32 %v93, 0.0
  %v110 = vmax.f32 %v94, 0.0
  %v111 = vmax.f32 %v95, 0.0
  %v112 = vmax.f32 %v96, 0.0
  %v113 = vmax.f32 %v97, 0.0
  %v114 = vpack.c.bf16 %v99, %v98
  %v115 = vpack.c.bf16 %v101, %v100
  %v116 = vpack.c.bf16 %v103, %v102
  %v117 = vpack.c.bf16 %v105, %v104
  %v118 = vpack.c.bf16 %v107, %v106
  %v119 = vpack.c.bf16 %v109, %v108
  %v120 = vpack.c.bf16 %v111, %v110
  %v121 = vpack.c.bf16 %v113, %v112
  %v122 = vld [vmem:[%s3] sm:$0xf]
  %v123 = vld [vmem:[%s3 + $0x4] sm:$0xf]
  %v124 = vld [vmem:[%s3 + $0x8] sm:$0xf]
  %v125 = vld [vmem:[%s3 + $0xc] sm:$0xf]
  %v126 = vld [vmem:[%s3 + $0x10] sm:$0xf]
  %v127 = vld [vmem:[%s3 + $0x14] sm:$0xf]
  %v128 = vld [vmem:[%s3 + $0x18] sm:$0xf]
  %v129 = vld [vmem:[%s3 + $0x1c] sm:$0xf]
  %v130 = vld [vmem:[%s3 + $0x20] sm:$0xf]
  %v131 = vld [vmem:[%s3 + $0x24] sm:$0xf]
  %v132 = vld [vmem:[%s3 + $0x28] sm:$0xf]
  %v133 = vld [vmem:[%s3 + $0x2c] sm:$0xf]
  %v134 = vld [vmem:[%s3 + $0x30] sm:$0xf]
  %v135 = vld [vmem:[%s3 + $0x34] sm:$0xf]
  %v136 = vld [vmem:[%s3 + $0x38] sm:$0xf]
  %v137 = vld [vmem:[%s3 + $0x3c] sm:$0xf]
  %v154 = vunpack.c.l.b16 %v122
  %v155 = vunpack.c.l.b16 %v123
  %v156 = vunpack.c.l.b16 %v124
  %v157 = vunpack.c.l.b16 %v125
  %v158 = vunpack.c.l.b16 %v126
  %v159 = vunpack.c.l.b16 %v127
  %v160 = vunpack.c.l.b16 %v128
  %v161 = vunpack.c.l.b16 %v129
  %v162 = vunpack.c.l.b16 %v130
  %v163 = vunpack.c.l.b16 %v131
  %v164 = vunpack.c.l.b16 %v132
  %v165 = vunpack.c.l.b16 %v133
  %v166 = vunpack.c.l.b16 %v134
  %v167 = vunpack.c.l.b16 %v135
  %v168 = vunpack.c.l.b16 %v136
  %v169 = vunpack.c.l.b16 %v137
  %v170 = vpack.c.b16 %v155, %v154
  %v171 = vpack.c.b16 %v157, %v156
  %v172 = vpack.c.b16 %v159, %v158
  %v173 = vpack.c.b16 %v161, %v160
  %v174 = vpack.c.b16 %v163, %v162
  %v175 = vpack.c.b16 %v165, %v164
  %v176 = vpack.c.b16 %v167, %v166
  %v177 = vpack.c.b16 %v169, %v168
  %186 = vmatprep.subr.bf16.mxu0 0
  %187 = vmatpush1.bf16.msra.mxu0 %v177
  %188 = vmatprep.subr.bf16.mxu0 0
  %189 = vmatpush1.bf16.msra.mxu0 %v176
  %190 = vmatprep.subr.bf16.mxu0 0
  %191 = vmatpush1.bf16.msra.mxu0 %v175
  %192 = vmatprep.subr.bf16.mxu0 0
  %193 = vmatpush1.bf16.msra.mxu0 %v174
  %194 = vmatprep.subr.bf16.mxu0 0
  %195 = vmatpush1.bf16.msra.mxu0 %v173
  %196 = vmatprep.subr.bf16.mxu0 0
  %197 = vmatpush1.bf16.msra.mxu0 %v172
  %198 = vmatprep.subr.bf16.mxu0 0
  %199 = vmatpush1.bf16.msra.mxu0 %v171
  %200 = vmatprep.subr.bf16.mxu0 0
  %201 = vmatpush1.bf16.msra.mxu0 %v170
  %202 = vmatprep.subr.bf16.mxu0 0
  %203 = vmatpush2.bf16.msra.mxu0 0
  %204 = vmatprep.subr.bf16.mxu0 0
  %205 = vmatpush2.bf16.msra.mxu0 0
  %206 = vmatprep.subr.bf16.mxu0 0
  %207 = vmatpush2.bf16.msra.mxu0 0
  %208 = vmatprep.subr.bf16.mxu0 0
  %209 = vmatpush2.bf16.msra.mxu0 0
  %210 = vmatprep.subr.bf16.mxu0 0
  %211 = vmatpush2.bf16.msra.mxu0 0
  %212 = vmatprep.subr.bf16.mxu0 0
  %213 = vmatpush2.bf16.msra.mxu0 0
  %214 = vmatprep.subr.bf16.mxu0 0
  %215 = vmatpush2.bf16.msra.mxu0 0
  %216 = vmatprep.subr.bf16.mxu0 0
  %217 = vmatpush2.bf16.msra.mxu0 0
  %218 = vmatprep.mubr.bf16.mxu0 0
  %219 = vmatmul.mubr.bf16.gmra.mxu0 %v114
  %v220 = vpop.f32.mrf.mxu0
  %v221 = vadd.f32 0.0, %v220
  %v222 = vpop.f32.mrf.mxu0
  %v223 = vpop.f32.mrf.mxu0
  %v224 = vadd.f32 0.0, %v223
  %v225 = vpop.f32.mrf.mxu0
  %226 = vmatprep.mubr.bf16.mxu0 0
  %227 = vmatmul.mubr.bf16.gmra.mxu0 %v115
  %v228 = vpop.f32.mrf.mxu0
  %v229 = vadd.f32 0.0, %v228
  %v230 = vpop.f32.mrf.mxu0
  %v231 = vpop.f32.mrf.mxu0
  %v232 = vadd.f32 0.0, %v231
  %v233 = vpop.f32.mrf.mxu0
  %234 = vmatprep.mubr.bf16.mxu0 0
  %235 = vmatmul.mubr.bf16.gmra.mxu0 %v116
  %v236 = vpop.f32.mrf.mxu0
  %v237 = vadd.f32 0.0, %v236
  %v238 = vpop.f32.mrf.mxu0
  %v239 = vpop.f32.mrf.mxu0
  %v240 = vadd.f32 0.0, %v239
  %v241 = vpop.f32.mrf.mxu0
  %242 = vmatprep.mubr.bf16.mxu0 0
  %243 = vmatmul.mubr.bf16.gmra.mxu0 %v117
  %v244 = vpop.f32.mrf.mxu0
  %v245 = vadd.f32 0.0, %v244
  %v246 = vpop.f32.mrf.mxu0
  %v247 = vpop.f32.mrf.mxu0
  %v248 = vadd.f32 0.0, %v247
  %v249 = vpop.f32.mrf.mxu0
  %250 = vmatprep.mubr.bf16.mxu0 0
  %251 = vmatmul.mubr.bf16.gmra.mxu0 %v118
  %v252 = vpop.f32.mrf.mxu0
  %v253 = vadd.f32 0.0, %v252
  %v254 = vpop.f32.mrf.mxu0
  %v255 = vpop.f32.mrf.mxu0
  %v256 = vadd.f32 0.0, %v255
  %v257 = vpop.f32.mrf.mxu0
  %258 = vmatprep.mubr.bf16.mxu0 0
  %259 = vmatmul.mubr.bf16.gmra.mxu0 %v119
  %v260 = vpop.f32.mrf.mxu0
  %v261 = vadd.f32 0.0, %v260
  %v262 = vpop.f32.mrf.mxu0
  %v263 = vpop.f32.mrf.mxu0
  %v264 = vadd.f32 0.0, %v263
  %v265 = vpop.f32.mrf.mxu0
  %266 = vmatprep.mubr.bf16.mxu0 0
  %267 = vmatmul.mubr.bf16.gmra.mxu0 %v120
  %v268 = vpop.f32.mrf.mxu0
  %v269 = vadd.f32 0.0, %v268
  %v270 = vpop.f32.mrf.mxu0
  %v271 = vpop.f32.mrf.mxu0
  %v272 = vadd.f32 0.0, %v271
  %v273 = vpop.f32.mrf.mxu0
  %274 = vmatprep.mubr.bf16.mxu0 0
  %275 = vmatmul.mubr.bf16.gmra.mxu0 %v121
  %v276 = vpop.f32.mrf.mxu0
  %v277 = vadd.f32 0.0, %v276
  %v278 = vpop.f32.mrf.mxu0
  %v279 = vpop.f32.mrf.mxu0
  %v280 = vadd.f32 0.0, %v279
  %v281 = vpop.f32.mrf.mxu0
  %282 = vdwg.mxu0
  %v283 = vpack.c.bf16 %v224, %v221
  %v284 = vpack.c.bf16 %v232, %v229
  %v285 = vpack.c.bf16 %v240, %v237
  %v286 = vpack.c.bf16 %v248, %v245
  %v287 = vpack.c.bf16 %v256, %v253
  %v288 = vpack.c.bf16 %v264, %v261
  %v289 = vpack.c.bf16 %v272, %v269
  %v290 = vpack.c.bf16 %v280, %v277
  %v299 = vunpack.c.l.b16 %v283
  %v300 = vunpack.c.h.b16 %v283
  %v301 = vunpack.c.l.b16 %v284
  %v302 = vunpack.c.h.b16 %v284
  %v303 = vunpack.c.l.b16 %v285
  %v304 = vunpack.c.h.b16 %v285
  %v305 = vunpack.c.l.b16 %v286
  %v306 = vunpack.c.h.b16 %v286
  %v307 = vunpack.c.l.b16 %v287
  %v308 = vunpack.c.h.b16 %v287
  %v309 = vunpack.c.l.b16 %v288
  %v310 = vunpack.c.h.b16 %v288
  %v311 = vunpack.c.l.b16 %v289
  %v312 = vunpack.c.h.b16 %v289
  %v313 = vunpack.c.l.b16 %v290
  %v314 = vunpack.c.h.b16 %v290
  %v315 = vpack.c.b16 %v299, %v299
  %v316 = vpack.c.b16 %v300, %v300
  %v317 = vpack.c.b16 %v301, %v301
  %v318 = vpack.c.b16 %v302, %v302
  %v319 = vpack.c.b16 %v303, %v303
  %v320 = vpack.c.b16 %v304, %v304
  %v321 = vpack.c.b16 %v305, %v305
  %v322 = vpack.c.b16 %v306, %v306
  %v323 = vpack.c.b16 %v307, %v307
  %v324 = vpack.c.b16 %v308, %v308
  %v325 = vpack.c.b16 %v309, %v309
  %v326 = vpack.c.b16 %v310, %v310
  %v327 = vpack.c.b16 %v311, %v311
  %v328 = vpack.c.b16 %v312, %v312
  %v329 = vpack.c.b16 %v313, %v313
  %v330 = vpack.c.b16 %v314, %v314
  %347 = vst [vmem:[%s4] sm:$0xf] %v315
  %348 = vst [vmem:[%s4 + $0x4] sm:$0xf] %v316
  %349 = vst [vmem:[%s4 + $0x8] sm:$0xf] %v317
  %350 = vst [vmem:[%s4 + $0xc] sm:$0xf] %v318
  %351 = vst [vmem:[%s4 + $0x10] sm:$0xf] %v319
  %352 = vst [vmem:[%s4 + $0x14] sm:$0xf] %v320
  %353 = vst [vmem:[%s4 + $0x18] sm:$0xf] %v321
  %354 = vst [vmem:[%s4 + $0x1c] sm:$0xf] %v322
  %355 = vst [vmem:[%s4 + $0x20] sm:$0xf] %v323
  %356 = vst [vmem:[%s4 + $0x24] sm:$0xf] %v324
  %357 = vst [vmem:[%s4 + $0x28] sm:$0xf] %v325
  %358 = vst [vmem:[%s4 + $0x2c] sm:$0xf] %v326
  %359 = vst [vmem:[%s4 + $0x30] sm:$0xf] %v327
  %360 = vst [vmem:[%s4 + $0x34] sm:$0xf] %v328
  %361 = vst [vmem:[%s4 + $0x38] sm:$0xf] %v329
  %362 = vst [vmem:[%s4 + $0x3c] sm:$0xf] %v330
  %v363 = vadd.f32 %v221, %v224
  %v364 = vadd.f32 %v363, %v229
  %v365 = vadd.f32 %v364, %v232
  %v366 = vadd.f32 %v365, %v237
  %v367 = vadd.f32 %v366, %v240
  %v368 = vadd.f32 %v367, %v245
  %v369 = vadd.f32 %v368, %v248
  %v370 = vadd.f32 %v369, %v253
  %v371 = vadd.f32 %v370, %v256
  %v372 = vadd.f32 %v371, %v261
  %v373 = vadd.f32 %v372, %v264
  %v374 = vadd.f32 %v373, %v269
  %v375 = vadd.f32 %v374, %v272
  %v376 = vadd.f32 %v375, %v277
  %v377 = vadd.f32 %v376, %v280
  %v378 = vrot.slane %v377, 4
  %v379 = vadd.f32 %v377, %v378
  %v380 = vrot.slane %v379, 2
  %v381 = vadd.f32 %v379, %v380
  %v382 = vrot.slane %v381, 1
  %v383 = vadd.f32 %v381, %v382
  %v384 = vmul.f32 %v221, %v221
  %v385 = vmul.f32 %v224, %v224
  %v386 = vmul.f32 %v229, %v229
  %v387 = vmul.f32 %v232, %v232
  %v388 = vmul.f32 %v237, %v237
  %v389 = vmul.f32 %v240, %v240
  %v390 = vmul.f32 %v245, %v245
  %v391 = vmul.f32 %v248, %v248
  %v392 = vmul.f32 %v253, %v253
  %v393 = vmul.f32 %v256, %v256
  %v394 = vmul.f32 %v261, %v261
  %v395 = vmul.f32 %v264, %v264
  %v396 = vmul.f32 %v269, %v269
  %v397 = vmul.f32 %v272, %v272
  %v398 = vmul.f32 %v277, %v277
  %v399 = vmul.f32 %v280, %v280
  %v400 = vadd.f32 %v384, %v385
  %v401 = vadd.f32 %v400, %v386
  %v402 = vadd.f32 %v401, %v387
  %v403 = vadd.f32 %v402, %v388
  %v404 = vadd.f32 %v403, %v389
  %v405 = vadd.f32 %v404, %v390
  %v406 = vadd.f32 %v405, %v391
  %v407 = vadd.f32 %v406, %v392
  %v408 = vadd.f32 %v407, %v393
  %v409 = vadd.f32 %v408, %v394
  %v410 = vadd.f32 %v409, %v395
  %v411 = vadd.f32 %v410, %v396
  %v412 = vadd.f32 %v411, %v397
  %v413 = vadd.f32 %v412, %v398
  %v414 = vadd.f32 %v413, %v399
  %v415 = vrot.slane %v414, 4
  %v416 = vadd.f32 %v414, %v415
  %v417 = vrot.slane %v416, 2
  %v418 = vadd.f32 %v416, %v417
  %v419 = vrot.slane %v418, 1
  %v420 = vadd.f32 %v418, %v419
  %vm421 = vcmask 1040384
  %v422 = vsel %vm421, %v383, %v420
  %423 = vst [vmem:[%s5] sm:$0x3] %v422
  // Predicated region
  $region18: #{block_forward.6} parent=0 // pred_check
    _
  $region19: #{block_forward.6} parent=0 // pred_check_branch
    %425 = sbr.rel (0) target = $region21
  $region20: #{block_forward.6} parent=0 // pred_region
    _
  $region21: #{block_forward.6} parent=0 // pred_fallthru
    _
  // Predicated region
  $region22: #{block_forward.6} parent=0 // pred_check
    _
  $region23: #{block_forward.6} parent=0 // pred_check_branch
    %427 = sbr.rel (0) target = $region25
  $region24: #{block_forward.6} parent=0 // pred_region
    _
  $region25: #{block_forward.6} parent=0 // pred_fallthru
    _
  // Predicated region
  $region26: #{block_forward.6} parent=0 // pred_check
    _
  $region27: #{block_forward.6} parent=0 // pred_check_branch
    %429 = sbr.rel (0) target = $region29
  $region28: #{block_forward.6} parent=0 // pred_region
    _
  $region29: #{block_forward.6} parent=0 // pred_fallthru
    _
  // Predicated region
  $region30: #{block_forward.6} parent=0 // pred_check
    _
  $region31: #{block_forward.6} parent=0 // pred_check_branch
    %431 = sbr.rel (0) target = $region33
  $region32: #{block_forward.6} parent=0 // pred_region
    _
  $region33: #{block_forward.6} parent=0 // pred_fallthru
    _

// kernel: block_forward.4
$region0: #{block_forward.4}
  #allocation0 [shape = 'u32[]', space=smem, size = 0x4, offset = 0x4, fixed_abs, tag = 'smem constant byte address 0x4 - core index']
  #allocation1 [shape = 'u32[144,128]{1,0:T(1,128)}', space=vmem, size = 0x12000, scoped, tag = 'internal scratch']
  %s0 = inlined_call_operand.vmem [shape: bf16[1,128,128], index: 0, kind: input, shape index: {}]
  %s1 = inlined_call_operand.vmem [shape: bf16[128,256], index: 1, kind: input, shape index: {}]
  %s2 = inlined_call_operand.vmem [shape: bf16[1,128,128], index: 2, kind: output, shape index: {0}]
  %s3 = inlined_call_operand.vmem [shape: bf16[1,128,128], index: 3, kind: output, shape index: {1}]
  %s4 = inlined_call_operand.vmem [shape: f32[1,2,128], index: 4, kind: output, shape index: {2}]
  %s5 = inlined_call_operand.vmem [shape: f32[1,2,128], index: 5, kind: output, shape index: {3}]
  %6 = xla_tuple %s2, %s3, %s4, %s5
  %s7 = sld [smem:[#allocation0]]
  $region42: #{block_forward.4} parent=0
    _
  %s9 = ssub.s32 1, %s7
  %s10 = scalar_select 0, %s9, %s7
  // Predicated region
  $region2: #{block_forward.4} parent=0 // pred_check
    _
  $region3: #{block_forward.4} parent=0 // pred_check_branch
    %12 = sbr.rel (0) target = $region5
  $region4: #{block_forward.4} parent=0 // pred_region
    _
  $region5: #{block_forward.4} parent=0 // pred_fallthru
    _
  // Predicated region
  $region6: #{block_forward.4} parent=0 // pred_check
    _
  $region7: #{block_forward.4} parent=0 // pred_check_branch
    %14 = sbr.rel (0) target = $region9
  $region8: #{block_forward.4} parent=0 // pred_region
    _
  $region9: #{block_forward.4} parent=0 // pred_fallthru
    _
  %v16 = vld [vmem:[%s0] sm:$0xf]
  %v17 = vld [vmem:[%s0 + $0x4] sm:$0xf]
  %v18 = vld [vmem:[%s0 + $0x8] sm:$0xf]
  %v19 = vld [vmem:[%s0 + $0xc] sm:$0xf]
  %v20 = vld [vmem:[%s0 + $0x10] sm:$0xf]
  %v21 = vld [vmem:[%s0 + $0x14] sm:$0xf]
  %v22 = vld [vmem:[%s0 + $0x18] sm:$0xf]
  %v23 = vld [vmem:[%s0 + $0x1c] sm:$0xf]
  %v24 = vld [vmem:[%s0 + $0x20] sm:$0xf]
  %v25 = vld [vmem:[%s0 + $0x24] sm:$0xf]
  %v26 = vld [vmem:[%s0 + $0x28] sm:$0xf]
  %v27 = vld [vmem:[%s0 + $0x2c] sm:$0xf]
  %v28 = vld [vmem:[%s0 + $0x30] sm:$0xf]
  %v29 = vld [vmem:[%s0 + $0x34] sm:$0xf]
  %v30 = vld [vmem:[%s0 + $0x38] sm:$0xf]
  %v31 = vld [vmem:[%s0 + $0x3c] sm:$0xf]
  %v32 = vld [vmem:[%s1] sm:$0xff]
  %v33 = vld [vmem:[%s1 + $0x8] sm:$0xff]
  %v34 = vld [vmem:[%s1 + $0x10] sm:$0xff]
  %v35 = vld [vmem:[%s1 + $0x18] sm:$0xff]
  %v36 = vld [vmem:[%s1 + $0x20] sm:$0xff]
  %v37 = vld [vmem:[%s1 + $0x28] sm:$0xff]
  %v38 = vld [vmem:[%s1 + $0x30] sm:$0xff]
  %v39 = vld [vmem:[%s1 + $0x38] sm:$0xff]
  %v40 = vld [vmem:[%s1 + $0x40] sm:$0xff]
  %v41 = vld [vmem:[%s1 + $0x48] sm:$0xff]
  %v42 = vld [vmem:[%s1 + $0x50] sm:$0xff]
  %v43 = vld [vmem:[%s1 + $0x58] sm:$0xff]
  %v44 = vld [vmem:[%s1 + $0x60] sm:$0xff]
  %v45 = vld [vmem:[%s1 + $0x68] sm:$0xff]
  %v46 = vld [vmem:[%s1 + $0x70] sm:$0xff]
  %v47 = vld [vmem:[%s1 + $0x78] sm:$0xff]
  %v64 = vunpack.c.l.b16 %v16
  %v65 = vunpack.c.l.b16 %v17
  %v66 = vunpack.c.l.b16 %v18
  %v67 = vunpack.c.l.b16 %v19
  %v68 = vunpack.c.l.b16 %v20
  %v69 = vunpack.c.l.b16 %v21
  %v70 = vunpack.c.l.b16 %v22
  %v71 = vunpack.c.l.b16 %v23
  %v72 = vunpack.c.l.b16 %v24
  %v73 = vunpack.c.l.b16 %v25
  %v74 = vunpack.c.l.b16 %v26
  %v75 = vunpack.c.l.b16 %v27
  %v76 = vunpack.c.l.b16 %v28
  %v77 = vunpack.c.l.b16 %v29
  %v78 = vunpack.c.l.b16 %v30
  %v79 = vunpack.c.l.b16 %v31
  %v80 = vpack.c.b16 %v65, %v64
  %v81 = vpack.c.b16 %v67, %v66
  %v82 = vpack.c.b16 %v69, %v68
  %v83 = vpack.c.b16 %v71, %v70
  %v84 = vpack.c.b16 %v73, %v72
  %v85 = vpack.c.b16 %v75, %v74
  %v86 = vpack.c.b16 %v77, %v76
  %v87 = vpack.c.b16 %v79, %v78
  %v112 = vunpack.c.l.b16 %v32
  %v113 = vunpack.c.h.b16 %v32
  %v114 = vunpack.c.l.b16 %v33
  %v115 = vunpack.c.h.b16 %v33
  %v116 = vunpack.c.l.b16 %v34
  %v117 = vunpack.c.h.b16 %v34
  %v118 = vunpack.c.l.b16 %v35
  %v119 = vunpack.c.h.b16 %v35
  %v120 = vunpack.c.l.b16 %v36
  %v121 = vunpack.c.h.b16 %v36
  %v122 = vunpack.c.l.b16 %v37
  %v123 = vunpack.c.h.b16 %v37
  %v124 = vunpack.c.l.b16 %v38
  %v125 = vunpack.c.h.b16 %v38
  %v126 = vunpack.c.l.b16 %v39
  %v127 = vunpack.c.h.b16 %v39
  %v128 = vunpack.c.l.b16 %v40
  %v129 = vunpack.c.h.b16 %v40
  %v130 = vunpack.c.l.b16 %v41
  %v131 = vunpack.c.h.b16 %v41
  %v132 = vunpack.c.l.b16 %v42
  %v133 = vunpack.c.h.b16 %v42
  %v134 = vunpack.c.l.b16 %v43
  %v135 = vunpack.c.h.b16 %v43
  %v136 = vunpack.c.l.b16 %v44
  %v137 = vunpack.c.h.b16 %v44
  %v138 = vunpack.c.l.b16 %v45
  %v139 = vunpack.c.h.b16 %v45
  %v140 = vunpack.c.l.b16 %v46
  %v141 = vunpack.c.h.b16 %v46
  %v142 = vunpack.c.l.b16 %v47
  %v143 = vunpack.c.h.b16 %v47
  %v144 = vpack.c.b16 %v114, %v112
  %v145 = vpack.c.b16 %v115, %v113
  %v146 = vpack.c.b16 %v118, %v116
  %v147 = vpack.c.b16 %v119, %v117
  %v148 = vpack.c.b16 %v122, %v120
  %v149 = vpack.c.b16 %v123, %v121
  %v150 = vpack.c.b16 %v126, %v124
  %v151 = vpack.c.b16 %v127, %v125
  %v152 = vpack.c.b16 %v130, %v128
  %v153 = vpack.c.b16 %v131, %v129
  %v154 = vpack.c.b16 %v134, %v132
  %v155 = vpack.c.b16 %v135, %v133
  %v156 = vpack.c.b16 %v138, %v136
  %v157 = vpack.c.b16 %v139, %v137
  %v158 = vpack.c.b16 %v142, %v140
  %v159 = vpack.c.b16 %v143, %v141
  %176 = vmatprep.subr.bf16.mxu0 %v159
  %177 = vmatpush1.bf16.msra.mxu0 %v158
  %178 = vmatprep.subr.bf16.mxu0 %v157
  %179 = vmatpush1.bf16.msra.mxu0 %v156
  %180 = vmatprep.subr.bf16.mxu0 %v155
  %181 = vmatpush1.bf16.msra.mxu0 %v154
  %182 = vmatprep.subr.bf16.mxu0 %v153
  %183 = vmatpush1.bf16.msra.mxu0 %v152
  %184 = vmatprep.subr.bf16.mxu0 %v151
  %185 = vmatpush1.bf16.msra.mxu0 %v150
  %186 = vmatprep.subr.bf16.mxu0 %v149
  %187 = vmatpush1.bf16.msra.mxu0 %v148
  %188 = vmatprep.subr.bf16.mxu0 %v147
  %189 = vmatpush1.bf16.msra.mxu0 %v146
  %190 = vmatprep.subr.bf16.mxu0 %v145
  %191 = vmatpush1.bf16.msra.mxu0 %v144
  %192 = vmatprep.subr.bf16.mxu0 0
  %193 = vmatpush2.bf16.msra.mxu0 0
  %194 = vmatprep.subr.bf16.mxu0 0
  %195 = vmatpush2.bf16.msra.mxu0 0
  %196 = vmatprep.subr.bf16.mxu0 0
  %197 = vmatpush2.bf16.msra.mxu0 0
  %198 = vmatprep.subr.bf16.mxu0 0
  %199 = vmatpush2.bf16.msra.mxu0 0
  %200 = vmatprep.subr.bf16.mxu0 0
  %201 = vmatpush2.bf16.msra.mxu0 0
  %202 = vmatprep.subr.bf16.mxu0 0
  %203 = vmatpush2.bf16.msra.mxu0 0
  %204 = vmatprep.subr.bf16.mxu0 0
  %205 = vmatpush2.bf16.msra.mxu0 0
  %206 = vmatprep.subr.bf16.mxu0 0
  %207 = vmatpush2.bf16.msra.mxu0 0
  %208 = vmatprep.mubr.bf16.mxu0 0
  %209 = vmatmul.mubr.bf16.gmra.mxu0 %v80
  %v210 = vpop.f32.mrf.mxu0
  %v211 = vadd.f32 0.0, %v210
  %v212 = vpop.f32.mrf.mxu0
  %v213 = vadd.f32 0.0, %v212
  %v214 = vpop.f32.mrf.mxu0
  %v215 = vadd.f32 0.0, %v214
  %v216 = vpop.f32.mrf.mxu0
  %v217 = vadd.f32 0.0, %v216
  %218 = vmatprep.mubr.bf16.mxu0 0
  %219 = vmatmul.mubr.bf16.gmra.mxu0 %v81
  %v220 = vpop.f32.mrf.mxu0
  %v221 = vadd.f32 0.0, %v220
  %v222 = vpop.f32.mrf.mxu0
  %v223 = vadd.f32 0.0, %v222
  %v224 = vpop.f32.mrf.mxu0
  %v225 = vadd.f32 0.0, %v224
  %v226 = vpop.f32.mrf.mxu0
  %v227 = vadd.f32 0.0, %v226
  %228 = vmatprep.mubr.bf16.mxu0 0
  %229 = vmatmul.mubr.bf16.gmra.mxu0 %v82
  %v230 = vpop.f32.mrf.mxu0
  %v231 = vadd.f32 0.0, %v230
  %v232 = vpop.f32.mrf.mxu0
  %v233 = vadd.f32 0.0, %v232
  %v234 = vpop.f32.mrf.mxu0
  %v235 = vadd.f32 0.0, %v234
  %v236 = vpop.f32.mrf.mxu0
  %v237 = vadd.f32 0.0, %v236
  %238 = vmatprep.mubr.bf16.mxu0 0
  %239 = vmatmul.mubr.bf16.gmra.mxu0 %v83
  %v240 = vpop.f32.mrf.mxu0
  %v241 = vadd.f32 0.0, %v240
  %v242 = vpop.f32.mrf.mxu0
  %v243 = vadd.f32 0.0, %v242
  %v244 = vpop.f32.mrf.mxu0
  %v245 = vadd.f32 0.0, %v244
  %v246 = vpop.f32.mrf.mxu0
  %v247 = vadd.f32 0.0, %v246
  %248 = vmatprep.mubr.bf16.mxu0 0
  %249 = vmatmul.mubr.bf16.gmra.mxu0 %v84
  %v250 = vpop.f32.mrf.mxu0
  %v251 = vadd.f32 0.0, %v250
  %v252 = vpop.f32.mrf.mxu0
  %v253 = vadd.f32 0.0, %v252
  %v254 = vpop.f32.mrf.mxu0
  %v255 = vadd.f32 0.0, %v254
  %v256 = vpop.f32.mrf.mxu0
  %v257 = vadd.f32 0.0, %v256
  %258 = vmatprep.mubr.bf16.mxu0 0
  %259 = vmatmul.mubr.bf16.gmra.mxu0 %v85
  %v260 = vpop.f32.mrf.mxu0
  %v261 = vadd.f32 0.0, %v260
  %v262 = vpop.f32.mrf.mxu0
  %v263 = vadd.f32 0.0, %v262
  %v264 = vpop.f32.mrf.mxu0
  %v265 = vadd.f32 0.0, %v264
  %v266 = vpop.f32.mrf.mxu0
  %v267 = vadd.f32 0.0, %v266
  %268 = vmatprep.mubr.bf16.mxu0 0
  %269 = vmatmul.mubr.bf16.gmra.mxu0 %v86
  %v270 = vpop.f32.mrf.mxu0
  %v271 = vadd.f32 0.0, %v270
  %v272 = vpop.f32.mrf.mxu0
  %v273 = vadd.f32 0.0, %v272
  %v274 = vpop.f32.mrf.mxu0
  %v275 = vadd.f32 0.0, %v274
  %v276 = vpop.f32.mrf.mxu0
  %v277 = vadd.f32 0.0, %v276
  %278 = vmatprep.mubr.bf16.mxu0 0
  %279 = vmatmul.mubr.bf16.gmra.mxu0 %v87
  %v280 = vpop.f32.mrf.mxu0
  %v281 = vadd.f32 0.0, %v280
  %v282 = vpop.f32.mrf.mxu0
  %v283 = vadd.f32 0.0, %v282
  %v284 = vpop.f32.mrf.mxu0
  %v285 = vadd.f32 0.0, %v284
  %v286 = vpop.f32.mrf.mxu0
  %v287 = vadd.f32 0.0, %v286
  %288 = vdwg.mxu0
  %v289 = vpack.c.bf16 %v215, %v211
  %v290 = vpack.c.bf16 %v225, %v221
  %v291 = vpack.c.bf16 %v235, %v231
  %v292 = vpack.c.bf16 %v245, %v241
  %v293 = vpack.c.bf16 %v255, %v251
  %v294 = vpack.c.bf16 %v265, %v261
  %v295 = vpack.c.bf16 %v275, %v271
  %v296 = vpack.c.bf16 %v285, %v281
  %v305 = vunpack.c.l.b16 %v289
  %v306 = vunpack.c.h.b16 %v289
  %v307 = vunpack.c.l.b16 %v290
  %v308 = vunpack.c.h.b16 %v290
  %v309 = vunpack.c.l.b16 %v291
  %v310 = vunpack.c.h.b16 %v291
  %v311 = vunpack.c.l.b16 %v292
  %v312 = vunpack.c.h.b16 %v292
  %v313 = vunpack.c.l.b16 %v293
  %v314 = vunpack.c.h.b16 %v293
  %v315 = vunpack.c.l.b16 %v294
  %v316 = vunpack.c.h.b16 %v294
  %v317 = vunpack.c.l.b16 %v295
  %v318 = vunpack.c.h.b16 %v295
  %v319 = vunpack.c.l.b16 %v296
  %v320 = vunpack.c.h.b16 %v296
  %v321 = vpack.c.b16 %v305, %v305
  %v322 = vpack.c.b16 %v306, %v306
  %v323 = vpack.c.b16 %v307, %v307
  %v324 = vpack.c.b16 %v308, %v308
  %v325 = vpack.c.b16 %v309, %v309
  %v326 = vpack.c.b16 %v310, %v310
  %v327 = vpack.c.b16 %v311, %v311
  %v328 = vpack.c.b16 %v312, %v312
  %v329 = vpack.c.b16 %v313, %v313
  %v330 = vpack.c.b16 %v314, %v314
  %v331 = vpack.c.b16 %v315, %v315
  %v332 = vpack.c.b16 %v316, %v316
  %v333 = vpack.c.b16 %v317, %v317
  %v334 = vpack.c.b16 %v318, %v318
  %v335 = vpack.c.b16 %v319, %v319
  %v336 = vpack.c.b16 %v320, %v320
  %353 = vst [vmem:[%s2] sm:$0xf] %v321
  %354 = vst [vmem:[%s2 + $0x4] sm:$0xf] %v322
  %355 = vst [vmem:[%s2 + $0x8] sm:$0xf] %v323
  %356 = vst [vmem:[%s2 + $0xc] sm:$0xf] %v324
  %357 = vst [vmem:[%s2 + $0x10] sm:$0xf] %v325
  %358 = vst [vmem:[%s2 + $0x14] sm:$0xf] %v326
  %359 = vst [vmem:[%s2 + $0x18] sm:$0xf] %v327
  %360 = vst [vmem:[%s2 + $0x1c] sm:$0xf] %v328
  %361 = vst [vmem:[%s2 + $0x20] sm:$0xf] %v329
  %362 = vst [vmem:[%s2 + $0x24] sm:$0xf] %v330
  %363 = vst [vmem:[%s2 + $0x28] sm:$0xf] %v331
  %364 = vst [vmem:[%s2 + $0x2c] sm:$0xf] %v332
  %365 = vst [vmem:[%s2 + $0x30] sm:$0xf] %v333
  %366 = vst [vmem:[%s2 + $0x34] sm:$0xf] %v334
  %367 = vst [vmem:[%s2 + $0x38] sm:$0xf] %v335
  %368 = vst [vmem:[%s2 + $0x3c] sm:$0xf] %v336
  %v369 = vpack.c.bf16 %v217, %v213
  %v370 = vpack.c.bf16 %v227, %v223
  %v371 = vpack.c.bf16 %v237, %v233
  %v372 = vpack.c.bf16 %v247, %v243
  %v373 = vpack.c.bf16 %v257, %v253
  %v374 = vpack.c.bf16 %v267, %v263
  %v375 = vpack.c.bf16 %v277, %v273
  %v376 = vpack.c.bf16 %v287, %v283
  %v385 = vunpack.c.l.b16 %v369
  %v386 = vunpack.c.h.b16 %v369
  %v387 = vunpack.c.l.b16 %v370
  %v388 = vunpack.c.h.b16 %v370
  %v389 = vunpack.c.l.b16 %v371
  %v390 = vunpack.c.h.b16 %v371
  %v391 = vunpack.c.l.b16 %v372
  %v392 = vunpack.c.h.b16 %v372
  %v393 = vunpack.c.l.b16 %v373
  %v394 = vunpack.c.h.b16 %v373
  %v395 = vunpack.c.l.b16 %v374
  %v396 = vunpack.c.h.b16 %v374
  %v397 = vunpack.c.l.b16 %v375
  %v398 = vunpack.c.h.b16 %v375
  %v399 = vunpack.c.l.b16 %v376
  %v400 = vunpack.c.h.b16 %v376
  %v401 = vpack.c.b16 %v385, %v385
  %v402 = vpack.c.b16 %v386, %v386
  %v403 = vpack.c.b16 %v387, %v387
  %v404 = vpack.c.b16 %v388, %v388
  %v405 = vpack.c.b16 %v389, %v389
  %v406 = vpack.c.b16 %v390, %v390
  %v407 = vpack.c.b16 %v391, %v391
  %v408 = vpack.c.b16 %v392, %v392
  %v409 = vpack.c.b16 %v393, %v393
  %v410 = vpack.c.b16 %v394, %v394
  %v411 = vpack.c.b16 %v395, %v395
  %v412 = vpack.c.b16 %v396, %v396
  %v413 = vpack.c.b16 %v397, %v397
  %v414 = vpack.c.b16 %v398, %v398
  %v415 = vpack.c.b16 %v399, %v399
  %v416 = vpack.c.b16 %v400, %v400
  %433 = vst [vmem:[%s3] sm:$0xf] %v401
  %434 = vst [vmem:[%s3 + $0x4] sm:$0xf] %v402
  %435 = vst [vmem:[%s3 + $0x8] sm:$0xf] %v403
  %436 = vst [vmem:[%s3 + $0xc] sm:$0xf] %v404
  %437 = vst [vmem:[%s3 + $0x10] sm:$0xf] %v405
  %438 = vst [vmem:[%s3 + $0x14] sm:$0xf] %v406
  %439 = vst [vmem:[%s3 + $0x18] sm:$0xf] %v407
  %440 = vst [vmem:[%s3 + $0x1c] sm:$0xf] %v408
  %441 = vst [vmem:[%s3 + $0x20] sm:$0xf] %v409
  %442 = vst [vmem:[%s3 + $0x24] sm:$0xf] %v410
  %443 = vst [vmem:[%s3 + $0x28] sm:$0xf] %v411
  %444 = vst [vmem:[%s3 + $0x2c] sm:$0xf] %v412
  %445 = vst [vmem:[%s3 + $0x30] sm:$0xf] %v413
  %446 = vst [vmem:[%s3 + $0x34] sm:$0xf] %v414
  %447 = vst [vmem:[%s3 + $0x38] sm:$0xf] %v415
  %448 = vst [vmem:[%s3 + $0x3c] sm:$0xf] %v416
  %v449 = vadd.f32 %v211, %v215
  %v450 = vadd.f32 %v449, %v221
  %v451 = vadd.f32 %v450, %v225
  %v452 = vadd.f32 %v451, %v231
  %v453 = vadd.f32 %v452, %v235
  %v454 = vadd.f32 %v453, %v241
  %v455 = vadd.f32 %v454, %v245
  %v456 = vadd.f32 %v455, %v251
  %v457 = vadd.f32 %v456, %v255
  %v458 = vadd.f32 %v457, %v261
  %v459 = vadd.f32 %v458, %v265
  %v460 = vadd.f32 %v459, %v271
  %v461 = vadd.f32 %v460, %v275
  %v462 = vadd.f32 %v461, %v281
  %v463 = vadd.f32 %v462, %v285
  %v464 = vrot.slane %v463, 4
  %v465 = vadd.f32 %v463, %v464
  %v466 = vrot.slane %v465, 2
  %v467 = vadd.f32 %v465, %v466
  %v468 = vrot.slane %v467, 1
  %v469 = vadd.f32 %v467, %v468
  %v470 = vmul.f32 %v211, %v211
  %v471 = vmul.f32 %v215, %v215
  %v472 = vmul.f32 %v221, %v221
  %v473 = vmul.f32 %v225, %v225
  %v474 = vmul.f32 %v231, %v231
  %v475 = vmul.f32 %v235, %v235
  %v476 = vmul.f32 %v241, %v241
  %v477 = vmul.f32 %v245, %v245
  %v478 = vmul.f32 %v251, %v251
  %v479 = vmul.f32 %v255, %v255
  %v480 = vmul.f32 %v261, %v261
  %v481 = vmul.f32 %v265, %v265
  %v482 = vmul.f32 %v271, %v271
  %v483 = vmul.f32 %v275, %v275
  %v484 = vmul.f32 %v281, %v281
  %v485 = vmul.f32 %v285, %v285
  %v486 = vadd.f32 %v470, %v471
  %v487 = vadd.f32 %v486, %v472
  %v488 = vadd.f32 %v487, %v473
  %v489 = vadd.f32 %v488, %v474
  %v490 = vadd.f32 %v489, %v475
  %v491 = vadd.f32 %v490, %v476
  %v492 = vadd.f32 %v491, %v477
  %v493 = vadd.f32 %v492, %v478
  %v494 = vadd.f32 %v493, %v479
  %v495 = vadd.f32 %v494, %v480
  %v496 = vadd.f32 %v495, %v481
  %v497 = vadd.f32 %v496, %v482
  %v498 = vadd.f32 %v497, %v483
  %v499 = vadd.f32 %v498, %v484
  %v500 = vadd.f32 %v499, %v485
  %v501 = vrot.slane %v500, 4
  %v502 = vadd.f32 %v500, %v501
  %v503 = vrot.slane %v502, 2
  %v504 = vadd.f32 %v502, %v503
  %v505 = vrot.slane %v504, 1
  %v506 = vadd.f32 %v504, %v505
  %vm507 = vcmask 1040384
  %v508 = vsel %vm507, %v469, %v506
  %509 = vst [vmem:[%s4] sm:$0x3] %v508
  %v510 = vadd.f32 %v213, %v217
  %v511 = vadd.f32 %v510, %v223
  %v512 = vadd.f32 %v511, %v227
  %v513 = vadd.f32 %v512, %v233
  %v514 = vadd.f32 %v513, %v237
  %v515 = vadd.f32 %v514, %v243
  %v516 = vadd.f32 %v515, %v247
  %v517 = vadd.f32 %v516, %v253
  %v518 = vadd.f32 %v517, %v257
  %v519 = vadd.f32 %v518, %v263
  %v520 = vadd.f32 %v519, %v267
  %v521 = vadd.f32 %v520, %v273
  %v522 = vadd.f32 %v521, %v277
  %v523 = vadd.f32 %v522, %v283
  %v524 = vadd.f32 %v523, %v287
  %v525 = vrot.slane %v524, 4
  %v526 = vadd.f32 %v524, %v525
  %v527 = vrot.slane %v526, 2
  %v528 = vadd.f32 %v526, %v527
  %v529 = vrot.slane %v528, 1
  %v530 = vadd.f32 %v528, %v529
  %v531 = vmul.f32 %v213, %v213
  %v532 = vmul.f32 %v217, %v217
  %v533 = vmul.f32 %v223, %v223
  %v534 = vmul.f32 %v227, %v227
  %v535 = vmul.f32 %v233, %v233
  %v536 = vmul.f32 %v237, %v237
  %v537 = vmul.f32 %v243, %v243
  %v538 = vmul.f32 %v247, %v247
  %v539 = vmul.f32 %v253, %v253
  %v540 = vmul.f32 %v257, %v257
  %v541 = vmul.f32 %v263, %v263
  %v542 = vmul.f32 %v267, %v267
  %v543 = vmul.f32 %v273, %v273
  %v544 = vmul.f32 %v277, %v277
  %v545 = vmul.f32 %v283, %v283
  %v546 = vmul.f32 %v287, %v287
  %v547 = vadd.f32 %v531, %v532
  %v548 = vadd.f32 %v547, %v533
  %v549 = vadd.f32 %v548, %v534
  %v550 = vadd.f32 %v549, %v535
  %v551 = vadd.f32 %v550, %v536
  %v552 = vadd.f32 %v551, %v537
  %v553 = vadd.f32 %v552, %v538
  %v554 = vadd.f32 %v553, %v539
  %v555 = vadd.f32 %v554, %v540
  %v556 = vadd.f32 %v555, %v541
  %v557 = vadd.f32 %v556, %v542
  %v558 = vadd.f32 %v557, %v543
  %v559 = vadd.f32 %v558, %v544
  %v560 = vadd.f32 %v559, %v545
  %v561 = vadd.f32 %v560, %v546
  %v562 = vrot.slane %v561, 4
  %v563 = vadd.f32 %v561, %v562
  %v564 = vrot.slane %v563, 2
  %v565 = vadd.f32 %v563, %v564
  %v566 = vrot.slane %v565, 1
  %v567 = vadd.f32 %v565, %v566
  %v568 = vsel %vm507, %v530, %v567
  %569 = vst [vmem:[%s5] sm:$0x3] %v568
  // Predicated region
  $region10: #{block_forward.4} parent=0 // pred_check
    _
  $region11: #{block_forward.4} parent=0 // pred_check_branch
    %571 = sbr.rel (0) target = $region13
  $region12: #{block_forward.4} parent=0 // pred_region
    _
  $region13: #{block_forward.4} parent=0 // pred_fallthru
    _
  // Predicated region
  $region14: #{block_forward.4} parent=0 // pred_check
    _
  $region15: #{block_forward.4} parent=0 // pred_check_branch
    %573 = sbr.rel (0) target = $region17
  $region16: #{block_forward.4} parent=0 // pred_region
    _
  $region17: #{block_forward.4} parent=0 // pred_fallthru
    _
  // Predicated region
  $region18: #{block_forward.4} parent=0 // pred_check
    _
  $region19: #{block_forward.4} parent=0 // pred_check_branch
    %575 = sbr.rel (0) target = $region21
  $region20: #{block_forward.4} parent=0 // pred_region
    _
  $region21: #{block_forward.4} parent=0 // pred_fallthru
    _
  // Predicated region
  $region22: #{block_forward.4} parent=0 // pred_check
    _
  $region23: #{block_forward.4} parent=0 // pred_check_branch
    %577 = sbr.rel (0) target = $region25
  $region24: #{block_forward.4} parent=0 // pred_region
    _
  $region25: #{block_forward.4} parent=0 // pred_fallthru
    _
  // Predicated region
  $region26: #{block_forward.4} parent=0 // pred_check
    _
  $region27: #{block_forward.4} parent=0 // pred_check_branch
    %579 = sbr.rel (0) target = $region29
  $region28: #{block_forward.4} parent=0 // pred_region
    _
  $region29: #{block_forward.4} parent=0 // pred_fallthru
    _
  // Predicated region
  $region30: #{block_forward.4} parent=0 // pred_check
    _
  $region31: #{block_forward.4} parent=0 // pred_check_branch
    %581 = sbr.rel (0) target = $region33
  $region32: #{block_forward.4} parent=0 // pred_region
    _
  $region33: #{block_forward.4} parent=0 // pred_fallthru
    _
  // Predicated region
  $region34: #{block_forward.4} parent=0 // pred_check
    _
  $region35: #{block_forward.4} parent=0 // pred_check_branch
    %583 = sbr.rel (0) target = $region37
  $region36: #{block_forward.4} parent=0 // pred_region
    _
  $region37: #{block_forward.4} parent=0 // pred_fallthru
    _
  // Predicated region
  $region38: #{block_forward.4} parent=0 // pred_check
    _
  $region39: #{block_forward.4} parent=0 // pred_check_branch
    %585 = sbr.rel (0) target = $region41
  $region40: #{block_forward.4} parent=0 // pred_region
    _
  $region41: #{block_forward.4} parent=0 // pred_fallthru
    _

// kernel: block_forward.7
$region0: #{block_forward.7}
  #allocation0 [shape = 'u32[]', space=smem, size = 0x4, offset = 0x4, fixed_abs, tag = 'smem constant byte address 0x4 - core index']
  #allocation1 [shape = 'u32[144,128]{1,0:T(1,128)}', space=vmem, size = 0x12000, scoped, tag = 'internal scratch']
  %s0 = inlined_call_operand.vmem [shape: bf16[1,128,128], index: 0, kind: input, shape index: {}]
  %s1 = inlined_call_operand.vmem [shape: bf16[1,128,128], index: 1, kind: input, shape index: {}, may-alias: {1,10}]
  %s2 = inlined_call_operand.vmem [shape: f32[1,128], index: 2, kind: input, shape index: {}]
  %s3 = inlined_call_operand.vmem [shape: f32[1,128], index: 3, kind: input, shape index: {}]
  %s4 = inlined_call_operand.vmem [shape: f32[1,128], index: 4, kind: input, shape index: {}]
  %s5 = inlined_call_operand.vmem [shape: f32[1,128], index: 5, kind: input, shape index: {}]
  %s6 = inlined_call_operand.vmem [shape: bf16[128,8], index: 6, kind: input, shape index: {}]
  %s7 = inlined_call_operand.vmem [shape: f32[1,8], index: 7, kind: input, shape index: {}]
  %s8 = inlined_call_operand.vmem [shape: bf16[8,128], index: 8, kind: input, shape index: {}]
  %s9 = inlined_call_operand.vmem [shape: f32[1,128], index: 9, kind: input, shape index: {}]
  %s10 = inlined_call_operand.vmem [shape: bf16[1,128,128], index: 10, kind: output, shape index: {}, may-alias: {1,10}]
  %s11 = sld [smem:[#allocation0]]
  $region50: #{block_forward.7} parent=0
    _
  %s13 = ssub.s32 1, %s11
  %s14 = scalar_select 0, %s13, %s11
  // Predicated region
  $region2: #{block_forward.7} parent=0 // pred_check
    _
  $region3: #{block_forward.7} parent=0 // pred_check_branch
    %16 = sbr.rel (0) target = $region5
  $region4: #{block_forward.7} parent=0 // pred_region
    _
  $region5: #{block_forward.7} parent=0 // pred_fallthru
    _
  // Predicated region
  $region6: #{block_forward.7} parent=0 // pred_check
    _
  $region7: #{block_forward.7} parent=0 // pred_check_branch
    %18 = sbr.rel (0) target = $region9
  $region8: #{block_forward.7} parent=0 // pred_region
    _
  $region9: #{block_forward.7} parent=0 // pred_fallthru
    _
  // Predicated region
  $region10: #{block_forward.7} parent=0 // pred_check
    _
  $region11: #{block_forward.7} parent=0 // pred_check_branch
    %20 = sbr.rel (0) target = $region13
  $region12: #{block_forward.7} parent=0 // pred_region
    _
  $region13: #{block_forward.7} parent=0 // pred_fallthru
    _
  // Predicated region
  $region14: #{block_forward.7} parent=0 // pred_check
    _
  $region15: #{block_forward.7} parent=0 // pred_check_branch
    %22 = sbr.rel (0) target = $region17
  $region16: #{block_forward.7} parent=0 // pred_region
    _
  $region17: #{block_forward.7} parent=0 // pred_fallthru
    _
  // Predicated region
  $region18: #{block_forward.7} parent=0 // pred_check
    _
  $region19: #{block_forward.7} parent=0 // pred_check_branch
    %24 = sbr.rel (0) target = $region21
  $region20: #{block_forward.7} parent=0 // pred_region
    _
  $region21: #{block_forward.7} parent=0 // pred_fallthru
    _
  // Predicated region
  $region22: #{block_forward.7} parent=0 // pred_check
    _
  $region23: #{block_forward.7} parent=0 // pred_check_branch
    %26 = sbr.rel (0) target = $region25
  $region24: #{block_forward.7} parent=0 // pred_region
    _
  $region25: #{block_forward.7} parent=0 // pred_fallthru
    _
  // Predicated region
  $region26: #{block_forward.7} parent=0 // pred_check
    _
  $region27: #{block_forward.7} parent=0 // pred_check_branch
    %28 = sbr.rel (0) target = $region29
  $region28: #{block_forward.7} parent=0 // pred_region
    _
  $region29: #{block_forward.7} parent=0 // pred_fallthru
    _
  // Predicated region
  $region30: #{block_forward.7} parent=0 // pred_check
    _
  $region31: #{block_forward.7} parent=0 // pred_check_branch
    %30 = sbr.rel (0) target = $region33
  $region32: #{block_forward.7} parent=0 // pred_region
    _
  $region33: #{block_forward.7} parent=0 // pred_fallthru
    _
  // Predicated region
  $region34: #{block_forward.7} parent=0 // pred_check
    _
  $region35: #{block_forward.7} parent=0 // pred_check_branch
    %32 = sbr.rel (0) target = $region37
  $region36: #{block_forward.7} parent=0 // pred_region
    _
  $region37: #{block_forward.7} parent=0 // pred_fallthru
    _
  // Predicated region
  $region38: #{block_forward.7} parent=0 // pred_check
    _
  $region39: #{block_forward.7} parent=0 // pred_check_branch
    %34 = sbr.rel (0) target = $region41
  $region40: #{block_forward.7} parent=0 // pred_region
    _
  $region41: #{block_forward.7} parent=0 // pred_fallthru
    _
  %v36 = vld [vmem:[%s0] sm:$0xf]
  %v37 = vld [vmem:[%s0 + $0x4] sm:$0xf]
  %v38 = vld [vmem:[%s0 + $0x8] sm:$0xf]
  %v39 = vld [vmem:[%s0 + $0xc] sm:$0xf]
  %v40 = vld [vmem:[%s0 + $0x10] sm:$0xf]
  %v41 = vld [vmem:[%s0 + $0x14] sm:$0xf]
  %v42 = vld [vmem:[%s0 + $0x18] sm:$0xf]
  %v43 = vld [vmem:[%s0 + $0x1c] sm:$0xf]
  %v44 = vld [vmem:[%s0 + $0x20] sm:$0xf]
  %v45 = vld [vmem:[%s0 + $0x24] sm:$0xf]
  %v46 = vld [vmem:[%s0 + $0x28] sm:$0xf]
  %v47 = vld [vmem:[%s0 + $0x2c] sm:$0xf]
  %v48 = vld [vmem:[%s0 + $0x30] sm:$0xf]
  %v49 = vld [vmem:[%s0 + $0x34] sm:$0xf]
  %v50 = vld [vmem:[%s0 + $0x38] sm:$0xf]
  %v51 = vld [vmem:[%s0 + $0x3c] sm:$0xf]
  %v52 = vunpack.c.l.bf16 %v36
  %v53 = vunpack.c.l.bf16 %v37
  %v54 = vunpack.c.l.bf16 %v38
  %v55 = vunpack.c.l.bf16 %v39
  %v56 = vunpack.c.l.bf16 %v40
  %v57 = vunpack.c.l.bf16 %v41
  %v58 = vunpack.c.l.bf16 %v42
  %v59 = vunpack.c.l.bf16 %v43
  %v60 = vunpack.c.l.bf16 %v44
  %v61 = vunpack.c.l.bf16 %v45
  %v62 = vunpack.c.l.bf16 %v46
  %v63 = vunpack.c.l.bf16 %v47
  %v64 = vunpack.c.l.bf16 %v48
  %v65 = vunpack.c.l.bf16 %v49
  %v66 = vunpack.c.l.bf16 %v50
  %v67 = vunpack.c.l.bf16 %v51
  %v68 = vld [vmem:[%s2] sm:$0x1]
  %v70 = vlaneseq
  %v71 = vshrl.u32 %v70, 7
  %v72 = vsub.s32 0, %v71
  %v73 = vrot.slane %v68, %v72
  %v75 = vmul.f32 %v52, %v73
  %v76 = vmul.f32 %v53, %v73
  %v77 = vmul.f32 %v54, %v73
  %v78 = vmul.f32 %v55, %v73
  %v79 = vmul.f32 %v56, %v73
  %v80 = vmul.f32 %v57, %v73
  %v81 = vmul.f32 %v58, %v73
  %v82 = vmul.f32 %v59, %v73
  %v83 = vmul.f32 %v60, %v73
  %v84 = vmul.f32 %v61, %v73
  %v85 = vmul.f32 %v62, %v73
  %v86 = vmul.f32 %v63, %v73
  %v87 = vmul.f32 %v64, %v73
  %v88 = vmul.f32 %v65, %v73
  %v89 = vmul.f32 %v66, %v73
  %v90 = vmul.f32 %v67, %v73
  %v91 = vld [vmem:[%s3] sm:$0x1]
  %v93 = vlaneseq
  %v94 = vshrl.u32 %v93, 7
  %v95 = vsub.s32 0, %v94
  %v96 = vrot.slane %v91, %v95
  %v98 = vadd.f32 %v75, %v96
  %v99 = vadd.f32 %v76, %v96
  %v100 = vadd.f32 %v77, %v96
  %v101 = vadd.f32 %v78, %v96
  %v102 = vadd.f32 %v79, %v96
  %v103 = vadd.f32 %v80, %v96
  %v104 = vadd.f32 %v81, %v96
  %v105 = vadd.f32 %v82, %v96
  %v106 = vadd.f32 %v83, %v96
  %v107 = vadd.f32 %v84, %v96
  %v108 = vadd.f32 %v85, %v96
  %v109 = vadd.f32 %v86, %v96
  %v110 = vadd.f32 %v87, %v96
  %v111 = vadd.f32 %v88, %v96
  %v112 = vadd.f32 %v89, %v96
  %v113 = vadd.f32 %v90, %v96
  %v114 = vadd.f32 %v98, %v99
  %v115 = vadd.f32 %v114, %v100
  %v116 = vadd.f32 %v115, %v101
  %v117 = vadd.f32 %v116, %v102
  %v118 = vadd.f32 %v117, %v103
  %v119 = vadd.f32 %v118, %v104
  %v120 = vadd.f32 %v119, %v105
  %v121 = vrot.slane %v120, 4
  %v122 = vadd.f32 %v120, %v121
  %v123 = vrot.slane %v122, 2
  %v124 = vadd.f32 %v122, %v123
  %v125 = vrot.slane %v124, 1
  %v126 = vadd.f32 %v124, %v125
  %v127 = vadd.f32 %v106, %v107
  %v128 = vadd.f32 %v127, %v108
  %v129 = vadd.f32 %v128, %v109
  %v130 = vadd.f32 %v129, %v110
  %v131 = vadd.f32 %v130, %v111
  %v132 = vadd.f32 %v131, %v112
  %v133 = vadd.f32 %v132, %v113
  %v134 = vrot.slane %v133, 4
  %v135 = vadd.f32 %v133, %v134
  %v136 = vrot.slane %v135, 2
  %v137 = vadd.f32 %v135, %v136
  %v138 = vrot.slane %v137, 1
  %v139 = vadd.f32 %v137, %v138
  %v140 = vrcp.pop 64.0
  %v141 = vmul.f32 %v126, %v140
  %v142 = vmul.f32 %v139, %v140
  %v143 = vpack.c.bf16 %v141, %v141
  %v144 = vpack.c.bf16 %v142, %v142
  %v145 = vld [vmem:[%s6] sm:$0xf]
  %v146 = vld [vmem:[%s6 + $0x4] sm:$0xf]
  %v147 = vld [vmem:[%s6 + $0x8] sm:$0xf]
  %v148 = vld [vmem:[%s6 + $0xc] sm:$0xf]
  %v149 = vld [vmem:[%s6 + $0x10] sm:$0xf]
  %v150 = vld [vmem:[%s6 + $0x14] sm:$0xf]
  %v151 = vld [vmem:[%s6 + $0x18] sm:$0xf]
  %v152 = vld [vmem:[%s6 + $0x1c] sm:$0xf]
  %v153 = vld [vmem:[%s6 + $0x20] sm:$0xf]
  %v154 = vld [vmem:[%s6 + $0x24] sm:$0xf]
  %v155 = vld [vmem:[%s6 + $0x28] sm:$0xf]
  %v156 = vld [vmem:[%s6 + $0x2c] sm:$0xf]
  %v157 = vld [vmem:[%s6 + $0x30] sm:$0xf]
  %v158 = vld [vmem:[%s6 + $0x34] sm:$0xf]
  %v159 = vld [vmem:[%s6 + $0x38] sm:$0xf]
  %v160 = vld [vmem:[%s6 + $0x3c] sm:$0xf]
  %v161 = vld [vmem:[%s7] sm:$0x1]
  %v163 = vlaneseq
  %v164 = vshrl.u32 %v163, 7
  %v165 = vsub.s32 0, %v164
  %v166 = vrot.slane %v161, %v165
  %v170 = vunpack.c.l.b16 %v143
  %v171 = vunpack.c.l.b16 %v144
  %vm172 = vcmask 1041409
  %v173 = vsel %vm172, %v171, %v170
  %v174 = vpack.c.b16 %v173, %v173
  %v192 = vunpack.c.l.b16 %v145
  %v193 = vunpack.c.l.b16 %v146
  %v194 = vunpack.c.l.b16 %v147
  %v195 = vunpack.c.l.b16 %v148
  %v196 = vunpack.c.l.b16 %v149
  %v197 = vunpack.c.l.b16 %v150
  %v198 = vunpack.c.l.b16 %v151
  %v199 = vunpack.c.l.b16 %v152
  %v200 = vunpack.c.l.b16 %v153
  %v201 = vunpack.c.l.b16 %v154
  %v202 = vunpack.c.l.b16 %v155
  %v203 = vunpack.c.l.b16 %v156
  %v204 = vunpack.c.l.b16 %v157
  %v205 = vunpack.c.l.b16 %v158
  %v206 = vunpack.c.l.b16 %v159
  %v207 = vunpack.c.l.b16 %v160
  %v208 = vpack.c.b16 %v193, %v192
  %v209 = vpack.c.b16 %v195, %v194
  %v210 = vpack.c.b16 %v197, %v196
  %v211 = vpack.c.b16 %v199, %v198
  %v212 = vpack.c.b16 %v201, %v200
  %v213 = vpack.c.b16 %v203, %v202
  %v214 = vpack.c.b16 %v205, %v204
  %v215 = vpack.c.b16 %v207, %v206
  %224 = vmatprep.subr.bf16.mxu0 0
  %225 = vmatpush1.bf16.msra.mxu0 %v215
  %226 = vmatprep.subr.bf16.mxu0 0
  %227 = vmatpush1.bf16.msra.mxu0 %v214
  %228 = vmatprep.subr.bf16.mxu0 0
  %229 = vmatpush1.bf16.msra.mxu0 %v213
  %230 = vmatprep.subr.bf16.mxu0 0
  %231 = vmatpush1.bf16.msra.mxu0 %v212
  %232 = vmatprep.subr.bf16.mxu0 0
  %233 = vmatpush1.bf16.msra.mxu0 %v211
  %234 = vmatprep.subr.bf16.mxu0 0
  %235 = vmatpush1.bf16.msra.mxu0 %v210
  %236 = vmatprep.subr.bf16.mxu0 0
  %237 = vmatpush1.bf16.msra.mxu0 %v209
  %238 = vmatprep.subr.bf16.mxu0 0
  %239 = vmatpush1.bf16.msra.mxu0 %v208
  %240 = vmatprep.subr.bf16.mxu0 0
  %241 = vmatpush2.bf16.msra.mxu0 0
  %242 = vmatprep.subr.bf16.mxu0 0
  %243 = vmatpush2.bf16.msra.mxu0 0
  %244 = vmatprep.subr.bf16.mxu0 0
  %245 = vmatpush2.bf16.msra.mxu0 0
  %246 = vmatprep.subr.bf16.mxu0 0
  %247 = vmatpush2.bf16.msra.mxu0 0
  %248 = vmatprep.subr.bf16.mxu0 0
  %249 = vmatpush2.bf16.msra.mxu0 0
  %250 = vmatprep.subr.bf16.mxu0 0
  %251 = vmatpush2.bf16.msra.mxu0 0
  %252 = vmatprep.subr.bf16.mxu0 0
  %253 = vmatpush2.bf16.msra.mxu0 0
  %254 = vmatprep.subr.bf16.mxu0 0
  %255 = vmatpush2.bf16.msra.mxu0 0
  %256 = vmatprep.mubr.bf16.mxu0 0
  %257 = vmatmul.mubr.bf16.gmra.mxu0 %v174
  %v258 = vpop.f32.mrf.mxu0
  %v259 = vadd.f32 %v166, %v258
  %v260 = vpop.f32.mrf.mxu0
  %v261 = vpop.f32.mrf.mxu0
  %v262 = vpop.f32.mrf.mxu0
  %263 = vdwg.mxu0
  %v264 = vmax.f32 %v259, 0.0
  %v265 = vpack.c.bf16 %v264, %v264
  %v266 = vld [vmem:[%s8] sm:$0xf]
  %v267 = vld [vmem:[%s9] sm:$0x1]
  %v269 = vlaneseq
  %v270 = vshrl.u32 %v269, 7
  %v271 = vsub.s32 0, %v270
  %v272 = vrot.slane %v267, %v271
  %vm274 = vcmask 64512
  %v276 = vsel %vm274, %v265, 0
  %vm278 = vcmask 1043456
  %v280 = vsel %vm278, %v266, 0
  %282 = vmatprep.subr.bf16.mxu0 0
  %283 = vmatpush1.bf16.msra.mxu0 0
  %284 = vmatprep.subr.bf16.mxu0 0
  %285 = vmatpush1.bf16.msra.mxu0 0
  %286 = vmatprep.subr.bf16.mxu0 0
  %287 = vmatpush1.bf16.msra.mxu0 0
  %288 = vmatprep.subr.bf16.mxu0 0
  %289 = vmatpush1.bf16.msra.mxu0 0
  %290 = vmatprep.subr.bf16.mxu0 0
  %291 = vmatpush1.bf16.msra.mxu0 0
  %292 = vmatprep.subr.bf16.mxu0 0
  %293 = vmatpush1.bf16.msra.mxu0 0
  %294 = vmatprep.subr.bf16.mxu0 0
  %295 = vmatpush1.bf16.msra.mxu0 0
  %296 = vmatprep.subr.bf16.mxu0 0
  %297 = vmatpush1.bf16.msra.mxu0 %v280
  %298 = vmatprep.subr.bf16.mxu0 0
  %299 = vmatpush2.bf16.msra.mxu0 0
  %300 = vmatprep.subr.bf16.mxu0 0
  %301 = vmatpush2.bf16.msra.mxu0 0
  %302 = vmatprep.subr.bf16.mxu0 0
  %303 = vmatpush2.bf16.msra.mxu0 0
  %304 = vmatprep.subr.bf16.mxu0 0
  %305 = vmatpush2.bf16.msra.mxu0 0
  %306 = vmatprep.subr.bf16.mxu0 0
  %307 = vmatpush2.bf16.msra.mxu0 0
  %308 = vmatprep.subr.bf16.mxu0 0
  %309 = vmatpush2.bf16.msra.mxu0 0
  %310 = vmatprep.subr.bf16.mxu0 0
  %311 = vmatpush2.bf16.msra.mxu0 0
  %312 = vmatprep.subr.bf16.mxu0 0
  %313 = vmatpush2.bf16.msra.mxu0 0
  %314 = vmatprep.mubr.bf16.mxu0 0
  %315 = vmatmul.mubr.bf16.gmra.mxu0 %v276
  %v316 = vpop.f32.mrf.mxu0
  %v317 = vadd.f32 %v272, %v316
  %v318 = vpop.f32.mrf.mxu0
  %v319 = vpop.f32.mrf.mxu0
  %v320 = vpop.f32.mrf.mxu0
  %321 = vdwg.mxu0
  %v322 = vxor.u32 %v317, 2147483648
  %v323 = vmul.f32 %v322, 1.442695
  %v324 = vpow.pop %v323
  %v325 = vadd.f32 %v324, 1.0
  %v326 = vrcp.pop %v325
  %v327 = vmul.f32 1.0, %v326
  %v328 = vld [vmem:[%s1] sm:$0xf]
  %v329 = vld [vmem:[%s1 + $0x4] sm:$0xf]
  %v330 = vld [vmem:[%s1 + $0x8] sm:$0xf]
  %v331 = vld [vmem:[%s1 + $0xc] sm:$0xf]
  %v332 = vld [vmem:[%s1 + $0x10] sm:$0xf]
  %v333 = vld [vmem:[%s1 + $0x14] sm:$0xf]
  %v334 = vld [vmem:[%s1 + $0x18] sm:$0xf]
  %v335 = vld [vmem:[%s1 + $0x1c] sm:$0xf]
  %v336 = vld [vmem:[%s1 + $0x20] sm:$0xf]
  %v337 = vld [vmem:[%s1 + $0x24] sm:$0xf]
  %v338 = vld [vmem:[%s1 + $0x28] sm:$0xf]
  %v339 = vld [vmem:[%s1 + $0x2c] sm:$0xf]
  %v340 = vld [vmem:[%s1 + $0x30] sm:$0xf]
  %v341 = vld [vmem:[%s1 + $0x34] sm:$0xf]
  %v342 = vld [vmem:[%s1 + $0x38] sm:$0xf]
  %v343 = vld [vmem:[%s1 + $0x3c] sm:$0xf]
  %v344 = vunpack.c.l.bf16 %v328
  %v345 = vunpack.c.l.bf16 %v329
  %v346 = vunpack.c.l.bf16 %v330
  %v347 = vunpack.c.l.bf16 %v331
  %v348 = vunpack.c.l.bf16 %v332
  %v349 = vunpack.c.l.bf16 %v333
  %v350 = vunpack.c.l.bf16 %v334
  %v351 = vunpack.c.l.bf16 %v335
  %v352 = vunpack.c.l.bf16 %v336
  %v353 = vunpack.c.l.bf16 %v337
  %v354 = vunpack.c.l.bf16 %v338
  %v355 = vunpack.c.l.bf16 %v339
  %v356 = vunpack.c.l.bf16 %v340
  %v357 = vunpack.c.l.bf16 %v341
  %v358 = vunpack.c.l.bf16 %v342
  %v359 = vunpack.c.l.bf16 %v343
  %v360 = vld [vmem:[%s4] sm:$0x1]
  %v362 = vlaneseq
  %v363 = vshrl.u32 %v362, 7
  %v364 = vsub.s32 0, %v363
  %v365 = vrot.slane %v360, %v364
  %v367 = vmul.f32 %v344, %v365
  %v368 = vmul.f32 %v345, %v365
  %v369 = vmul.f32 %v346, %v365
  %v370 = vmul.f32 %v347, %v365
  %v371 = vmul.f32 %v348, %v365
  %v372 = vmul.f32 %v349, %v365
  %v373 = vmul.f32 %v350, %v365
  %v374 = vmul.f32 %v351, %v365
  %v375 = vmul.f32 %v352, %v365
  %v376 = vmul.f32 %v353, %v365
  %v377 = vmul.f32 %v354, %v365
  %v378 = vmul.f32 %v355, %v365
  %v379 = vmul.f32 %v356, %v365
  %v380 = vmul.f32 %v357, %v365
  %v381 = vmul.f32 %v358, %v365
  %v382 = vmul.f32 %v359, %v365
  %v383 = vld [vmem:[%s5] sm:$0x1]
  %v385 = vlaneseq
  %v386 = vshrl.u32 %v385, 7
  %v387 = vsub.s32 0, %v386
  %v388 = vrot.slane %v383, %v387
  %v390 = vadd.f32 %v367, %v388
  %v391 = vadd.f32 %v368, %v388
  %v392 = vadd.f32 %v369, %v388
  %v393 = vadd.f32 %v370, %v388
  %v394 = vadd.f32 %v371, %v388
  %v395 = vadd.f32 %v372, %v388
  %v396 = vadd.f32 %v373, %v388
  %v397 = vadd.f32 %v374, %v388
  %v398 = vadd.f32 %v375, %v388
  %v399 = vadd.f32 %v376, %v388
  %v400 = vadd.f32 %v377, %v388
  %v401 = vadd.f32 %v378, %v388
  %v402 = vadd.f32 %v379, %v388
  %v403 = vadd.f32 %v380, %v388
  %v404 = vadd.f32 %v381, %v388
  %v405 = vadd.f32 %v382, %v388
  %v408 = vunpack.c.l.s4 1966171168
  %v409 = vunpack.c.0.s8 %v408
  %v410 = vlaneseq
  %v411 = vshrl.u32 %v410, 7
  %v412 = vsub.s32 %v409, %v411
  %v413 = vrot.slane %v327, %v412
  %v414 = vcombine.high %v413, %v413
  %v416 = vunpack.c.l.s4 1966171168
  %v417 = vunpack.c.0.s8 %v416
  %v418 = vlaneseq
  %v419 = vshrl.u32 %v418, 7
  %v420 = vsub.s32 %v417, %v419
  %v421 = vrot.slane %v413, %v420
  %v423 = vunpack.c.l.s4 1966171168
  %v424 = vunpack.c.0.s8 %v423
  %v425 = vlaneseq
  %v426 = vshrl.u32 %v425, 7
  %v427 = vsub.s32 %v424, %v426
  %v428 = vrot.slane %v414, %v427
  %v429 = vlaneseq
  %v430 = vshrl.u32 %v429, 7
  %v431 = vsub.s32 0, %v430
  %v432 = vrot.slane %v421, %v431
  %v433 = vlaneseq
  %v434 = vshrl.u32 %v433, 7
  %v435 = vsub.s32 0, %v434
  %v436 = vrot.slane %v428, %v435
  %v439 = vmul.f32 %v98, %v432
  %v440 = vmul.f32 %v99, %v432
  %v441 = vmul.f32 %v100, %v432
  %v442 = vmul.f32 %v101, %v432
  %v443 = vmul.f32 %v102, %v432
  %v444 = vmul.f32 %v103, %v432
  %v445 = vmul.f32 %v104, %v432
  %v446 = vmul.f32 %v105, %v432
  %v447 = vmul.f32 %v106, %v436
  %v448 = vmul.f32 %v107, %v436
  %v449 = vmul.f32 %v108, %v436
  %v450 = vmul.f32 %v109, %v436
  %v451 = vmul.f32 %v110, %v436
  %v452 = vmul.f32 %v111, %v436
  %v453 = vmul.f32 %v112, %v436
  %v454 = vmul.f32 %v113, %v436
  %v455 = vadd.f32 %v439, %v390
  %v456 = vadd.f32 %v440, %v391
  %v457 = vadd.f32 %v441, %v392
  %v458 = vadd.f32 %v442, %v393
  %v459 = vadd.f32 %v443, %v394
  %v460 = vadd.f32 %v444, %v395
  %v461 = vadd.f32 %v445, %v396
  %v462 = vadd.f32 %v446, %v397
  %v463 = vadd.f32 %v447, %v398
  %v464 = vadd.f32 %v448, %v399
  %v465 = vadd.f32 %v449, %v400
  %v466 = vadd.f32 %v450, %v401
  %v467 = vadd.f32 %v451, %v402
  %v468 = vadd.f32 %v452, %v403
  %v469 = vadd.f32 %v453, %v404
  %v470 = vadd.f32 %v454, %v405
  %v471 = vmax.f32 %v455, 0.0
  %v472 = vmax.f32 %v456, 0.0
  %v473 = vmax.f32 %v457, 0.0
  %v474 = vmax.f32 %v458, 0.0
  %v475 = vmax.f32 %v459, 0.0
  %v476 = vmax.f32 %v460, 0.0
  %v477 = vmax.f32 %v461, 0.0
  %v478 = vmax.f32 %v462, 0.0
  %v479 = vmax.f32 %v463, 0.0
  %v480 = vmax.f32 %v464, 0.0
  %v481 = vmax.f32 %v465, 0.0
  %v482 = vmax.f32 %v466, 0.0
  %v483 = vmax.f32 %v467, 0.0
  %v484 = vmax.f32 %v468, 0.0
  %v485 = vmax.f32 %v469, 0.0
  %v486 = vmax.f32 %v470, 0.0
  %v487 = vpack.c.bf16 %v472, %v471
  %v488 = vpack.c.bf16 %v474, %v473
  %v489 = vpack.c.bf16 %v476, %v475
  %v490 = vpack.c.bf16 %v478, %v477
  %v491 = vpack.c.bf16 %v480, %v479
  %v492 = vpack.c.bf16 %v482, %v481
  %v493 = vpack.c.bf16 %v484, %v483
  %v494 = vpack.c.bf16 %v486, %v485
  %v503 = vunpack.c.l.b16 %v487
  %v504 = vunpack.c.h.b16 %v487
  %v505 = vunpack.c.l.b16 %v488
  %v506 = vunpack.c.h.b16 %v488
  %v507 = vunpack.c.l.b16 %v489
  %v508 = vunpack.c.h.b16 %v489
  %v509 = vunpack.c.l.b16 %v490
  %v510 = vunpack.c.h.b16 %v490
  %v511 = vunpack.c.l.b16 %v491
  %v512 = vunpack.c.h.b16 %v491
  %v513 = vunpack.c.l.b16 %v492
  %v514 = vunpack.c.h.b16 %v492
  %v515 = vunpack.c.l.b16 %v493
  %v516 = vunpack.c.h.b16 %v493
  %v517 = vunpack.c.l.b16 %v494
  %v518 = vunpack.c.h.b16 %v494
  %v519 = vpack.c.b16 %v503, %v503
  %v520 = vpack.c.b16 %v504, %v504
  %v521 = vpack.c.b16 %v505, %v505
  %v522 = vpack.c.b16 %v506, %v506
  %v523 = vpack.c.b16 %v507, %v507
  %v524 = vpack.c.b16 %v508, %v508
  %v525 = vpack.c.b16 %v509, %v509
  %v526 = vpack.c.b16 %v510, %v510
  %v527 = vpack.c.b16 %v511, %v511
  %v528 = vpack.c.b16 %v512, %v512
  %v529 = vpack.c.b16 %v513, %v513
  %v530 = vpack.c.b16 %v514, %v514
  %v531 = vpack.c.b16 %v515, %v515
  %v532 = vpack.c.b16 %v516, %v516
  %v533 = vpack.c.b16 %v517, %v517
  %v534 = vpack.c.b16 %v518, %v518
  %551 = vst [vmem:[%s10] sm:$0xf] %v519
  %552 = vst [vmem:[%s10 + $0x4] sm:$0xf] %v520
  %553 = vst [vmem:[%s10 + $0x8] sm:$0xf] %v521
  %554 = vst [vmem:[%s10 + $0xc] sm:$0xf] %v522
  %555 = vst [vmem:[%s10 + $0x10] sm:$0xf] %v523
  %556 = vst [vmem:[%s10 + $0x14] sm:$0xf] %v524
  %557 = vst [vmem:[%s10 + $0x18] sm:$0xf] %v525
  %558 = vst [vmem:[%s10 + $0x1c] sm:$0xf] %v526
  %559 = vst [vmem:[%s10 + $0x20] sm:$0xf] %v527
  %560 = vst [vmem:[%s10 + $0x24] sm:$0xf] %v528
  %561 = vst [vmem:[%s10 + $0x28] sm:$0xf] %v529
  %562 = vst [vmem:[%s10 + $0x2c] sm:$0xf] %v530
  %563 = vst [vmem:[%s10 + $0x30] sm:$0xf] %v531
  %564 = vst [vmem:[%s10 + $0x34] sm:$0xf] %v532
  %565 = vst [vmem:[%s10 + $0x38] sm:$0xf] %v533
  %566 = vst [vmem:[%s10 + $0x3c] sm:$0xf] %v534
  // Predicated region
  $region42: #{block_forward.7} parent=0 // pred_check
    _
  $region43: #{block_forward.7} parent=0 // pred_check_branch
    %568 = sbr.rel (0) target = $region45
  $region44: #{block_forward.7} parent=0 // pred_region
    _
  $region45: #{block_forward.7} parent=0 // pred_fallthru
    _
  // Predicated region
  $region46: #{block_forward.7} parent=0 // pred_check
    _
  $region47: #{block_forward.7} parent=0 // pred_check_branch
    %570 = sbr.rel (0) target = $region49
  $region48: #{block_forward.7} parent=0 // pred_region
    _
  $region49: #{block_forward.7} parent=0 // pred_fallthru
    _

// kernel: block_forward.5
$region0: #{block_forward.5}
  #allocation0 [shape = 'u32[]', space=smem, size = 0x4, offset = 0x4, fixed_abs, tag = 'smem constant byte address 0x4 - core index']
  #allocation1 [shape = 'u32[144,128]{1,0:T(1,128)}', space=vmem, size = 0x12000, scoped, tag = 'internal scratch']
  #allocation2 [shape = 'bf16[2,10,10,128]{3,2,1,0:T(8,128)(2,1)}', space=vmem, size = 0x14000, scoped, tag = 'scratch operand']
  %s0 = inlined_call_operand.vmem [shape: bf16[1,128,128], index: 0, kind: input, shape index: {}]
  %s1 = inlined_call_operand.vmem [shape: f32[1,128], index: 1, kind: input, shape index: {}]
  %s2 = inlined_call_operand.vmem [shape: f32[1,128], index: 2, kind: input, shape index: {}]
  %s3 = inlined_call_operand.vmem [shape: bf16[3,384,128], index: 3, kind: input, shape index: {}]
  %s4 = inlined_call_operand.vmem [shape: bf16[1,128,128], index: 4, kind: output, shape index: {0}]
  %s5 = inlined_call_operand.vmem [shape: f32[1,2,128], index: 5, kind: output, shape index: {1}]
  %6 = xla_tuple %s4, %s5
  %s7 = sld [smem:[#allocation0]]
  $region38: #{block_forward.5} parent=0
    _
  %s9 = ssub.s32 1, %s7
  %s10 = scalar_select 0, %s9, %s7
  // Predicated region
  $region2: #{block_forward.5} parent=0 // pred_check
    _
  $region3: #{block_forward.5} parent=0 // pred_check_branch
    %12 = sbr.rel (0) target = $region5
  $region4: #{block_forward.5} parent=0 // pred_region
    _
  $region5: #{block_forward.5} parent=0 // pred_fallthru
    _
  // Predicated region
  $region6: #{block_forward.5} parent=0 // pred_check
    _
  $region7: #{block_forward.5} parent=0 // pred_check_branch
    %14 = sbr.rel (0) target = $region9
  $region8: #{block_forward.5} parent=0 // pred_region
    _
  $region9: #{block_forward.5} parent=0 // pred_fallthru
    _
  // Predicated region
  $region10: #{block_forward.5} parent=0 // pred_check
    _
  $region11: #{block_forward.5} parent=0 // pred_check_branch
    %16 = sbr.rel (0) target = $region13
  $region12: #{block_forward.5} parent=0 // pred_region
    _
  $region13: #{block_forward.5} parent=0 // pred_fallthru
    _
  // Predicated region
  $region14: #{block_forward.5} parent=0 // pred_check
    _
  $region15: #{block_forward.5} parent=0 // pred_check_branch
    %18 = sbr.rel (0) target = $region17
  $region16: #{block_forward.5} parent=0 // pred_region
    _
  $region17: #{block_forward.5} parent=0 // pred_fallthru
    _
  %v20 = vld [vmem:[%s0] sm:$0xf]
  %v21 = vld [vmem:[%s0 + $0x4] sm:$0xf]
  %v22 = vld [vmem:[%s0 + $0x8] sm:$0xf]
  %v23 = vld [vmem:[%s0 + $0xc] sm:$0xf]
  %v24 = vld [vmem:[%s0 + $0x10] sm:$0xf]
  %v25 = vld [vmem:[%s0 + $0x14] sm:$0xf]
  %v26 = vld [vmem:[%s0 + $0x18] sm:$0xf]
  %v27 = vld [vmem:[%s0 + $0x1c] sm:$0xf]
  %v28 = vld [vmem:[%s0 + $0x20] sm:$0xf]
  %v29 = vld [vmem:[%s0 + $0x24] sm:$0xf]
  %v30 = vld [vmem:[%s0 + $0x28] sm:$0xf]
  %v31 = vld [vmem:[%s0 + $0x2c] sm:$0xf]
  %v32 = vld [vmem:[%s0 + $0x30] sm:$0xf]
  %v33 = vld [vmem:[%s0 + $0x34] sm:$0xf]
  %v34 = vld [vmem:[%s0 + $0x38] sm:$0xf]
  %v35 = vld [vmem:[%s0 + $0x3c] sm:$0xf]
  %v36 = vunpack.c.l.bf16 %v20
  %v37 = vunpack.c.l.bf16 %v21
  %v38 = vunpack.c.l.bf16 %v22
  %v39 = vunpack.c.l.bf16 %v23
  %v40 = vunpack.c.l.bf16 %v24
  %v41 = vunpack.c.l.bf16 %v25
  %v42 = vunpack.c.l.bf16 %v26
  %v43 = vunpack.c.l.bf16 %v27
  %v44 = vunpack.c.l.bf16 %v28
  %v45 = vunpack.c.l.bf16 %v29
  %v46 = vunpack.c.l.bf16 %v30
  %v47 = vunpack.c.l.bf16 %v31
  %v48 = vunpack.c.l.bf16 %v32
  %v49 = vunpack.c.l.bf16 %v33
  %v50 = vunpack.c.l.bf16 %v34
  %v51 = vunpack.c.l.bf16 %v35
  %v52 = vld [vmem:[%s1] sm:$0x1]
  %v54 = vlaneseq
  %v55 = vshrl.u32 %v54, 7
  %v56 = vsub.s32 0, %v55
  %v57 = vrot.slane %v52, %v56
  %v59 = vmul.f32 %v36, %v57
  %v60 = vmul.f32 %v37, %v57
  %v61 = vmul.f32 %v38, %v57
  %v62 = vmul.f32 %v39, %v57
  %v63 = vmul.f32 %v40, %v57
  %v64 = vmul.f32 %v41, %v57
  %v65 = vmul.f32 %v42, %v57
  %v66 = vmul.f32 %v43, %v57
  %v67 = vmul.f32 %v44, %v57
  %v68 = vmul.f32 %v45, %v57
  %v69 = vmul.f32 %v46, %v57
  %v70 = vmul.f32 %v47, %v57
  %v71 = vmul.f32 %v48, %v57
  %v72 = vmul.f32 %v49, %v57
  %v73 = vmul.f32 %v50, %v57
  %v74 = vmul.f32 %v51, %v57
  %v75 = vld [vmem:[%s2] sm:$0x1]
  %v77 = vlaneseq
  %v78 = vshrl.u32 %v77, 7
  %v79 = vsub.s32 0, %v78
  %v80 = vrot.slane %v75, %v79
  %v82 = vadd.f32 %v59, %v80
  %v83 = vadd.f32 %v60, %v80
  %v84 = vadd.f32 %v61, %v80
  %v85 = vadd.f32 %v62, %v80
  %v86 = vadd.f32 %v63, %v80
  %v87 = vadd.f32 %v64, %v80
  %v88 = vadd.f32 %v65, %v80
  %v89 = vadd.f32 %v66, %v80
  %v90 = vadd.f32 %v67, %v80
  %v91 = vadd.f32 %v68, %v80
  %v92 = vadd.f32 %v69, %v80
  %v93 = vadd.f32 %v70, %v80
  %v94 = vadd.f32 %v71, %v80
  %v95 = vadd.f32 %v72, %v80
  %v96 = vadd.f32 %v73, %v80
  %v97 = vadd.f32 %v74, %v80
  %v98 = vmax.f32 %v82, 0.0
  %v99 = vmax.f32 %v83, 0.0
  %v100 = vmax.f32 %v84, 0.0
  %v101 = vmax.f32 %v85, 0.0
  %v102 = vmax.f32 %v86, 0.0
  %v103 = vmax.f32 %v87, 0.0
  %v104 = vmax.f32 %v88, 0.0
  %v105 = vmax.f32 %v89, 0.0
  %v106 = vmax.f32 %v90, 0.0
  %v107 = vmax.f32 %v91, 0.0
  %v108 = vmax.f32 %v92, 0.0
  %v109 = vmax.f32 %v93, 0.0
  %v110 = vmax.f32 %v94, 0.0
  %v111 = vmax.f32 %v95, 0.0
  %v112 = vmax.f32 %v96, 0.0
  %v113 = vmax.f32 %v97, 0.0
  %v114 = vpack.c.bf16 %v99, %v98
  %v115 = vpack.c.bf16 %v101, %v100
  %v116 = vpack.c.bf16 %v103, %v102
  %v117 = vpack.c.bf16 %v105, %v104
  %v118 = vpack.c.bf16 %v107, %v106
  %v119 = vpack.c.bf16 %v109, %v108
  %v120 = vpack.c.bf16 %v111, %v110
  %v121 = vpack.c.bf16 %v113, %v112
  %v130 = vunpack.c.l.b16 %v114
  %v131 = vunpack.c.h.b16 %v114
  %v132 = vunpack.c.l.b16 %v115
  %v133 = vunpack.c.h.b16 %v115
  %v134 = vunpack.c.l.b16 %v116
  %v135 = vunpack.c.h.b16 %v116
  %v136 = vunpack.c.l.b16 %v117
  %v137 = vunpack.c.h.b16 %v117
  %v138 = vunpack.c.l.b16 %v118
  %v139 = vunpack.c.h.b16 %v118
  %v140 = vunpack.c.l.b16 %v119
  %v141 = vunpack.c.h.b16 %v119
  %v142 = vunpack.c.l.b16 %v120
  %v143 = vunpack.c.h.b16 %v120
  %v144 = vunpack.c.l.b16 %v121
  %v145 = vunpack.c.h.b16 %v121
  %v146 = vpack.c.b16 %v130, %v130
  %v147 = vpack.c.b16 %v131, %v131
  %v148 = vpack.c.b16 %v132, %v132
  %v149 = vpack.c.b16 %v133, %v133
  %v150 = vpack.c.b16 %v134, %v134
  %v151 = vpack.c.b16 %v135, %v135
  %v152 = vpack.c.b16 %v136, %v136
  %v153 = vpack.c.b16 %v137, %v137
  %v154 = vpack.c.b16 %v138, %v138
  %v155 = vpack.c.b16 %v139, %v139
  %v156 = vpack.c.b16 %v140, %v140
  %v157 = vpack.c.b16 %v141, %v141
  %v158 = vpack.c.b16 %v142, %v142
  %v159 = vpack.c.b16 %v143, %v143
  %v160 = vpack.c.b16 %v144, %v144
  %v161 = vpack.c.b16 %v145, %v145
  %p162 = scmp.eq.s32.totalorder 0, 0
  // Predicated region
  $region18: #{block_forward.5} parent=0 // pred_check
    %p163 = pneg %p162
  $region19: #{block_forward.5} parent=0 // pred_check_branch
    %165 = sbr.rel (%p163) target = $region21
  $region20: #{block_forward.5} parent=0 // pred_region
    %166 = vst [vmem:[#allocation2] sm:$0xf] 0
    %167 = vst [vmem:[#allocation2 + $0x4] sm:$0x1] 0
    %168 = vst [vmem:[#allocation2 + $0x8] sm:$0xf] 0
    %169 = vst [vmem:[#allocation2 + $0xc] sm:$0x1] 0
    %170 = vst [vmem:[#allocation2 + $0x10] sm:$0xf] 0
    %171 = vst [vmem:[#allocation2 + $0x14] sm:$0x1] 0
    %172 = vst [vmem:[#allocation2 + $0x18] sm:$0xf] 0
    %173 = vst [vmem:[#allocation2 + $0x1c] sm:$0x1] 0
    %174 = vst [vmem:[#allocation2 + $0x20] sm:$0xf] 0
    %175 = vst [vmem:[#allocation2 + $0x24] sm:$0x1] 0
    %176 = vst [vmem:[#allocation2 + $0x28] sm:$0xf] 0
    %177 = vst [vmem:[#allocation2 + $0x2c] sm:$0x1] 0
    %178 = vst [vmem:[#allocation2 + $0x30] sm:$0xf] 0
    %179 = vst [vmem:[#allocation2 + $0x34] sm:$0x1] 0
    %180 = vst [vmem:[#allocation2 + $0x38] sm:$0xf] 0
    %181 = vst [vmem:[#allocation2 + $0x3c] sm:$0x1] 0
    %182 = vst [vmem:[#allocation2 + $0x40] sm:$0xf] 0
    %183 = vst [vmem:[#allocation2 + $0x44] sm:$0x1] 0
    %184 = vst [vmem:[#allocation2 + $0x48] sm:$0xf] 0
    %185 = vst [vmem:[#allocation2 + $0x4c] sm:$0x1] 0
    %186 = vst [vmem:[#allocation2 + $0x50] sm:$0xf] 0
    %187 = vst [vmem:[#allocation2 + $0x54] sm:$0x1] 0
    %188 = vst [vmem:[#allocation2 + $0x58] sm:$0xf] 0
    %189 = vst [vmem:[#allocation2 + $0x5c] sm:$0x1] 0
    %190 = vst [vmem:[#allocation2 + $0x60] sm:$0xf] 0
    %191 = vst [vmem:[#allocation2 + $0x64] sm:$0x1] 0
    %192 = vst [vmem:[#allocation2 + $0x68] sm:$0xf] 0
    %193 = vst [vmem:[#allocation2 + $0x6c] sm:$0x1] 0
    %194 = vst [vmem:[#allocation2 + $0x70] sm:$0xf] 0
    %195 = vst [vmem:[#allocation2 + $0x74] sm:$0x1] 0
    %196 = vst [vmem:[#allocation2 + $0x78] sm:$0xf] 0
    %197 = vst [vmem:[#allocation2 + $0x7c] sm:$0x1] 0
    %198 = vst [vmem:[#allocation2 + $0x80] sm:$0xf] 0
    %199 = vst [vmem:[#allocation2 + $0x84] sm:$0x1] 0
    %200 = vst [vmem:[#allocation2 + $0x88] sm:$0xf] 0
    %201 = vst [vmem:[#allocation2 + $0x8c] sm:$0x1] 0
    %202 = vst [vmem:[#allocation2 + $0x90] sm:$0xf] 0
    %203 = vst [vmem:[#allocation2 + $0x94] sm:$0x1] 0
    %204 = vst [vmem:[#allocation2 + $0x98] sm:$0xf] 0
    %205 = vst [vmem:[#allocation2 + $0x9c] sm:$0x1] 0
  $region21: #{block_forward.5} parent=0 // pred_fallthru
    _
  %v207 = vshrl.u32 %v146, 16
  %v209 = vrot.slane %v207, 7
  %v210 = vshll.u32 %v146, 16
  %v212 = vor.u32 %v209, %v210
  %v213 = vrot.slane %v209, 4
  %v215 = vshrl.u32 %v147, 16
  %v217 = vrot.slane %v215, 7
  %v218 = vshll.u32 %v147, 16
  %v220 = vor.u32 %v217, %v218
  %v221 = vrot.slane %v217, 4
  %v223 = vshrl.u32 %v148, 16
  %v225 = vrot.slane %v223, 7
  %v226 = vshll.u32 %v148, 16
  %v228 = vor.u32 %v225, %v226
  %v229 = vrot.slane %v225, 4
  %v231 = vshrl.u32 %v149, 16
  %v233 = vrot.slane %v231, 7
  %v234 = vshll.u32 %v149, 16
  %v236 = vor.u32 %v233, %v234
  %v237 = vrot.slane %v233, 4
  %v239 = vshrl.u32 %v150, 16
  %v241 = vrot.slane %v239, 7
  %v242 = vshll.u32 %v150, 16
  %v244 = vor.u32 %v241, %v242
  %v245 = vrot.slane %v241, 4
  %v247 = vshrl.u32 %v151, 16
  %v249 = vrot.slane %v247, 7
  %v250 = vshll.u32 %v151, 16
  %v252 = vor.u32 %v249, %v250
  %v253 = vrot.slane %v249, 4
  %v255 = vshrl.u32 %v152, 16
  %v257 = vrot.slane %v255, 7
  %v258 = vshll.u32 %v152, 16
  %v260 = vor.u32 %v257, %v258
  %v261 = vrot.slane %v257, 4
  %v263 = vshrl.u32 %v153, 16
  %v265 = vrot.slane %v263, 7
  %v266 = vshll.u32 %v153, 16
  %v268 = vor.u32 %v265, %v266
  %v269 = vrot.slane %v265, 4
  %v271 = vshrl.u32 %v154, 16
  %v273 = vrot.slane %v271, 7
  %v274 = vshll.u32 %v154, 16
  %v276 = vor.u32 %v273, %v274
  %v277 = vrot.slane %v273, 4
  %v279 = vshrl.u32 %v155, 16
  %v281 = vrot.slane %v279, 7
  %v282 = vshll.u32 %v155, 16
  %v284 = vor.u32 %v281, %v282
  %v285 = vrot.slane %v281, 4
  %v287 = vshrl.u32 %v156, 16
  %v289 = vrot.slane %v287, 7
  %v290 = vshll.u32 %v156, 16
  %v292 = vor.u32 %v289, %v290
  %v293 = vrot.slane %v289, 4
  %v295 = vshrl.u32 %v157, 16
  %v297 = vrot.slane %v295, 7
  %v298 = vshll.u32 %v157, 16
  %v300 = vor.u32 %v297, %v298
  %v301 = vrot.slane %v297, 4
  %v303 = vshrl.u32 %v158, 16
  %v305 = vrot.slane %v303, 7
  %v306 = vshll.u32 %v158, 16
  %v308 = vor.u32 %v305, %v306
  %v309 = vrot.slane %v305, 4
  %v311 = vshrl.u32 %v159, 16
  %v313 = vrot.slane %v311, 7
  %v314 = vshll.u32 %v159, 16
  %v316 = vor.u32 %v313, %v314
  %v317 = vrot.slane %v313, 4
  %v319 = vshrl.u32 %v160, 16
  %v321 = vrot.slane %v319, 7
  %v322 = vshll.u32 %v160, 16
  %v324 = vor.u32 %v321, %v322
  %v325 = vrot.slane %v321, 4
  %v327 = vshrl.u32 %v161, 16
  %v329 = vrot.slane %v327, 7
  %v330 = vshll.u32 %v161, 16
  %v332 = vor.u32 %v329, %v330
  %v333 = vrot.slane %v329, 4
  %s366 = scalar_lea.vmem [#allocation2], 8
  %vm367 = vcmask 1043456
  %vm368 = vsmask.f32 7938
  %vm369 = vmand %vm367, %vm368
  %v370 = vld [vmem:[%s366] sm:$0xf]
  %v371 = vsel %vm369, %v212, %v370
  %372 = vst [vmem:[%s366] sm:$0xf] %v371
  %vm373 = vcmask 1040384
  %vm374 = vsmask.f32 256
  %vm375 = vmand %vm373, %vm374
  %v376 = vld [vmem:[%s366 + $0x4] sm:$0x1]
  %v377 = vsel %vm375, %v213, %v376
  %378 = vst [vmem:[%s366 + $0x4] sm:$0x1] %v377
  %v379 = vld [vmem:[%s366 + $0x8] sm:$0xf]
  %v380 = vsel %vm369, %v220, %v379
  %381 = vst [vmem:[%s366 + $0x8] sm:$0xf] %v380
  %v382 = vld [vmem:[%s366 + $0xc] sm:$0x1]
  %v383 = vsel %vm375, %v221, %v382
  %384 = vst [vmem:[%s366 + $0xc] sm:$0x1] %v383
  %v385 = vld [vmem:[%s366 + $0x10] sm:$0xf]
  %v386 = vsel %vm369, %v228, %v385
  %387 = vst [vmem:[%s366 + $0x10] sm:$0xf] %v386
  %v388 = vld [vmem:[%s366 + $0x14] sm:$0x1]
  %v389 = vsel %vm375, %v229, %v388
  %390 = vst [vmem:[%s366 + $0x14] sm:$0x1] %v389
  %v391 = vld [vmem:[%s366 + $0x18] sm:$0xf]
  %v392 = vsel %vm369, %v236, %v391
  %393 = vst [vmem:[%s366 + $0x18] sm:$0xf] %v392
  %v394 = vld [vmem:[%s366 + $0x1c] sm:$0x1]
  %v395 = vsel %vm375, %v237, %v394
  %396 = vst [vmem:[%s366 + $0x1c] sm:$0x1] %v395
  %v397 = vld [vmem:[%s366 + $0x20] sm:$0xf]
  %v398 = vsel %vm369, %v244, %v397
  %399 = vst [vmem:[%s366 + $0x20] sm:$0xf] %v398
  %v400 = vld [vmem:[%s366 + $0x24] sm:$0x1]
  %v401 = vsel %vm375, %v245, %v400
  %402 = vst [vmem:[%s366 + $0x24] sm:$0x1] %v401
  %v403 = vld [vmem:[%s366 + $0x28] sm:$0xf]
  %v404 = vsel %vm369, %v252, %v403
  %405 = vst [vmem:[%s366 + $0x28] sm:$0xf] %v404
  %v406 = vld [vmem:[%s366 + $0x2c] sm:$0x1]
  %v407 = vsel %vm375, %v253, %v406
  %408 = vst [vmem:[%s366 + $0x2c] sm:$0x1] %v407
  %v409 = vld [vmem:[%s366 + $0x30] sm:$0xf]
  %v410 = vsel %vm369, %v260, %v409
  %411 = vst [vmem:[%s366 + $0x30] sm:$0xf] %v410
  %v412 = vld [vmem:[%s366 + $0x34] sm:$0x1]
  %v413 = vsel %vm375, %v261, %v412
  %414 = vst [vmem:[%s366 + $0x34] sm:$0x1] %v413
  %v415 = vld [vmem:[%s366 + $0x38] sm:$0xf]
  %v416 = vsel %vm369, %v268, %v415
  %417 = vst [vmem:[%s366 + $0x38] sm:$0xf] %v416
  %v418 = vld [vmem:[%s366 + $0x3c] sm:$0x1]
  %v419 = vsel %vm375, %v269, %v418
  %420 = vst [vmem:[%s366 + $0x3c] sm:$0x1] %v419
  %v421 = vld [vmem:[%s366 + $0x50] sm:$0xf]
  %v422 = vsel %vm369, %v276, %v421
  %423 = vst [vmem:[%s366 + $0x50] sm:$0xf] %v422
  %v424 = vld [vmem:[%s366 + $0x54] sm:$0x1]
  %v425 = vsel %vm375, %v277, %v424
  %426 = vst [vmem:[%s366 + $0x54] sm:$0x1] %v425
  %v427 = vld [vmem:[%s366 + $0x58] sm:$0xf]
  %v428 = vsel %vm369, %v284, %v427
  %429 = vst [vmem:[%s366 + $0x58] sm:$0xf] %v428
  %v430 = vld [vmem:[%s366 + $0x5c] sm:$0x1]
  %v431 = vsel %vm375, %v285, %v430
  %432 = vst [vmem:[%s366 + $0x5c] sm:$0x1] %v431
  %v433 = vld [vmem:[%s366 + $0x60] sm:$0xf]
  %v434 = vsel %vm369, %v292, %v433
  %435 = vst [vmem:[%s366 + $0x60] sm:$0xf] %v434
  %v436 = vld [vmem:[%s366 + $0x64] sm:$0x1]
  %v437 = vsel %vm375, %v293, %v436
  %438 = vst [vmem:[%s366 + $0x64] sm:$0x1] %v437
  %v439 = vld [vmem:[%s366 + $0x68] sm:$0xf]
  %v440 = vsel %vm369, %v300, %v439
  %441 = vst [vmem:[%s366 + $0x68] sm:$0xf] %v440
  %v442 = vld [vmem:[%s366 + $0x6c] sm:$0x1]
  %v443 = vsel %vm375, %v301, %v442
  %444 = vst [vmem:[%s366 + $0x6c] sm:$0x1] %v443
  %v445 = vld [vmem:[%s366 + $0x70] sm:$0xf]
  %v446 = vsel %vm369, %v308, %v445
  %447 = vst [vmem:[%s366 + $0x70] sm:$0xf] %v446
  %v448 = vld [vmem:[%s366 + $0x74] sm:$0x1]
  %v449 = vsel %vm375, %v309, %v448
  %450 = vst [vmem:[%s366 + $0x74] sm:$0x1] %v449
  %v451 = vld [vmem:[%s366 + $0x78] sm:$0xf]
  %v452 = vsel %vm369, %v316, %v451
  %453 = vst [vmem:[%s366 + $0x78] sm:$0xf] %v452
  %v454 = vld [vmem:[%s366 + $0x7c] sm:$0x1]
  %v455 = vsel %vm375, %v317, %v454
  %456 = vst [vmem:[%s366 + $0x7c] sm:$0x1] %v455
  %v457 = vld [vmem:[%s366 + $0x80] sm:$0xf]
  %v458 = vsel %vm369, %v324, %v457
  %459 = vst [vmem:[%s366 + $0x80] sm:$0xf] %v458
  %v460 = vld [vmem:[%s366 + $0x84] sm:$0x1]
  %v461 = vsel %vm375, %v325, %v460
  %462 = vst [vmem:[%s366 + $0x84] sm:$0x1] %v461
  %v463 = vld [vmem:[%s366 + $0x88] sm:$0xf]
  %v464 = vsel %vm369, %v332, %v463
  %465 = vst [vmem:[%s366 + $0x88] sm:$0xf] %v464
  %v466 = vld [vmem:[%s366 + $0x8c] sm:$0x1]
  %v467 = vsel %vm375, %v333, %v466
  %468 = vst [vmem:[%s366 + $0x8c] sm:$0x1] %v467
  %v469 = vld [vmem:[#allocation2] sm:$0xf]
  %v470 = vld [vmem:[#allocation2 + $0x8] sm:$0xf]
  %v471 = vld [vmem:[#allocation2 + $0x10] sm:$0xf]
  %v472 = vld [vmem:[#allocation2 + $0x18] sm:$0xf]
  %v473 = vld [vmem:[#allocation2 + $0x20] sm:$0xf]
  %v474 = vld [vmem:[#allocation2 + $0x28] sm:$0xf]
  %v475 = vld [vmem:[#allocation2 + $0x30] sm:$0xf]
  %v476 = vld [vmem:[#allocation2 + $0x38] sm:$0xf]
  %v477 = vld [vmem:[#allocation2 + $0x50] sm:$0xf]
  %v478 = vld [vmem:[#allocation2 + $0x58] sm:$0xf]
  %v479 = vld [vmem:[#allocation2 + $0x60] sm:$0xf]
  %v480 = vld [vmem:[#allocation2 + $0x68] sm:$0xf]
  %v481 = vld [vmem:[#allocation2 + $0x70] sm:$0xf]
  %v482 = vld [vmem:[#allocation2 + $0x78] sm:$0xf]
  %v483 = vld [vmem:[#allocation2 + $0x80] sm:$0xf]
  %v484 = vld [vmem:[#allocation2 + $0x88] sm:$0xf]
  %v485 = vld [vmem:[#allocation2 + $0x4] sm:$0x1]
  %v486 = vld [vmem:[#allocation2 + $0xc] sm:$0x1]
  %v487 = vld [vmem:[#allocation2 + $0x14] sm:$0x1]
  %v488 = vld [vmem:[#allocation2 + $0x1c] sm:$0x1]
  %v489 = vld [vmem:[#allocation2 + $0x24] sm:$0x1]
  %v490 = vld [vmem:[#allocation2 + $0x2c] sm:$0x1]
  %v491 = vld [vmem:[#allocation2 + $0x34] sm:$0x1]
  %v492 = vld [vmem:[#allocation2 + $0x3c] sm:$0x1]
  %v493 = vld [vmem:[#allocation2 + $0x54] sm:$0x1]
  %v494 = vld [vmem:[#allocation2 + $0x5c] sm:$0x1]
  %v495 = vld [vmem:[#allocation2 + $0x64] sm:$0x1]
  %v496 = vld [vmem:[#allocation2 + $0x6c] sm:$0x1]
  %v497 = vld [vmem:[#allocation2 + $0x74] sm:$0x1]
  %v498 = vld [vmem:[#allocation2 + $0x7c] sm:$0x1]
  %v499 = vld [vmem:[#allocation2 + $0x84] sm:$0x1]
  %v500 = vld [vmem:[#allocation2 + $0x8c] sm:$0x1]
  %v501 = vld [vmem:[#allocation2] sm:$0xe]
  %v502 = vld [vmem:[#allocation2 + $0x8] sm:$0xe]
  %v503 = vld [vmem:[#allocation2 + $0x10] sm:$0xe]
  %v504 = vld [vmem:[#allocation2 + $0x18] sm:$0xe]
  %v505 = vld [vmem:[#allocation2 + $0x20] sm:$0xe]
  %v506 = vld [vmem:[#allocation2 + $0x28] sm:$0xe]
  %v507 = vld [vmem:[#allocation2 + $0x30] sm:$0xe]
  %v508 = vld [vmem:[#allocation2 + $0x38] sm:$0xe]
  %v509 = vld [vmem:[#allocation2 + $0x50] sm:$0xe]
  %v510 = vld [vmem:[#allocation2 + $0x58] sm:$0xe]
  %v511 = vld [vmem:[#allocation2 + $0x60] sm:$0xe]
  %v512 = vld [vmem:[#allocation2 + $0x68] sm:$0xe]
  %v513 = vld [vmem:[#allocation2 + $0x70] sm:$0xe]
  %v514 = vld [vmem:[#allocation2 + $0x78] sm:$0xe]
  %v515 = vld [vmem:[#allocation2 + $0x80] sm:$0xe]
  %v516 = vld [vmem:[#allocation2 + $0x88] sm:$0xe]
  %v549 = vunpack.c.l.b16 %v469
  %v550 = vunpack.c.l.b16 %v485
  %v551 = vunpack.c.l.b16 %v470
  %v552 = vunpack.c.l.b16 %v486
  %v553 = vunpack.c.l.b16 %v471
  %v554 = vunpack.c.l.b16 %v487
  %v555 = vunpack.c.l.b16 %v472
  %v556 = vunpack.c.l.b16 %v488
  %v557 = vunpack.c.l.b16 %v473
  %v558 = vunpack.c.l.b16 %v489
  %v559 = vunpack.c.l.b16 %v474
  %v560 = vunpack.c.l.b16 %v490
  %v561 = vunpack.c.l.b16 %v475
  %v562 = vunpack.c.l.b16 %v491
  %v563 = vunpack.c.l.b16 %v476
  %v564 = vunpack.c.l.b16 %v492
  %v565 = vunpack.c.l.b16 %v477
  %v566 = vunpack.c.l.b16 %v493
  %v567 = vunpack.c.l.b16 %v478
  %v568 = vunpack.c.l.b16 %v494
  %v569 = vunpack.c.l.b16 %v479
  %v570 = vunpack.c.l.b16 %v495
  %v571 = vunpack.c.l.b16 %v480
  %v572 = vunpack.c.l.b16 %v496
  %v573 = vunpack.c.l.b16 %v481
  %v574 = vunpack.c.l.b16 %v497
  %v575 = vunpack.c.l.b16 %v482
  %v576 = vunpack.c.l.b16 %v498
  %v577 = vunpack.c.l.b16 %v483
  %v578 = vunpack.c.l.b16 %v499
  %v579 = vunpack.c.l.b16 %v484
  %v580 = vunpack.c.l.b16 %v500
  %v581 = vpack.c.b16 %v550, %v549
  %v582 = vpack.c.b16 %v552, %v551
  %v583 = vpack.c.b16 %v554, %v553
  %v584 = vpack.c.b16 %v556, %v555
  %v585 = vpack.c.b16 %v558, %v557
  %v586 = vpack.c.b16 %v560, %v559
  %v587 = vpack.c.b16 %v562, %v561
  %v588 = vpack.c.b16 %v564, %v563
  %v589 = vpack.c.b16 %v566, %v565
  %v590 = vpack.c.b16 %v568, %v567
  %v591 = vpack.c.b16 %v570, %v569
  %v592 = vpack.c.b16 %v572, %v571
  %v593 = vpack.c.b16 %v574, %v573
  %v594 = vpack.c.b16 %v576, %v575
  %v595 = vpack.c.b16 %v578, %v577
  %v596 = vpack.c.b16 %v580, %v579
  %v598 = vshrl.u32 %v581, 16
  %v600 = vshll.u32 %v581, 16
  %v602 = vrot.slane %v600, 1
  %v603 = vor.u32 %v598, %v602
  %v605 = vshrl.u32 %v582, 16
  %v607 = vshll.u32 %v582, 16
  %v609 = vrot.slane %v607, 1
  %v610 = vor.u32 %v605, %v609
  %v612 = vshrl.u32 %v583, 16
  %v614 = vshll.u32 %v583, 16
  %v616 = vrot.slane %v614, 1
  %v617 = vor.u32 %v612, %v616
  %v619 = vshrl.u32 %v584, 16
  %v621 = vshll.u32 %v584, 16
  %v623 = vrot.slane %v621, 1
  %v624 = vor.u32 %v619, %v623
  %v626 = vshrl.u32 %v585, 16
  %v628 = vshll.u32 %v585, 16
  %v630 = vrot.slane %v628, 1
  %v631 = vor.u32 %v626, %v630
  %v633 = vshrl.u32 %v586, 16
  %v635 = vshll.u32 %v586, 16
  %v637 = vrot.slane %v635, 1
  %v638 = vor.u32 %v633, %v637
  %v640 = vshrl.u32 %v587, 16
  %v642 = vshll.u32 %v587, 16
  %v644 = vrot.slane %v642, 1
  %v645 = vor.u32 %v640, %v644
  %v647 = vshrl.u32 %v588, 16
  %v649 = vshll.u32 %v588, 16
  %v651 = vrot.slane %v649, 1
  %v652 = vor.u32 %v647, %v651
  %v654 = vshrl.u32 %v589, 16
  %v656 = vshll.u32 %v589, 16
  %v658 = vrot.slane %v656, 1
  %v659 = vor.u32 %v654, %v658
  %v661 = vshrl.u32 %v590, 16
  %v663 = vshll.u32 %v590, 16
  %v665 = vrot.slane %v663, 1
  %v666 = vor.u32 %v661, %v665
  %v668 = vshrl.u32 %v591, 16
  %v670 = vshll.u32 %v591, 16
  %v672 = vrot.slane %v670, 1
  %v673 = vor.u32 %v668, %v672
  %v675 = vshrl.u32 %v592, 16
  %v677 = vshll.u32 %v592, 16
  %v679 = vrot.slane %v677, 1
  %v680 = vor.u32 %v675, %v679
  %v682 = vshrl.u32 %v593, 16
  %v684 = vshll.u32 %v593, 16
  %v686 = vrot.slane %v684, 1
  %v687 = vor.u32 %v682, %v686
  %v689 = vshrl.u32 %v594, 16
  %v691 = vshll.u32 %v594, 16
  %v693 = vrot.slane %v691, 1
  %v694 = vor.u32 %v689, %v693
  %v696 = vshrl.u32 %v595, 16
  %v698 = vshll.u32 %v595, 16
  %v700 = vrot.slane %v698, 1
  %v701 = vor.u32 %v696, %v700
  %v703 = vshrl.u32 %v596, 16
  %v705 = vshll.u32 %v596, 16
  %v707 = vrot.slane %v705, 1
  %v708 = vor.u32 %v703, %v707
  %v725 = vunpack.c.l.b16 %v501
  %v726 = vunpack.c.l.b16 %v502
  %v727 = vunpack.c.l.b16 %v503
  %v728 = vunpack.c.l.b16 %v504
  %v729 = vunpack.c.l.b16 %v505
  %v730 = vunpack.c.l.b16 %v506
  %v731 = vunpack.c.l.b16 %v507
  %v732 = vunpack.c.l.b16 %v508
  %v733 = vunpack.c.l.b16 %v509
  %v734 = vunpack.c.l.b16 %v510
  %v735 = vunpack.c.l.b16 %v511
  %v736 = vunpack.c.l.b16 %v512
  %v737 = vunpack.c.l.b16 %v513
  %v738 = vunpack.c.l.b16 %v514
  %v739 = vunpack.c.l.b16 %v515
  %v740 = vunpack.c.l.b16 %v516
  %v741 = vpack.c.b16 %v550, %v725
  %v742 = vpack.c.b16 %v552, %v726
  %v743 = vpack.c.b16 %v554, %v727
  %v744 = vpack.c.b16 %v556, %v728
  %v745 = vpack.c.b16 %v558, %v729
  %v746 = vpack.c.b16 %v560, %v730
  %v747 = vpack.c.b16 %v562, %v731
  %v748 = vpack.c.b16 %v564, %v732
  %v749 = vpack.c.b16 %v566, %v733
  %v750 = vpack.c.b16 %v568, %v734
  %v751 = vpack.c.b16 %v570, %v735
  %v752 = vpack.c.b16 %v572, %v736
  %v753 = vpack.c.b16 %v574, %v737
  %v754 = vpack.c.b16 %v576, %v738
  %v755 = vpack.c.b16 %v578, %v739
  %v756 = vpack.c.b16 %v580, %v740
  %v757 = vrot.slane %v741, 1
  %v758 = vrot.slane %v742, 1
  %v759 = vrot.slane %v743, 1
  %v760 = vrot.slane %v744, 1
  %v761 = vrot.slane %v745, 1
  %v762 = vrot.slane %v746, 1
  %v763 = vrot.slane %v747, 1
  %v764 = vrot.slane %v748, 1
  %v765 = vrot.slane %v749, 1
  %v766 = vrot.slane %v750, 1
  %v767 = vrot.slane %v751, 1
  %v768 = vrot.slane %v752, 1
  %v769 = vrot.slane %v753, 1
  %v770 = vrot.slane %v754, 1
  %v771 = vrot.slane %v755, 1
  %v772 = vrot.slane %v756, 1
  %v773 = vunpack.c.l.b16 %v603
  %v774 = vunpack.c.l.b16 %v757
  %v775 = vunpack.c.l.b16 %v610
  %v776 = vunpack.c.l.b16 %v758
  %v777 = vunpack.c.l.b16 %v617
  %v778 = vunpack.c.l.b16 %v759
  %v779 = vunpack.c.l.b16 %v624
  %v780 = vunpack.c.l.b16 %v760
  %v781 = vunpack.c.l.b16 %v631
  %v782 = vunpack.c.l.b16 %v761
  %v783 = vunpack.c.l.b16 %v638
  %v784 = vunpack.c.l.b16 %v762
  %v785 = vunpack.c.l.b16 %v645
  %v786 = vunpack.c.l.b16 %v763
  %v787 = vunpack.c.l.b16 %v652
  %v788 = vunpack.c.l.b16 %v764
  %v789 = vunpack.c.l.b16 %v659
  %v790 = vunpack.c.l.b16 %v765
  %v791 = vunpack.c.l.b16 %v666
  %v792 = vunpack.c.l.b16 %v766
  %v793 = vunpack.c.l.b16 %v673
  %v794 = vunpack.c.l.b16 %v767
  %v795 = vunpack.c.l.b16 %v680
  %v796 = vunpack.c.l.b16 %v768
  %v797 = vunpack.c.l.b16 %v687
  %v798 = vunpack.c.l.b16 %v769
  %v799 = vunpack.c.l.b16 %v694
  %v800 = vunpack.c.l.b16 %v770
  %v801 = vunpack.c.l.b16 %v701
  %v802 = vunpack.c.l.b16 %v771
  %v803 = vunpack.c.l.b16 %v708
  %v804 = vunpack.c.l.b16 %v772
  %v805 = vld [vmem:[%s3] sm:$0xf]
  %v806 = vld [vmem:[%s3 + $0x4] sm:$0xf]
  %v807 = vld [vmem:[%s3 + $0x8] sm:$0xf]
  %v808 = vld [vmem:[%s3 + $0xc] sm:$0xf]
  %v809 = vld [vmem:[%s3 + $0x10] sm:$0xf]
  %v810 = vld [vmem:[%s3 + $0x14] sm:$0xf]
  %v811 = vld [vmem:[%s3 + $0x18] sm:$0xf]
  %v812 = vld [vmem:[%s3 + $0x1c] sm:$0xf]
  %v813 = vld [vmem:[%s3 + $0x20] sm:$0xf]
  %v814 = vld [vmem:[%s3 + $0x24] sm:$0xf]
  %v815 = vld [vmem:[%s3 + $0x28] sm:$0xf]
  %v816 = vld [vmem:[%s3 + $0x2c] sm:$0xf]
  %v817 = vld [vmem:[%s3 + $0x30] sm:$0xf]
  %v818 = vld [vmem:[%s3 + $0x34] sm:$0xf]
  %v819 = vld [vmem:[%s3 + $0x38] sm:$0xf]
  %v820 = vld [vmem:[%s3 + $0x3c] sm:$0xf]
  %v821 = vld [vmem:[%s3 + $0x40] sm:$0xf]
  %v822 = vld [vmem:[%s3 + $0x44] sm:$0xf]
  %v823 = vld [vmem:[%s3 + $0x48] sm:$0xf]
  %v824 = vld [vmem:[%s3 + $0x4c] sm:$0xf]
  %v825 = vld [vmem:[%s3 + $0x50] sm:$0xf]
  %v826 = vld [vmem:[%s3 + $0x54] sm:$0xf]
  %v827 = vld [vmem:[%s3 + $0x58] sm:$0xf]
  %v828 = vld [vmem:[%s3 + $0x5c] sm:$0xf]
  %v829 = vld [vmem:[%s3 + $0x60] sm:$0xf]
  %v830 = vld [vmem:[%s3 + $0x64] sm:$0xf]
  %v831 = vld [vmem:[%s3 + $0x68] sm:$0xf]
  %v832 = vld [vmem:[%s3 + $0x6c] sm:$0xf]
  %v833 = vld [vmem:[%s3 + $0x70] sm:$0xf]
  %v834 = vld [vmem:[%s3 + $0x74] sm:$0xf]
  %v835 = vld [vmem:[%s3 + $0x78] sm:$0xf]
  %v836 = vld [vmem:[%s3 + $0x7c] sm:$0xf]
  %v837 = vld [vmem:[%s3 + $0x80] sm:$0xf]
  %v838 = vld [vmem:[%s3 + $0x84] sm:$0xf]
  %v839 = vld [vmem:[%s3 + $0x88] sm:$0xf]
  %v840 = vld [vmem:[%s3 + $0x8c] sm:$0xf]
  %v841 = vld [vmem:[%s3 + $0x90] sm:$0xf]
  %v842 = vld [vmem:[%s3 + $0x94] sm:$0xf]
  %v843 = vld [vmem:[%s3 + $0x98] sm:$0xf]
  %v844 = vld [vmem:[%s3 + $0x9c] sm:$0xf]
  %v845 = vld [vmem:[%s3 + $0xa0] sm:$0xf]
  %v846 = vld [vmem:[%s3 + $0xa4] sm:$0xf]
  %v847 = vld [vmem:[%s3 + $0xa8] sm:$0xf]
  %v848 = vld [vmem:[%s3 + $0xac] sm:$0xf]
  %v849 = vld [vmem:[%s3 + $0xb0] sm:$0xf]
  %v850 = vld [vmem:[%s3 + $0xb4] sm:$0xf]
  %v851 = vld [vmem:[%s3 + $0xb8] sm:$0xf]
  %v852 = vld [vmem:[%s3 + $0xbc] sm:$0xf]
  %v853 = vld [vmem:[%s366] sm:$0xf]
  %v854 = vld [vmem:[%s366 + $0x8] sm:$0xf]
  %v855 = vld [vmem:[%s366 + $0x10] sm:$0xf]
  %v856 = vld [vmem:[%s366 + $0x18] sm:$0xf]
  %v857 = vld [vmem:[%s366 + $0x20] sm:$0xf]
  %v858 = vld [vmem:[%s366 + $0x28] sm:$0xf]
  %v859 = vld [vmem:[%s366 + $0x30] sm:$0xf]
  %v860 = vld [vmem:[%s366 + $0x38] sm:$0xf]
  %v861 = vld [vmem:[%s366 + $0x50] sm:$0xf]
  %v862 = vld [vmem:[%s366 + $0x58] sm:$0xf]
  %v863 = vld [vmem:[%s366 + $0x60] sm:$0xf]
  %v864 = vld [vmem:[%s366 + $0x68] sm:$0xf]
  %v865 = vld [vmem:[%s366 + $0x70] sm:$0xf]
  %v866 = vld [vmem:[%s366 + $0x78] sm:$0xf]
  %v867 = vld [vmem:[%s366 + $0x80] sm:$0xf]
  %v868 = vld [vmem:[%s366 + $0x88] sm:$0xf]
  %v869 = vld [vmem:[%s366 + $0x4] sm:$0x1]
  %v870 = vld [vmem:[%s366 + $0xc] sm:$0x1]
  %v871 = vld [vmem:[%s366 + $0x14] sm:$0x1]
  %v872 = vld [vmem:[%s366 + $0x1c] sm:$0x1]
  %v873 = vld [vmem:[%s366 + $0x24] sm:$0x1]
  %v874 = vld [vmem:[%s366 + $0x2c] sm:$0x1]
  %v875 = vld [vmem:[%s366 + $0x34] sm:$0x1]
  %v876 = vld [vmem:[%s366 + $0x3c] sm:$0x1]
  %v877 = vld [vmem:[%s366 + $0x54] sm:$0x1]
  %v878 = vld [vmem:[%s366 + $0x5c] sm:$0x1]
  %v879 = vld [vmem:[%s366 + $0x64] sm:$0x1]
  %v880 = vld [vmem:[%s366 + $0x6c] sm:$0x1]
  %v881 = vld [vmem:[%s366 + $0x74] sm:$0x1]
  %v882 = vld [vmem:[%s366 + $0x7c] sm:$0x1]
  %v883 = vld [vmem:[%s366 + $0x84] sm:$0x1]
  %v884 = vld [vmem:[%s366 + $0x8c] sm:$0x1]
  %v885 = vld [vmem:[%s366] sm:$0xe]
  %v886 = vld [vmem:[%s366 + $0x8] sm:$0xe]
  %v887 = vld [vmem:[%s366 + $0x10] sm:$0xe]
  %v888 = vld [vmem:[%s366 + $0x18] sm:$0xe]
  %v889 = vld [vmem:[%s366 + $0x20] sm:$0xe]
  %v890 = vld [vmem:[%s366 + $0x28] sm:$0xe]
  %v891 = vld [vmem:[%s366 + $0x30] sm:$0xe]
  %v892 = vld [vmem:[%s366 + $0x38] sm:$0xe]
  %v893 = vld [vmem:[%s366 + $0x50] sm:$0xe]
  %v894 = vld [vmem:[%s366 + $0x58] sm:$0xe]
  %v895 = vld [vmem:[%s366 + $0x60] sm:$0xe]
  %v896 = vld [vmem:[%s366 + $0x68] sm:$0xe]
  %v897 = vld [vmem:[%s366 + $0x70] sm:$0xe]
  %v898 = vld [vmem:[%s366 + $0x78] sm:$0xe]
  %v899 = vld [vmem:[%s366 + $0x80] sm:$0xe]
  %v900 = vld [vmem:[%s366 + $0x88] sm:$0xe]
  %v933 = vunpack.c.l.b16 %v853
  %v934 = vunpack.c.l.b16 %v869
  %v935 = vunpack.c.l.b16 %v854
  %v936 = vunpack.c.l.b16 %v870
  %v937 = vunpack.c.l.b16 %v855
  %v938 = vunpack.c.l.b16 %v871
  %v939 = vunpack.c.l.b16 %v856
  %v940 = vunpack.c.l.b16 %v872
  %v941 = vunpack.c.l.b16 %v857
  %v942 = vunpack.c.l.b16 %v873
  %v943 = vunpack.c.l.b16 %v858
  %v944 = vunpack.c.l.b16 %v874
  %v945 = vunpack.c.l.b16 %v859
  %v946 = vunpack.c.l.b16 %v875
  %v947 = vunpack.c.l.b16 %v860
  %v948 = vunpack.c.l.b16 %v876
  %v949 = vunpack.c.l.b16 %v861
  %v950 = vunpack.c.l.b16 %v877
  %v951 = vunpack.c.l.b16 %v862
  %v952 = vunpack.c.l.b16 %v878
  %v953 = vunpack.c.l.b16 %v863
  %v954 = vunpack.c.l.b16 %v879
  %v955 = vunpack.c.l.b16 %v864
  %v956 = vunpack.c.l.b16 %v880
  %v957 = vunpack.c.l.b16 %v865
  %v958 = vunpack.c.l.b16 %v881
  %v959 = vunpack.c.l.b16 %v866
  %v960 = vunpack.c.l.b16 %v882
  %v961 = vunpack.c.l.b16 %v867
  %v962 = vunpack.c.l.b16 %v883
  %v963 = vunpack.c.l.b16 %v868
  %v964 = vunpack.c.l.b16 %v884
  %v965 = vpack.c.b16 %v934, %v933
  %v966 = vpack.c.b16 %v936, %v935
  %v967 = vpack.c.b16 %v938, %v937
  %v968 = vpack.c.b16 %v940, %v939
  %v969 = vpack.c.b16 %v942, %v941
  %v970 = vpack.c.b16 %v944, %v943
  %v971 = vpack.c.b16 %v946, %v945
  %v972 = vpack.c.b16 %v948, %v947
  %v973 = vpack.c.b16 %v950, %v949
  %v974 = vpack.c.b16 %v952, %v951
  %v975 = vpack.c.b16 %v954, %v953
  %v976 = vpack.c.b16 %v956, %v955
  %v977 = vpack.c.b16 %v958, %v957
  %v978 = vpack.c.b16 %v960, %v959
  %v979 = vpack.c.b16 %v962, %v961
  %v980 = vpack.c.b16 %v964, %v963
  %v982 = vshrl.u32 %v965, 16
  %v984 = vshll.u32 %v965, 16
  %v986 = vrot.slane %v984, 1
  %v987 = vor.u32 %v982, %v986
  %v989 = vshrl.u32 %v966, 16
  %v991 = vshll.u32 %v966, 16
  %v993 = vrot.slane %v991, 1
  %v994 = vor.u32 %v989, %v993
  %v996 = vshrl.u32 %v967, 16
  %v998 = vshll.u32 %v967, 16
  %v1000 = vrot.slane %v998, 1
  %v1001 = vor.u32 %v996, %v1000
  %v1003 = vshrl.u32 %v968, 16
  %v1005 = vshll.u32 %v968, 16
  %v1007 = vrot.slane %v1005, 1
  %v1008 = vor.u32 %v1003, %v1007
  %v1010 = vshrl.u32 %v969, 16
  %v1012 = vshll.u32 %v969, 16
  %v1014 = vrot.slane %v1012, 1
  %v1015 = vor.u32 %v1010, %v1014
  %v1017 = vshrl.u32 %v970, 16
  %v1019 = vshll.u32 %v970, 16
  %v1021 = vrot.slane %v1019, 1
  %v1022 = vor.u32 %v1017, %v1021
  %v1024 = vshrl.u32 %v971, 16
  %v1026 = vshll.u32 %v971, 16
  %v1028 = vrot.slane %v1026, 1
  %v1029 = vor.u32 %v1024, %v1028
  %v1031 = vshrl.u32 %v972, 16
  %v1033 = vshll.u32 %v972, 16
  %v1035 = vrot.slane %v1033, 1
  %v1036 = vor.u32 %v1031, %v1035
  %v1038 = vshrl.u32 %v973, 16
  %v1040 = vshll.u32 %v973, 16
  %v1042 = vrot.slane %v1040, 1
  %v1043 = vor.u32 %v1038, %v1042
  %v1045 = vshrl.u32 %v974, 16
  %v1047 = vshll.u32 %v974, 16
  %v1049 = vrot.slane %v1047, 1
  %v1050 = vor.u32 %v1045, %v1049
  %v1052 = vshrl.u32 %v975, 16
  %v1054 = vshll.u32 %v975, 16
  %v1056 = vrot.slane %v1054, 1
  %v1057 = vor.u32 %v1052, %v1056
  %v1059 = vshrl.u32 %v976, 16
  %v1061 = vshll.u32 %v976, 16
  %v1063 = vrot.slane %v1061, 1
  %v1064 = vor.u32 %v1059, %v1063
  %v1066 = vshrl.u32 %v977, 16
  %v1068 = vshll.u32 %v977, 16
  %v1070 = vrot.slane %v1068, 1
  %v1071 = vor.u32 %v1066, %v1070
  %v1073 = vshrl.u32 %v978, 16
  %v1075 = vshll.u32 %v978, 16
  %v1077 = vrot.slane %v1075, 1
  %v1078 = vor.u32 %v1073, %v1077
  %v1080 = vshrl.u32 %v979, 16
  %v1082 = vshll.u32 %v979, 16
  %v1084 = vrot.slane %v1082, 1
  %v1085 = vor.u32 %v1080, %v1084
  %v1087 = vshrl.u32 %v980, 16
  %v1089 = vshll.u32 %v980, 16
  %v1091 = vrot.slane %v1089, 1
  %v1092 = vor.u32 %v1087, %v1091
  %v1109 = vunpack.c.l.b16 %v885
  %v1110 = vunpack.c.l.b16 %v886
  %v1111 = vunpack.c.l.b16 %v887
  %v1112 = vunpack.c.l.b16 %v888
  %v1113 = vunpack.c.l.b16 %v889
  %v1114 = vunpack.c.l.b16 %v890
  %v1115 = vunpack.c.l.b16 %v891
  %v1116 = vunpack.c.l.b16 %v892
  %v1117 = vunpack.c.l.b16 %v893
  %v1118 = vunpack.c.l.b16 %v894
  %v1119 = vunpack.c.l.b16 %v895
  %v1120 = vunpack.c.l.b16 %v896
  %v1121 = vunpack.c.l.b16 %v897
  %v1122 = vunpack.c.l.b16 %v898
  %v1123 = vunpack.c.l.b16 %v899
  %v1124 = vunpack.c.l.b16 %v900
  %v1125 = vpack.c.b16 %v934, %v1109
  %v1126 = vpack.c.b16 %v936, %v1110
  %v1127 = vpack.c.b16 %v938, %v1111
  %v1128 = vpack.c.b16 %v940, %v1112
  %v1129 = vpack.c.b16 %v942, %v1113
  %v1130 = vpack.c.b16 %v944, %v1114
  %v1131 = vpack.c.b16 %v946, %v1115
  %v1132 = vpack.c.b16 %v948, %v1116
  %v1133 = vpack.c.b16 %v950, %v1117
  %v1134 = vpack.c.b16 %v952, %v1118
  %v1135 = vpack.c.b16 %v954, %v1119
  %v1136 = vpack.c.b16 %v956, %v1120
  %v1137 = vpack.c.b16 %v958, %v1121
  %v1138 = vpack.c.b16 %v960, %v1122
  %v1139 = vpack.c.b16 %v962, %v1123
  %v1140 = vpack.c.b16 %v964, %v1124
  %v1141 = vrot.slane %v1125, 1
  %v1142 = vrot.slane %v1126, 1
  %v1143 = vrot.slane %v1127, 1
  %v1144 = vrot.slane %v1128, 1
  %v1145 = vrot.slane %v1129, 1
  %v1146 = vrot.slane %v1130, 1
  %v1147 = vrot.slane %v1131, 1
  %v1148 = vrot.slane %v1132, 1
  %v1149 = vrot.slane %v1133, 1
  %v1150 = vrot.slane %v1134, 1
  %v1151 = vrot.slane %v1135, 1
  %v1152 = vrot.slane %v1136, 1
  %v1153 = vrot.slane %v1137, 1
  %v1154 = vrot.slane %v1138, 1
  %v1155 = vrot.slane %v1139, 1
  %v1156 = vrot.slane %v1140, 1
  %v1157 = vunpack.c.l.b16 %v987
  %v1158 = vunpack.c.l.b16 %v1141
  %v1159 = vunpack.c.l.b16 %v994
  %v1160 = vunpack.c.l.b16 %v1142
  %v1161 = vunpack.c.l.b16 %v1001
  %v1162 = vunpack.c.l.b16 %v1143
  %v1163 = vunpack.c.l.b16 %v1008
  %v1164 = vunpack.c.l.b16 %v1144
  %v1165 = vunpack.c.l.b16 %v1015
  %v1166 = vunpack.c.l.b16 %v1145
  %v1167 = vunpack.c.l.b16 %v1022
  %v1168 = vunpack.c.l.b16 %v1146
  %v1169 = vunpack.c.l.b16 %v1029
  %v1170 = vunpack.c.l.b16 %v1147
  %v1171 = vunpack.c.l.b16 %v1036
  %v1172 = vunpack.c.l.b16 %v1148
  %v1173 = vunpack.c.l.b16 %v1043
  %v1174 = vunpack.c.l.b16 %v1149
  %v1175 = vunpack.c.l.b16 %v1050
  %v1176 = vunpack.c.l.b16 %v1150
  %v1177 = vunpack.c.l.b16 %v1057
  %v1178 = vunpack.c.l.b16 %v1151
  %v1179 = vunpack.c.l.b16 %v1064
  %v1180 = vunpack.c.l.b16 %v1152
  %v1181 = vunpack.c.l.b16 %v1071
  %v1182 = vunpack.c.l.b16 %v1153
  %v1183 = vunpack.c.l.b16 %v1078
  %v1184 = vunpack.c.l.b16 %v1154
  %v1185 = vunpack.c.l.b16 %v1085
  %v1186 = vunpack.c.l.b16 %v1155
  %v1187 = vunpack.c.l.b16 %v1092
  %v1188 = vunpack.c.l.b16 %v1156
  %s1189 = scalar_lea.vmem %s3, 192
  %v1190 = vld [vmem:[%s1189] sm:$0xf]
  %v1191 = vld [vmem:[%s1189 + $0x4] sm:$0xf]
  %v1192 = vld [vmem:[%s1189 + $0x8] sm:$0xf]
  %v1193 = vld [vmem:[%s1189 + $0xc] sm:$0xf]
  %v1194 = vld [vmem:[%s1189 + $0x10] sm:$0xf]
  %v1195 = vld [vmem:[%s1189 + $0x14] sm:$0xf]
  %v1196 = vld [vmem:[%s1189 + $0x18] sm:$0xf]
  %v1197 = vld [vmem:[%s1189 + $0x1c] sm:$0xf]
  %v1198 = vld [vmem:[%s1189 + $0x20] sm:$0xf]
  %v1199 = vld [vmem:[%s1189 + $0x24] sm:$0xf]
  %v1200 = vld [vmem:[%s1189 + $0x28] sm:$0xf]
  %v1201 = vld [vmem:[%s1189 + $0x2c] sm:$0xf]
  %v1202 = vld [vmem:[%s1189 + $0x30] sm:$0xf]
  %v1203 = vld [vmem:[%s1189 + $0x34] sm:$0xf]
  %v1204 = vld [vmem:[%s1189 + $0x38] sm:$0xf]
  %v1205 = vld [vmem:[%s1189 + $0x3c] sm:$0xf]
  %v1206 = vld [vmem:[%s1189 + $0x40] sm:$0xf]
  %v1207 = vld [vmem:[%s1189 + $0x44] sm:$0xf]
  %v1208 = vld [vmem:[%s1189 + $0x48] sm:$0xf]
  %v1209 = vld [vmem:[%s1189 + $0x4c] sm:$0xf]
  %v1210 = vld [vmem:[%s1189 + $0x50] sm:$0xf]
  %v1211 = vld [vmem:[%s1189 + $0x54] sm:$0xf]
  %v1212 = vld [vmem:[%s1189 + $0x58] sm:$0xf]
  %v1213 = vld [vmem:[%s1189 + $0x5c] sm:$0xf]
  %v1214 = vld [vmem:[%s1189 + $0x60] sm:$0xf]
  %v1215 = vld [vmem:[%s1189 + $0x64] sm:$0xf]
  %v1216 = vld [vmem:[%s1189 + $0x68] sm:$0xf]
  %v1217 = vld [vmem:[%s1189 + $0x6c] sm:$0xf]
  %v1218 = vld [vmem:[%s1189 + $0x70] sm:$0xf]
  %v1219 = vld [vmem:[%s1189 + $0x74] sm:$0xf]
  %v1220 = vld [vmem:[%s1189 + $0x78] sm:$0xf]
  %v1221 = vld [vmem:[%s1189 + $0x7c] sm:$0xf]
  %v1222 = vld [vmem:[%s1189 + $0x80] sm:$0xf]
  %v1223 = vld [vmem:[%s1189 + $0x84] sm:$0xf]
  %v1224 = vld [vmem:[%s1189 + $0x88] sm:$0xf]
  %v1225 = vld [vmem:[%s1189 + $0x8c] sm:$0xf]
  %v1226 = vld [vmem:[%s1189 + $0x90] sm:$0xf]
  %v1227 = vld [vmem:[%s1189 + $0x94] sm:$0xf]
  %v1228 = vld [vmem:[%s1189 + $0x98] sm:$0xf]
  %v1229 = vld [vmem:[%s1189 + $0x9c] sm:$0xf]
  %v1230 = vld [vmem:[%s1189 + $0xa0] sm:$0xf]
  %v1231 = vld [vmem:[%s1189 + $0xa4] sm:$0xf]
  %v1232 = vld [vmem:[%s1189 + $0xa8] sm:$0xf]
  %v1233 = vld [vmem:[%s1189 + $0xac] sm:$0xf]
  %v1234 = vld [vmem:[%s1189 + $0xb0] sm:$0xf]
  %v1235 = vld [vmem:[%s1189 + $0xb4] sm:$0xf]
  %v1236 = vld [vmem:[%s1189 + $0xb8] sm:$0xf]
  %v1237 = vld [vmem:[%s1189 + $0xbc] sm:$0xf]
  %v1238 = vpack.c.b16 %v935, %v933
  %v1239 = vpack.c.b16 %v1159, %v1157
  %v1240 = vpack.c.b16 %v1160, %v1158
  %v1241 = vpack.c.b16 %v939, %v937
  %v1242 = vpack.c.b16 %v1163, %v1161
  %v1243 = vpack.c.b16 %v1164, %v1162
  %v1244 = vpack.c.b16 %v943, %v941
  %v1245 = vpack.c.b16 %v1167, %v1165
  %v1246 = vpack.c.b16 %v1168, %v1166
  %v1247 = vpack.c.b16 %v947, %v945
  %v1248 = vpack.c.b16 %v1171, %v1169
  %v1249 = vpack.c.b16 %v1172, %v1170
  %v1250 = vpack.c.b16 %v951, %v949
  %v1251 = vpack.c.b16 %v1175, %v1173
  %v1252 = vpack.c.b16 %v1176, %v1174
  %v1253 = vpack.c.b16 %v955, %v953
  %v1254 = vpack.c.b16 %v1179, %v1177
  %v1255 = vpack.c.b16 %v1180, %v1178
  %v1256 = vpack.c.b16 %v959, %v957
  %v1257 = vpack.c.b16 %v1183, %v1181
  %v1258 = vpack.c.b16 %v1184, %v1182
  %v1259 = vpack.c.b16 %v963, %v961
  %v1260 = vpack.c.b16 %v1187, %v1185
  %v1261 = vpack.c.b16 %v1188, %v1186
  %v1334 = vunpack.c.l.b16 %v1190
  %v1335 = vunpack.c.l.b16 %v1191
  %v1336 = vunpack.c.l.b16 %v1192
  %v1337 = vunpack.c.l.b16 %v1193
  %v1338 = vunpack.c.l.b16 %v1194
  %v1339 = vunpack.c.l.b16 %v1195
  %v1340 = vunpack.c.l.b16 %v1196
  %v1341 = vunpack.c.l.b16 %v1197
  %v1342 = vunpack.c.l.b16 %v1198
  %v1343 = vunpack.c.l.b16 %v1199
  %v1344 = vunpack.c.l.b16 %v1200
  %v1345 = vunpack.c.l.b16 %v1201
  %v1346 = vunpack.c.l.b16 %v1202
  %v1347 = vunpack.c.l.b16 %v1203
  %v1348 = vunpack.c.l.b16 %v1204
  %v1349 = vunpack.c.l.b16 %v1205
  %v1350 = vunpack.c.l.b16 %v1206
  %v1351 = vunpack.c.l.b16 %v1207
  %v1352 = vunpack.c.l.b16 %v1208
  %v1353 = vunpack.c.l.b16 %v1209
  %v1354 = vunpack.c.l.b16 %v1210
  %v1355 = vunpack.c.l.b16 %v1211
  %v1356 = vunpack.c.l.b16 %v1212
  %v1357 = vunpack.c.l.b16 %v1213
  %v1358 = vunpack.c.l.b16 %v1214
  %v1359 = vunpack.c.l.b16 %v1215
  %v1360 = vunpack.c.l.b16 %v1216
  %v1361 = vunpack.c.l.b16 %v1217
  %v1362 = vunpack.c.l.b16 %v1218
  %v1363 = vunpack.c.l.b16 %v1219
  %v1364 = vunpack.c.l.b16 %v1220
  %v1365 = vunpack.c.l.b16 %v1221
  %v1366 = vunpack.c.l.b16 %v1222
  %v1367 = vunpack.c.l.b16 %v1223
  %v1368 = vunpack.c.l.b16 %v1224
  %v1369 = vunpack.c.l.b16 %v1225
  %v1370 = vunpack.c.l.b16 %v1226
  %v1371 = vunpack.c.l.b16 %v1227
  %v1372 = vunpack.c.l.b16 %v1228
  %v1373 = vunpack.c.l.b16 %v1229
  %v1374 = vunpack.c.l.b16 %v1230
  %v1375 = vunpack.c.l.b16 %v1231
  %v1376 = vunpack.c.l.b16 %v1232
  %v1377 = vunpack.c.l.b16 %v1233
  %v1378 = vunpack.c.l.b16 %v1234
  %v1379 = vunpack.c.l.b16 %v1235
  %v1380 = vunpack.c.l.b16 %v1236
  %v1381 = vunpack.c.l.b16 %v1237
  %v1382 = vpack.c.b16 %v1335, %v1334
  %v1383 = vpack.c.b16 %v1337, %v1336
  %v1384 = vpack.c.b16 %v1339, %v1338
  %v1385 = vpack.c.b16 %v1341, %v1340
  %v1386 = vpack.c.b16 %v1343, %v1342
  %v1387 = vpack.c.b16 %v1345, %v1344
  %v1388 = vpack.c.b16 %v1347, %v1346
  %v1389 = vpack.c.b16 %v1349, %v1348
  %v1390 = vpack.c.b16 %v1351, %v1350
  %v1391 = vpack.c.b16 %v1353, %v1352
  %v1392 = vpack.c.b16 %v1355, %v1354
  %v1393 = vpack.c.b16 %v1357, %v1356
  %v1394 = vpack.c.b16 %v1359, %v1358
  %v1395 = vpack.c.b16 %v1361, %v1360
  %v1396 = vpack.c.b16 %v1363, %v1362
  %v1397 = vpack.c.b16 %v1365, %v1364
  %v1398 = vpack.c.b16 %v1367, %v1366
  %v1399 = vpack.c.b16 %v1369, %v1368
  %v1400 = vpack.c.b16 %v1371, %v1370
  %v1401 = vpack.c.b16 %v1373, %v1372
  %v1402 = vpack.c.b16 %v1375, %v1374
  %v1403 = vpack.c.b16 %v1377, %v1376
  %v1404 = vpack.c.b16 %v1379, %v1378
  %v1405 = vpack.c.b16 %v1381, %v1380
  %1430 = vmatprep.subr.bf16.mxu0 0
  %1431 = vmatpush1.bf16.msra.mxu0 %v1389
  %1432 = vmatprep.subr.bf16.mxu0 0
  %1433 = vmatpush1.bf16.msra.mxu0 %v1388
  %1434 = vmatprep.subr.bf16.mxu0 0
  %1435 = vmatpush1.bf16.msra.mxu0 %v1387
  %1436 = vmatprep.subr.bf16.mxu0 0
  %1437 = vmatpush1.bf16.msra.mxu0 %v1386
  %1438 = vmatprep.subr.bf16.mxu0 0
  %1439 = vmatpush1.bf16.msra.mxu0 %v1385
  %1440 = vmatprep.subr.bf16.mxu0 0
  %1441 = vmatpush1.bf16.msra.mxu0 %v1384
  %1442 = vmatprep.subr.bf16.mxu0 0
  %1443 = vmatpush1.bf16.msra.mxu0 %v1383
  %1444 = vmatprep.subr.bf16.mxu0 0
  %1445 = vmatpush1.bf16.msra.mxu0 %v1382
  %1446 = vmatprep.subr.bf16.mxu0 0
  %1447 = vmatpush2.bf16.msra.mxu0 %v1397
  %1448 = vmatprep.subr.bf16.mxu0 0
  %1449 = vmatpush2.bf16.msra.mxu0 %v1396
  %1450 = vmatprep.subr.bf16.mxu0 0
  %1451 = vmatpush2.bf16.msra.mxu0 %v1395
  %1452 = vmatprep.subr.bf16.mxu0 0
  %1453 = vmatpush2.bf16.msra.mxu0 %v1394
  %1454 = vmatprep.subr.bf16.mxu0 0
  %1455 = vmatpush2.bf16.msra.mxu0 %v1393
  %1456 = vmatprep.subr.bf16.mxu0 0
  %1457 = vmatpush2.bf16.msra.mxu0 %v1392
  %1458 = vmatprep.subr.bf16.mxu0 0
  %1459 = vmatpush2.bf16.msra.mxu0 %v1391
  %1460 = vmatprep.subr.bf16.mxu0 0
  %1461 = vmatpush2.bf16.msra.mxu0 %v1390
  %1462 = vmatprep.mubr.bf16.mxu0 %v1239
  %1463 = vmatmul.mubr.bf16.gmra.mxu0 %v1238
  %v1464 = vpop.f32.mrf.mxu0
  %v1465 = vadd.f32 0.0, %v1464
  %v1466 = vpop.f32.mrf.mxu0
  %v1467 = vpop.f32.mrf.mxu0
  %v1468 = vadd.f32 0.0, %v1467
  %v1469 = vpop.f32.mrf.mxu0
  %1470 = vmatprep.mubr.bf16.mxu0 %v1242
  %1471 = vmatmul.mubr.bf16.gmra.mxu0 %v1241
  %v1472 = vpop.f32.mrf.mxu0
  %v1473 = vadd.f32 0.0, %v1472
  %v1474 = vpop.f32.mrf.mxu0
  %v1475 = vpop.f32.mrf.mxu0
  %v1476 = vadd.f32 0.0, %v1475
  %v1477 = vpop.f32.mrf.mxu0
  %1478 = vmatprep.mubr.bf16.mxu0 %v1245
  %1479 = vmatmul.mubr.bf16.gmra.mxu0 %v1244
  %v1480 = vpop.f32.mrf.mxu0
  %v1481 = vadd.f32 0.0, %v1480
  %v1482 = vpop.f32.mrf.mxu0
  %v1483 = vpop.f32.mrf.mxu0
  %v1484 = vadd.f32 0.0, %v1483
  %v1485 = vpop.f32.mrf.mxu0
  %1486 = vmatprep.mubr.bf16.mxu0 %v1248
  %1487 = vmatmul.mubr.bf16.gmra.mxu0 %v1247
  %v1488 = vpop.f32.mrf.mxu0
  %v1489 = vadd.f32 0.0, %v1488
  %v1490 = vpop.f32.mrf.mxu0
  %v1491 = vpop.f32.mrf.mxu0
  %v1492 = vadd.f32 0.0, %v1491
  %v1493 = vpop.f32.mrf.mxu0
  %1494 = vmatprep.mubr.bf16.mxu0 %v1251
  %1495 = vmatmul.mubr.bf16.gmra.mxu0 %v1250
  %v1496 = vpop.f32.mrf.mxu0
  %v1497 = vadd.f32 0.0, %v1496
  %v1498 = vpop.f32.mrf.mxu0
  %v1499 = vpop.f32.mrf.mxu0
  %v1500 = vadd.f32 0.0, %v1499
  %v1501 = vpop.f32.mrf.mxu0
  %1502 = vmatprep.mubr.bf16.mxu0 %v1254
  %1503 = vmatmul.mubr.bf16.gmra.mxu0 %v1253
  %v1504 = vpop.f32.mrf.mxu0
  %v1505 = vadd.f32 0.0, %v1504
  %v1506 = vpop.f32.mrf.mxu0
  %v1507 = vpop.f32.mrf.mxu0
  %v1508 = vadd.f32 0.0, %v1507
  %v1509 = vpop.f32.mrf.mxu0
  %1510 = vmatprep.mubr.bf16.mxu0 %v1257
  %1511 = vmatmul.mubr.bf16.gmra.mxu0 %v1256
  %v1512 = vpop.f32.mrf.mxu0
  %v1513 = vadd.f32 0.0, %v1512
  %v1514 = vpop.f32.mrf.mxu0
  %v1515 = vpop.f32.mrf.mxu0
  %v1516 = vadd.f32 0.0, %v1515
  %v1517 = vpop.f32.mrf.mxu0
  %1518 = vmatprep.mubr.bf16.mxu0 %v1260
  %1519 = vmatmul.mubr.bf16.gmra.mxu0 %v1259
  %v1520 = vpop.f32.mrf.mxu0
  %v1521 = vadd.f32 0.0, %v1520
  %v1522 = vpop.f32.mrf.mxu0
  %v1523 = vpop.f32.mrf.mxu0
  %v1524 = vadd.f32 0.0, %v1523
  %v1525 = vpop.f32.mrf.mxu0
  %1526 = vdwg.mxu0
  %1527 = vmatprep.subr.bf16.mxu0 0
  %1528 = vmatpush1.bf16.msra.mxu0 %v1405
  %1529 = vmatprep.subr.bf16.mxu0 0
  %1530 = vmatpush1.bf16.msra.mxu0 %v1404
  %1531 = vmatprep.subr.bf16.mxu0 0
  %1532 = vmatpush1.bf16.msra.mxu0 %v1403
  %1533 = vmatprep.subr.bf16.mxu0 0
  %1534 = vmatpush1.bf16.msra.mxu0 %v1402
  %1535 = vmatprep.subr.bf16.mxu0 0
  %1536 = vmatpush1.bf16.msra.mxu0 %v1401
  %1537 = vmatprep.subr.bf16.mxu0 0
  %1538 = vmatpush1.bf16.msra.mxu0 %v1400
  %1539 = vmatprep.subr.bf16.mxu0 0
  %1540 = vmatpush1.bf16.msra.mxu0 %v1399
  %1541 = vmatprep.subr.bf16.mxu0 0
  %1542 = vmatpush1.bf16.msra.mxu0 %v1398
  %1543 = vmatprep.subr.bf16.mxu0 0
  %1544 = vmatpush2.bf16.msra.mxu0 0
  %1545 = vmatprep.subr.bf16.mxu0 0
  %1546 = vmatpush2.bf16.msra.mxu0 0
  %1547 = vmatprep.subr.bf16.mxu0 0
  %1548 = vmatpush2.bf16.msra.mxu0 0
  %1549 = vmatprep.subr.bf16.mxu0 0
  %1550 = vmatpush2.bf16.msra.mxu0 0
  %1551 = vmatprep.subr.bf16.mxu0 0
  %1552 = vmatpush2.bf16.msra.mxu0 0
  %1553 = vmatprep.subr.bf16.mxu0 0
  %1554 = vmatpush2.bf16.msra.mxu0 0
  %1555 = vmatprep.subr.bf16.mxu0 0
  %1556 = vmatpush2.bf16.msra.mxu0 0
  %1557 = vmatprep.subr.bf16.mxu0 0
  %1558 = vmatpush2.bf16.msra.mxu0 0
  %1559 = vmatprep.mubr.bf16.mxu0 0
  %1560 = vmatmul.mubr.bf16.gmra.mxu0 %v1240
  %v1561 = vpop.f32.mrf.mxu0
  %v1562 = vadd.f32 %v1465, %v1561
  %v1563 = vpop.f32.mrf.mxu0
  %v1564 = vpop.f32.mrf.mxu0
  %v1565 = vadd.f32 %v1468, %v1564
  %v1566 = vpop.f32.mrf.mxu0
  %1567 = vmatprep.mubr.bf16.mxu0 0
  %1568 = vmatmul.mubr.bf16.gmra.mxu0 %v1243
  %v1569 = vpop.f32.mrf.mxu0
  %v1570 = vadd.f32 %v1473, %v1569
  %v1571 = vpop.f32.mrf.mxu0
  %v1572 = vpop.f32.mrf.mxu0
  %v1573 = vadd.f32 %v1476, %v1572
  %v1574 = vpop.f32.mrf.mxu0
  %1575 = vmatprep.mubr.bf16.mxu0 0
  %1576 = vmatmul.mubr.bf16.gmra.mxu0 %v1246
  %v1577 = vpop.f32.mrf.mxu0
  %v1578 = vadd.f32 %v1481, %v1577
  %v1579 = vpop.f32.mrf.mxu0
  %v1580 = vpop.f32.mrf.mxu0
  %v1581 = vadd.f32 %v1484, %v1580
  %v1582 = vpop.f32.mrf.mxu0
  %1583 = vmatprep.mubr.bf16.mxu0 0
  %1584 = vmatmul.mubr.bf16.gmra.mxu0 %v1249
  %v1585 = vpop.f32.mrf.mxu0
  %v1586 = vadd.f32 %v1489, %v1585
  %v1587 = vpop.f32.mrf.mxu0
  %v1588 = vpop.f32.mrf.mxu0
  %v1589 = vadd.f32 %v1492, %v1588
  %v1590 = vpop.f32.mrf.mxu0
  %1591 = vmatprep.mubr.bf16.mxu0 0
  %1592 = vmatmul.mubr.bf16.gmra.mxu0 %v1252
  %v1593 = vpop.f32.mrf.mxu0
  %v1594 = vadd.f32 %v1497, %v1593
  %v1595 = vpop.f32.mrf.mxu0
  %v1596 = vpop.f32.mrf.mxu0
  %v1597 = vadd.f32 %v1500, %v1596
  %v1598 = vpop.f32.mrf.mxu0
  %1599 = vmatprep.mubr.bf16.mxu0 0
  %1600 = vmatmul.mubr.bf16.gmra.mxu0 %v1255
  %v1601 = vpop.f32.mrf.mxu0
  %v1602 = vadd.f32 %v1505, %v1601
  %v1603 = vpop.f32.mrf.mxu0
  %v1604 = vpop.f32.mrf.mxu0
  %v1605 = vadd.f32 %v1508, %v1604
  %v1606 = vpop.f32.mrf.mxu0
  %1607 = vmatprep.mubr.bf16.mxu0 0
  %1608 = vmatmul.mubr.bf16.gmra.mxu0 %v1258
  %v1609 = vpop.f32.mrf.mxu0
  %v1610 = vadd.f32 %v1513, %v1609
  %v1611 = vpop.f32.mrf.mxu0
  %v1612 = vpop.f32.mrf.mxu0
  %v1613 = vadd.f32 %v1516, %v1612
  %v1614 = vpop.f32.mrf.mxu0
  %1615 = vmatprep.mubr.bf16.mxu0 0
  %1616 = vmatmul.mubr.bf16.gmra.mxu0 %v1261
  %v1617 = vpop.f32.mrf.mxu0
  %v1618 = vadd.f32 %v1521, %v1617
  %v1619 = vpop.f32.mrf.mxu0
  %v1620 = vpop.f32.mrf.mxu0
  %v1621 = vadd.f32 %v1524, %v1620
  %v1622 = vpop.f32.mrf.mxu0
  %1623 = vdwg.mxu0
  %v1624 = vpack.c.b16 %v551, %v549
  %v1625 = vpack.c.b16 %v775, %v773
  %v1626 = vpack.c.b16 %v776, %v774
  %v1627 = vpack.c.b16 %v555, %v553
  %v1628 = vpack.c.b16 %v779, %v777
  %v1629 = vpack.c.b16 %v780, %v778
  %v1630 = vpack.c.b16 %v559, %v557
  %v1631 = vpack.c.b16 %v783, %v781
  %v1632 = vpack.c.b16 %v784, %v782
  %v1633 = vpack.c.b16 %v563, %v561
  %v1634 = vpack.c.b16 %v787, %v785
  %v1635 = vpack.c.b16 %v788, %v786
  %v1636 = vpack.c.b16 %v567, %v565
  %v1637 = vpack.c.b16 %v791, %v789
  %v1638 = vpack.c.b16 %v792, %v790
  %v1639 = vpack.c.b16 %v571, %v569
  %v1640 = vpack.c.b16 %v795, %v793
  %v1641 = vpack.c.b16 %v796, %v794
  %v1642 = vpack.c.b16 %v575, %v573
  %v1643 = vpack.c.b16 %v799, %v797
  %v1644 = vpack.c.b16 %v800, %v798
  %v1645 = vpack.c.b16 %v579, %v577
  %v1646 = vpack.c.b16 %v803, %v801
  %v1647 = vpack.c.b16 %v804, %v802
  %v1720 = vunpack.c.l.b16 %v805
  %v1721 = vunpack.c.l.b16 %v806
  %v1722 = vunpack.c.l.b16 %v807
  %v1723 = vunpack.c.l.b16 %v808
  %v1724 = vunpack.c.l.b16 %v809
  %v1725 = vunpack.c.l.b16 %v810
  %v1726 = vunpack.c.l.b16 %v811
  %v1727 = vunpack.c.l.b16 %v812
  %v1728 = vunpack.c.l.b16 %v813
  %v1729 = vunpack.c.l.b16 %v814
  %v1730 = vunpack.c.l.b16 %v815
  %v1731 = vunpack.c.l.b16 %v816
  %v1732 = vunpack.c.l.b16 %v817
  %v1733 = vunpack.c.l.b16 %v818
  %v1734 = vunpack.c.l.b16 %v819
  %v1735 = vunpack.c.l.b16 %v820
  %v1736 = vunpack.c.l.b16 %v821
  %v1737 = vunpack.c.l.b16 %v822
  %v1738 = vunpack.c.l.b16 %v823
  %v1739 = vunpack.c.l.b16 %v824
  %v1740 = vunpack.c.l.b16 %v825
  %v1741 = vunpack.c.l.b16 %v826
  %v1742 = vunpack.c.l.b16 %v827
  %v1743 = vunpack.c.l.b16 %v828
  %v1744 = vunpack.c.l.b16 %v829
  %v1745 = vunpack.c.l.b16 %v830
  %v1746 = vunpack.c.l.b16 %v831
  %v1747 = vunpack.c.l.b16 %v832
  %v1748 = vunpack.c.l.b16 %v833
  %v1749 = vunpack.c.l.b16 %v834
  %v1750 = vunpack.c.l.b16 %v835
  %v1751 = vunpack.c.l.b16 %v836
  %v1752 = vunpack.c.l.b16 %v837
  %v1753 = vunpack.c.l.b16 %v838
  %v1754 = vunpack.c.l.b16 %v839
  %v1755 = vunpack.c.l.b16 %v840
  %v1756 = vunpack.c.l.b16 %v841
  %v1757 = vunpack.c.l.b16 %v842
  %v1758 = vunpack.c.l.b16 %v843
  %v1759 = vunpack.c.l.b16 %v844
  %v1760 = vunpack.c.l.b16 %v845
  %v1761 = vunpack.c.l.b16 %v846
  %v1762 = vunpack.c.l.b16 %v847
  %v1763 = vunpack.c.l.b16 %v848
  %v1764 = vunpack.c.l.b16 %v849
  %v1765 = vunpack.c.l.b16 %v850
  %v1766 = vunpack.c.l.b16 %v851
  %v1767 = vunpack.c.l.b16 %v852
  %v1768 = vpack.c.b16 %v1721, %v1720
  %v1769 = vpack.c.b16 %v1723, %v1722
  %v1770 = vpack.c.b16 %v1725, %v1724
  %v1771 = vpack.c.b16 %v1727, %v1726
  %v1772 = vpack.c.b16 %v1729, %v1728
  %v1773 = vpack.c.b16 %v1731, %v1730
  %v1774 = vpack.c.b16 %v1733, %v1732
  %v1775 = vpack.c.b16 %v1735, %v1734
  %v1776 = vpack.c.b16 %v1737, %v1736
  %v1777 = vpack.c.b16 %v1739, %v1738
  %v1778 = vpack.c.b16 %v1741, %v1740
  %v1779 = vpack.c.b16 %v1743, %v1742
  %v1780 = vpack.c.b16 %v1745, %v1744
  %v1781 = vpack.c.b16 %v1747, %v1746
  %v1782 = vpack.c.b16 %v1749, %v1748
  %v1783 = vpack.c.b16 %v1751, %v1750
  %v1784 = vpack.c.b16 %v1753, %v1752
  %v1785 = vpack.c.b16 %v1755, %v1754
  %v1786 = vpack.c.b16 %v1757, %v1756
  %v1787 = vpack.c.b16 %v1759, %v1758
  %v1788 = vpack.c.b16 %v1761, %v1760
  %v1789 = vpack.c.b16 %v1763, %v1762
  %v1790 = vpack.c.b16 %v1765, %v1764
  %v1791 = vpack.c.b16 %v1767, %v1766
  %1816 = vmatprep.subr.bf16.mxu0 0
  %1817 = vmatpush1.bf16.msra.mxu0 %v1775
  %1818 = vmatprep.subr.bf16.mxu0 0
  %1819 = vmatpush1.bf16.msra.mxu0 %v1774
  %1820 = vmatprep.subr.bf16.mxu0 0
  %1821 = vmatpush1.bf16.msra.mxu0 %v1773
  %1822 = vmatprep.subr.bf16.mxu0 0
  %1823 = vmatpush1.bf16.msra.mxu0 %v1772
  %1824 = vmatprep.subr.bf16.mxu0 0
  %1825 = vmatpush1.bf16.msra.mxu0 %v1771
  %1826 = vmatprep.subr.bf16.mxu0 0
  %1827 = vmatpush1.bf16.msra.mxu0 %v1770
  %1828 = vmatprep.subr.bf16.mxu0 0
  %1829 = vmatpush1.bf16.msra.mxu0 %v1769
  %1830 = vmatprep.subr.bf16.mxu0 0
  %1831 = vmatpush1.bf16.msra.mxu0 %v1768
  %1832 = vmatprep.subr.bf16.mxu0 0
  %1833 = vmatpush2.bf16.msra.mxu0 %v1783
  %1834 = vmatprep.subr.bf16.mxu0 0
  %1835 = vmatpush2.bf16.msra.mxu0 %v1782
  %1836 = vmatprep.subr.bf16.mxu0 0
  %1837 = vmatpush2.bf16.msra.mxu0 %v1781
  %1838 = vmatprep.subr.bf16.mxu0 0
  %1839 = vmatpush2.bf16.msra.mxu0 %v1780
  %1840 = vmatprep.subr.bf16.mxu0 0
  %1841 = vmatpush2.bf16.msra.mxu0 %v1779
  %1842 = vmatprep.subr.bf16.mxu0 0
  %1843 = vmatpush2.bf16.msra.mxu0 %v1778
  %1844 = vmatprep.subr.bf16.mxu0 0
  %1845 = vmatpush2.bf16.msra.mxu0 %v1777
  %1846 = vmatprep.subr.bf16.mxu0 0
  %1847 = vmatpush2.bf16.msra.mxu0 %v1776
  %1848 = vmatprep.mubr.bf16.mxu0 %v1625
  %1849 = vmatmul.mubr.bf16.gmra.mxu0 %v1624
  %v1850 = vpop.f32.mrf.mxu0
  %v1851 = vadd.f32 %v1562, %v1850
  %v1852 = vpop.f32.mrf.mxu0
  %v1853 = vpop.f32.mrf.mxu0
  %v1854 = vadd.f32 %v1565, %v1853
  %v1855 = vpop.f32.mrf.mxu0
  %1856 = vmatprep.mubr.bf16.mxu0 %v1628
  %1857 = vmatmul.mubr.bf16.gmra.mxu0 %v1627
  %v1858 = vpop.f32.mrf.mxu0
  %v1859 = vadd.f32 %v1570, %v1858
  %v1860 = vpop.f32.mrf.mxu0
  %v1861 = vpop.f32.mrf.mxu0
  %v1862 = vadd.f32 %v1573, %v1861
  %v1863 = vpop.f32.mrf.mxu0
  %1864 = vmatprep.mubr.bf16.mxu0 %v1631
  %1865 = vmatmul.mubr.bf16.gmra.mxu0 %v1630
  %v1866 = vpop.f32.mrf.mxu0
  %v1867 = vadd.f32 %v1578, %v1866
  %v1868 = vpop.f32.mrf.mxu0
  %v1869 = vpop.f32.mrf.mxu0
  %v1870 = vadd.f32 %v1581, %v1869
  %v1871 = vpop.f32.mrf.mxu0
  %1872 = vmatprep.mubr.bf16.mxu0 %v1634
  %1873 = vmatmul.mubr.bf16.gmra.mxu0 %v1633
  %v1874 = vpop.f32.mrf.mxu0
  %v1875 = vadd.f32 %v1586, %v1874
  %v1876 = vpop.f32.mrf.mxu0
  %v1877 = vpop.f32.mrf.mxu0
  %v1878 = vadd.f32 %v1589, %v1877
  %v1879 = vpop.f32.mrf.mxu0
  %1880 = vmatprep.mubr.bf16.mxu0 %v1637
  %1881 = vmatmul.mubr.bf16.gmra.mxu0 %v1636
  %v1882 = vpop.f32.mrf.mxu0
  %v1883 = vadd.f32 %v1594, %v1882
  %v1884 = vpop.f32.mrf.mxu0
  %v1885 = vpop.f32.mrf.mxu0
  %v1886 = vadd.f32 %v1597, %v1885
  %v1887 = vpop.f32.mrf.mxu0
  %1888 = vmatprep.mubr.bf16.mxu0 %v1640
  %1889 = vmatmul.mubr.bf16.gmra.mxu0 %v1639
  %v1890 = vpop.f32.mrf.mxu0
  %v1891 = vadd.f32 %v1602, %v1890
  %v1892 = vpop.f32.mrf.mxu0
  %v1893 = vpop.f32.mrf.mxu0
  %v1894 = vadd.f32 %v1605, %v1893
  %v1895 = vpop.f32.mrf.mxu0
  %1896 = vmatprep.mubr.bf16.mxu0 %v1643
  %1897 = vmatmul.mubr.bf16.gmra.mxu0 %v1642
  %v1898 = vpop.f32.mrf.mxu0
  %v1899 = vadd.f32 %v1610, %v1898
  %v1900 = vpop.f32.mrf.mxu0
  %v1901 = vpop.f32.mrf.mxu0
  %v1902 = vadd.f32 %v1613, %v1901
  %v1903 = vpop.f32.mrf.mxu0
  %1904 = vmatprep.mubr.bf16.mxu0 %v1646
  %1905 = vmatmul.mubr.bf16.gmra.mxu0 %v1645
  %v1906 = vpop.f32.mrf.mxu0
  %v1907 = vadd.f32 %v1618, %v1906
  %v1908 = vpop.f32.mrf.mxu0
  %v1909 = vpop.f32.mrf.mxu0
  %v1910 = vadd.f32 %v1621, %v1909
  %v1911 = vpop.f32.mrf.mxu0
  %1912 = vdwg.mxu0
  %1913 = vmatprep.subr.bf16.mxu0 0
  %1914 = vmatpush1.bf16.msra.mxu0 %v1791
  %1915 = vmatprep.subr.bf16.mxu0 0
  %1916 = vmatpush1.bf16.msra.mxu0 %v1790
  %1917 = vmatprep.subr.bf16.mxu0 0
  %1918 = vmatpush1.bf16.msra.mxu0 %v1789
  %1919 = vmatprep.subr.bf16.mxu0 0
  %1920 = vmatpush1.bf16.msra.mxu0 %v1788
  %1921 = vmatprep.subr.bf16.mxu0 0
  %1922 = vmatpush1.bf16.msra.mxu0 %v1787
  %1923 = vmatprep.subr.bf16.mxu0 0
  %1924 = vmatpush1.bf16.msra.mxu0 %v1786
  %1925 = vmatprep.subr.bf16.mxu0 0
  %1926 = vmatpush1.bf16.msra.mxu0 %v1785
  %1927 = vmatprep.subr.bf16.mxu0 0
  %1928 = vmatpush1.bf16.msra.mxu0 %v1784
  %1929 = vmatprep.subr.bf16.mxu0 0
  %1930 = vmatpush2.bf16.msra.mxu0 0
  %1931 = vmatprep.subr.bf16.mxu0 0
  %1932 = vmatpush2.bf16.msra.mxu0 0
  %1933 = vmatprep.subr.bf16.mxu0 0
  %1934 = vmatpush2.bf16.msra.mxu0 0
  %1935 = vmatprep.subr.bf16.mxu0 0
  %1936 = vmatpush2.bf16.msra.mxu0 0
  %1937 = vmatprep.subr.bf16.mxu0 0
  %1938 = vmatpush2.bf16.msra.mxu0 0
  %1939 = vmatprep.subr.bf16.mxu0 0
  %1940 = vmatpush2.bf16.msra.mxu0 0
  %1941 = vmatprep.subr.bf16.mxu0 0
  %1942 = vmatpush2.bf16.msra.mxu0 0
  %1943 = vmatprep.subr.bf16.mxu0 0
  %1944 = vmatpush2.bf16.msra.mxu0 0
  %1945 = vmatprep.mubr.bf16.mxu0 0
  %1946 = vmatmul.mubr.bf16.gmra.mxu0 %v1626
  %v1947 = vpop.f32.mrf.mxu0
  %v1948 = vadd.f32 %v1851, %v1947
  %v1949 = vpop.f32.mrf.mxu0
  %v1950 = vpop.f32.mrf.mxu0
  %v1951 = vadd.f32 %v1854, %v1950
  %v1952 = vpop.f32.mrf.mxu0
  %1953 = vmatprep.mubr.bf16.mxu0 0
  %1954 = vmatmul.mubr.bf16.gmra.mxu0 %v1629
  %v1955 = vpop.f32.mrf.mxu0
  %v1956 = vadd.f32 %v1859, %v1955
  %v1957 = vpop.f32.mrf.mxu0
  %v1958 = vpop.f32.mrf.mxu0
  %v1959 = vadd.f32 %v1862, %v1958
  %v1960 = vpop.f32.mrf.mxu0
  %1961 = vmatprep.mubr.bf16.mxu0 0
  %1962 = vmatmul.mubr.bf16.gmra.mxu0 %v1632
  %v1963 = vpop.f32.mrf.mxu0
  %v1964 = vadd.f32 %v1867, %v1963
  %v1965 = vpop.f32.mrf.mxu0
  %v1966 = vpop.f32.mrf.mxu0
  %v1967 = vadd.f32 %v1870, %v1966
  %v1968 = vpop.f32.mrf.mxu0
  %1969 = vmatprep.mubr.bf16.mxu0 0
  %1970 = vmatmul.mubr.bf16.gmra.mxu0 %v1635
  %v1971 = vpop.f32.mrf.mxu0
  %v1972 = vadd.f32 %v1875, %v1971
  %v1973 = vpop.f32.mrf.mxu0
  %v1974 = vpop.f32.mrf.mxu0
  %v1975 = vadd.f32 %v1878, %v1974
  %v1976 = vpop.f32.mrf.mxu0
  %1977 = vmatprep.mubr.bf16.mxu0 0
  %1978 = vmatmul.mubr.bf16.gmra.mxu0 %v1638
  %v1979 = vpop.f32.mrf.mxu0
  %v1980 = vadd.f32 %v1883, %v1979
  %v1981 = vpop.f32.mrf.mxu0
  %v1982 = vpop.f32.mrf.mxu0
  %v1983 = vadd.f32 %v1886, %v1982
  %v1984 = vpop.f32.mrf.mxu0
  %1985 = vmatprep.mubr.bf16.mxu0 0
  %1986 = vmatmul.mubr.bf16.gmra.mxu0 %v1641
  %v1987 = vpop.f32.mrf.mxu0
  %v1988 = vadd.f32 %v1891, %v1987
  %v1989 = vpop.f32.mrf.mxu0
  %v1990 = vpop.f32.mrf.mxu0
  %v1991 = vadd.f32 %v1894, %v1990
  %v1992 = vpop.f32.mrf.mxu0
  %1993 = vmatprep.mubr.bf16.mxu0 0
  %1994 = vmatmul.mubr.bf16.gmra.mxu0 %v1644
  %v1995 = vpop.f32.mrf.mxu0
  %v1996 = vadd.f32 %v1899, %v1995
  %v1997 = vpop.f32.mrf.mxu0
  %v1998 = vpop.f32.mrf.mxu0
  %v1999 = vadd.f32 %v1902, %v1998
  %v2000 = vpop.f32.mrf.mxu0
  %2001 = vmatprep.mubr.bf16.mxu0 0
  %2002 = vmatmul.mubr.bf16.gmra.mxu0 %v1647
  %v2003 = vpop.f32.mrf.mxu0
  %v2004 = vadd.f32 %v1907, %v2003
  %v2005 = vpop.f32.mrf.mxu0
  %v2006 = vpop.f32.mrf.mxu0
  %v2007 = vadd.f32 %v1910, %v2006
  %v2008 = vpop.f32.mrf.mxu0
  %2009 = vdwg.mxu0
  %s2010 = scalar_lea.vmem [#allocation2], 16
  %v2011 = vld [vmem:[%s2010] sm:$0xf]
  %v2012 = vld [vmem:[%s2010 + $0x8] sm:$0xf]
  %v2013 = vld [vmem:[%s2010 + $0x10] sm:$0xf]
  %v2014 = vld [vmem:[%s2010 + $0x18] sm:$0xf]
  %v2015 = vld [vmem:[%s2010 + $0x20] sm:$0xf]
  %v2016 = vld [vmem:[%s2010 + $0x28] sm:$0xf]
  %v2017 = vld [vmem:[%s2010 + $0x30] sm:$0xf]
  %v2018 = vld [vmem:[%s2010 + $0x38] sm:$0xf]
  %v2019 = vld [vmem:[%s2010 + $0x50] sm:$0xf]
  %v2020 = vld [vmem:[%s2010 + $0x58] sm:$0xf]
  %v2021 = vld [vmem:[%s2010 + $0x60] sm:$0xf]
  %v2022 = vld [vmem:[%s2010 + $0x68] sm:$0xf]
  %v2023 = vld [vmem:[%s2010 + $0x70] sm:$0xf]
  %v2024 = vld [vmem:[%s2010 + $0x78] sm:$0xf]
  %v2025 = vld [vmem:[%s2010 + $0x80] sm:$0xf]
  %v2026 = vld [vmem:[%s2010 + $0x88] sm:$0xf]
  %v2027 = vld [vmem:[%s2010 + $0x4] sm:$0x1]
  %v2028 = vld [vmem:[%s2010 + $0xc] sm:$0x1]
  %v2029 = vld [vmem:[%s2010 + $0x14] sm:$0x1]
  %v2030 = vld [vmem:[%s2010 + $0x1c] sm:$0x1]
  %v2031 = vld [vmem:[%s2010 + $0x24] sm:$0x1]
  %v2032 = vld [vmem:[%s2010 + $0x2c] sm:$0x1]
  %v2033 = vld [vmem:[%s2010 + $0x34] sm:$0x1]
  %v2034 = vld [vmem:[%s2010 + $0x3c] sm:$0x1]
  %v2035 = vld [vmem:[%s2010 + $0x54] sm:$0x1]
  %v2036 = vld [vmem:[%s2010 + $0x5c] sm:$0x1]
  %v2037 = vld [vmem:[%s2010 + $0x64] sm:$0x1]
  %v2038 = vld [vmem:[%s2010 + $0x6c] sm:$0x1]
  %v2039 = vld [vmem:[%s2010 + $0x74] sm:$0x1]
  %v2040 = vld [vmem:[%s2010 + $0x7c] sm:$0x1]
  %v2041 = vld [vmem:[%s2010 + $0x84] sm:$0x1]
  %v2042 = vld [vmem:[%s2010 + $0x8c] sm:$0x1]
  %v2043 = vld [vmem:[%s2010] sm:$0xe]
  %v2044 = vld [vmem:[%s2010 + $0x8] sm:$0xe]
  %v2045 = vld [vmem:[%s2010 + $0x10] sm:$0xe]
  %v2046 = vld [vmem:[%s2010 + $0x18] sm:$0xe]
  %v2047 = vld [vmem:[%s2010 + $0x20] sm:$0xe]
  %v2048 = vld [vmem:[%s2010 + $0x28] sm:$0xe]
  %v2049 = vld [vmem:[%s2010 + $0x30] sm:$0xe]
  %v2050 = vld [vmem:[%s2010 + $0x38] sm:$0xe]
  %v2051 = vld [vmem:[%s2010 + $0x50] sm:$0xe]
  %v2052 = vld [vmem:[%s2010 + $0x58] sm:$0xe]
  %v2053 = vld [vmem:[%s2010 + $0x60] sm:$0xe]
  %v2054 = vld [vmem:[%s2010 + $0x68] sm:$0xe]
  %v2055 = vld [vmem:[%s2010 + $0x70] sm:$0xe]
  %v2056 = vld [vmem:[%s2010 + $0x78] sm:$0xe]
  %v2057 = vld [vmem:[%s2010 + $0x80] sm:$0xe]
  %v2058 = vld [vmem:[%s2010 + $0x88] sm:$0xe]
  %v2091 = vunpack.c.l.b16 %v2011
  %v2092 = vunpack.c.l.b16 %v2027
  %v2093 = vunpack.c.l.b16 %v2012
  %v2094 = vunpack.c.l.b16 %v2028
  %v2095 = vunpack.c.l.b16 %v2013
  %v2096 = vunpack.c.l.b16 %v2029
  %v2097 = vunpack.c.l.b16 %v2014
  %v2098 = vunpack.c.l.b16 %v2030
  %v2099 = vunpack.c.l.b16 %v2015
  %v2100 = vunpack.c.l.b16 %v2031
  %v2101 = vunpack.c.l.b16 %v2016
  %v2102 = vunpack.c.l.b16 %v2032
  %v2103 = vunpack.c.l.b16 %v2017
  %v2104 = vunpack.c.l.b16 %v2033
  %v2105 = vunpack.c.l.b16 %v2018
  %v2106 = vunpack.c.l.b16 %v2034
  %v2107 = vunpack.c.l.b16 %v2019
  %v2108 = vunpack.c.l.b16 %v2035
  %v2109 = vunpack.c.l.b16 %v2020
  %v2110 = vunpack.c.l.b16 %v2036
  %v2111 = vunpack.c.l.b16 %v2021
  %v2112 = vunpack.c.l.b16 %v2037
  %v2113 = vunpack.c.l.b16 %v2022
  %v2114 = vunpack.c.l.b16 %v2038
  %v2115 = vunpack.c.l.b16 %v2023
  %v2116 = vunpack.c.l.b16 %v2039
  %v2117 = vunpack.c.l.b16 %v2024
  %v2118 = vunpack.c.l.b16 %v2040
  %v2119 = vunpack.c.l.b16 %v2025
  %v2120 = vunpack.c.l.b16 %v2041
  %v2121 = vunpack.c.l.b16 %v2026
  %v2122 = vunpack.c.l.b16 %v2042
  %v2123 = vpack.c.b16 %v2092, %v2091
  %v2124 = vpack.c.b16 %v2094, %v2093
  %v2125 = vpack.c.b16 %v2096, %v2095
  %v2126 = vpack.c.b16 %v2098, %v2097
  %v2127 = vpack.c.b16 %v2100, %v2099
  %v2128 = vpack.c.b16 %v2102, %v2101
  %v2129 = vpack.c.b16 %v2104, %v2103
  %v2130 = vpack.c.b16 %v2106, %v2105
  %v2131 = vpack.c.b16 %v2108, %v2107
  %v2132 = vpack.c.b16 %v2110, %v2109
  %v2133 = vpack.c.b16 %v2112, %v2111
  %v2134 = vpack.c.b16 %v2114, %v2113
  %v2135 = vpack.c.b16 %v2116, %v2115
  %v2136 = vpack.c.b16 %v2118, %v2117
  %v2137 = vpack.c.b16 %v2120, %v2119
  %v2138 = vpack.c.b16 %v2122, %v2121
  %v2140 = vshrl.u32 %v2123, 16
  %v2142 = vshll.u32 %v2123, 16
  %v2144 = vrot.slane %v2142, 1
  %v2145 = vor.u32 %v2140, %v2144
  %v2147 = vshrl.u32 %v2124, 16
  %v2149 = vshll.u32 %v2124, 16
  %v2151 = vrot.slane %v2149, 1
  %v2152 = vor.u32 %v2147, %v2151
  %v2154 = vshrl.u32 %v2125, 16
  %v2156 = vshll.u32 %v2125, 16
  %v2158 = vrot.slane %v2156, 1
  %v2159 = vor.u32 %v2154, %v2158
  %v2161 = vshrl.u32 %v2126, 16
  %v2163 = vshll.u32 %v2126, 16
  %v2165 = vrot.slane %v2163, 1
  %v2166 = vor.u32 %v2161, %v2165
  %v2168 = vshrl.u32 %v2127, 16
  %v2170 = vshll.u32 %v2127, 16
  %v2172 = vrot.slane %v2170, 1
  %v2173 = vor.u32 %v2168, %v2172
  %v2175 = vshrl.u32 %v2128, 16
  %v2177 = vshll.u32 %v2128, 16
  %v2179 = vrot.slane %v2177, 1
  %v2180 = vor.u32 %v2175, %v2179
  %v2182 = vshrl.u32 %v2129, 16
  %v2184 = vshll.u32 %v2129, 16
  %v2186 = vrot.slane %v2184, 1
  %v2187 = vor.u32 %v2182, %v2186
  %v2189 = vshrl.u32 %v2130, 16
  %v2191 = vshll.u32 %v2130, 16
  %v2193 = vrot.slane %v2191, 1
  %v2194 = vor.u32 %v2189, %v2193
  %v2196 = vshrl.u32 %v2131, 16
  %v2198 = vshll.u32 %v2131, 16
  %v2200 = vrot.slane %v2198, 1
  %v2201 = vor.u32 %v2196, %v2200
  %v2203 = vshrl.u32 %v2132, 16
  %v2205 = vshll.u32 %v2132, 16
  %v2207 = vrot.slane %v2205, 1
  %v2208 = vor.u32 %v2203, %v2207
  %v2210 = vshrl.u32 %v2133, 16
  %v2212 = vshll.u32 %v2133, 16
  %v2214 = vrot.slane %v2212, 1
  %v2215 = vor.u32 %v2210, %v2214
  %v2217 = vshrl.u32 %v2134, 16
  %v2219 = vshll.u32 %v2134, 16
  %v2221 = vrot.slane %v2219, 1
  %v2222 = vor.u32 %v2217, %v2221
  %v2224 = vshrl.u32 %v2135, 16
  %v2226 = vshll.u32 %v2135, 16
  %v2228 = vrot.slane %v2226, 1
  %v2229 = vor.u32 %v2224, %v2228
  %v2231 = vshrl.u32 %v2136, 16
  %v2233 = vshll.u32 %v2136, 16
  %v2235 = vrot.slane %v2233, 1
  %v2236 = vor.u32 %v2231, %v2235
  %v2238 = vshrl.u32 %v2137, 16
  %v2240 = vshll.u32 %v2137, 16
  %v2242 = vrot.slane %v2240, 1
  %v2243 = vor.u32 %v2238, %v2242
  %v2245 = vshrl.u32 %v2138, 16
  %v2247 = vshll.u32 %v2138, 16
  %v2249 = vrot.slane %v2247, 1
  %v2250 = vor.u32 %v2245, %v2249
  %v2267 = vunpack.c.l.b16 %v2043
  %v2268 = vunpack.c.l.b16 %v2044
  %v2269 = vunpack.c.l.b16 %v2045
  %v2270 = vunpack.c.l.b16 %v2046
  %v2271 = vunpack.c.l.b16 %v2047
  %v2272 = vunpack.c.l.b16 %v2048
  %v2273 = vunpack.c.l.b16 %v2049
  %v2274 = vunpack.c.l.b16 %v2050
  %v2275 = vunpack.c.l.b16 %v2051
  %v2276 = vunpack.c.l.b16 %v2052
  %v2277 = vunpack.c.l.b16 %v2053
  %v2278 = vunpack.c.l.b16 %v2054
  %v2279 = vunpack.c.l.b16 %v2055
  %v2280 = vunpack.c.l.b16 %v2056
  %v2281 = vunpack.c.l.b16 %v2057
  %v2282 = vunpack.c.l.b16 %v2058
  %v2283 = vpack.c.b16 %v2092, %v2267
  %v2284 = vpack.c.b16 %v2094, %v2268
  %v2285 = vpack.c.b16 %v2096, %v2269
  %v2286 = vpack.c.b16 %v2098, %v2270
  %v2287 = vpack.c.b16 %v2100, %v2271
  %v2288 = vpack.c.b16 %v2102, %v2272
  %v2289 = vpack.c.b16 %v2104, %v2273
  %v2290 = vpack.c.b16 %v2106, %v2274
  %v2291 = vpack.c.b16 %v2108, %v2275
  %v2292 = vpack.c.b16 %v2110, %v2276
  %v2293 = vpack.c.b16 %v2112, %v2277
  %v2294 = vpack.c.b16 %v2114, %v2278
  %v2295 = vpack.c.b16 %v2116, %v2279
  %v2296 = vpack.c.b16 %v2118, %v2280
  %v2297 = vpack.c.b16 %v2120, %v2281
  %v2298 = vpack.c.b16 %v2122, %v2282
  %v2299 = vrot.slane %v2283, 1
  %v2300 = vrot.slane %v2284, 1
  %v2301 = vrot.slane %v2285, 1
  %v2302 = vrot.slane %v2286, 1
  %v2303 = vrot.slane %v2287, 1
  %v2304 = vrot.slane %v2288, 1
  %v2305 = vrot.slane %v2289, 1
  %v2306 = vrot.slane %v2290, 1
  %v2307 = vrot.slane %v2291, 1
  %v2308 = vrot.slane %v2292, 1
  %v2309 = vrot.slane %v2293, 1
  %v2310 = vrot.slane %v2294, 1
  %v2311 = vrot.slane %v2295, 1
  %v2312 = vrot.slane %v2296, 1
  %v2313 = vrot.slane %v2297, 1
  %v2314 = vrot.slane %v2298, 1
  %v2315 = vunpack.c.l.b16 %v2145
  %v2316 = vunpack.c.l.b16 %v2299
  %v2317 = vunpack.c.l.b16 %v2152
  %v2318 = vunpack.c.l.b16 %v2300
  %v2319 = vunpack.c.l.b16 %v2159
  %v2320 = vunpack.c.l.b16 %v2301
  %v2321 = vunpack.c.l.b16 %v2166
  %v2322 = vunpack.c.l.b16 %v2302
  %v2323 = vunpack.c.l.b16 %v2173
  %v2324 = vunpack.c.l.b16 %v2303
  %v2325 = vunpack.c.l.b16 %v2180
  %v2326 = vunpack.c.l.b16 %v2304
  %v2327 = vunpack.c.l.b16 %v2187
  %v2328 = vunpack.c.l.b16 %v2305
  %v2329 = vunpack.c.l.b16 %v2194
  %v2330 = vunpack.c.l.b16 %v2306
  %v2331 = vunpack.c.l.b16 %v2201
  %v2332 = vunpack.c.l.b16 %v2307
  %v2333 = vunpack.c.l.b16 %v2208
  %v2334 = vunpack.c.l.b16 %v2308
  %v2335 = vunpack.c.l.b16 %v2215
  %v2336 = vunpack.c.l.b16 %v2309
  %v2337 = vunpack.c.l.b16 %v2222
  %v2338 = vunpack.c.l.b16 %v2310
  %v2339 = vunpack.c.l.b16 %v2229
  %v2340 = vunpack.c.l.b16 %v2311
  %v2341 = vunpack.c.l.b16 %v2236
  %v2342 = vunpack.c.l.b16 %v2312
  %v2343 = vunpack.c.l.b16 %v2243
  %v2344 = vunpack.c.l.b16 %v2313
  %v2345 = vunpack.c.l.b16 %v2250
  %v2346 = vunpack.c.l.b16 %v2314
  %s2347 = scalar_lea.vmem %s3, 384
  %v2348 = vld [vmem:[%s2347] sm:$0xf]
  %v2349 = vld [vmem:[%s2347 + $0x4] sm:$0xf]
  %v2350 = vld [vmem:[%s2347 + $0x8] sm:$0xf]
  %v2351 = vld [vmem:[%s2347 + $0xc] sm:$0xf]
  %v2352 = vld [vmem:[%s2347 + $0x10] sm:$0xf]
  %v2353 = vld [vmem:[%s2347 + $0x14] sm:$0xf]
  %v2354 = vld [vmem:[%s2347 + $0x18] sm:$0xf]
  %v2355 = vld [vmem:[%s2347 + $0x1c] sm:$0xf]
  %v2356 = vld [vmem:[%s2347 + $0x20] sm:$0xf]
  %v2357 = vld [vmem:[%s2347 + $0x24] sm:$0xf]
  %v2358 = vld [vmem:[%s2347 + $0x28] sm:$0xf]
  %v2359 = vld [vmem:[%s2347 + $0x2c] sm:$0xf]
  %v2360 = vld [vmem:[%s2347 + $0x30] sm:$0xf]
  %v2361 = vld [vmem:[%s2347 + $0x34] sm:$0xf]
  %v2362 = vld [vmem:[%s2347 + $0x38] sm:$0xf]
  %v2363 = vld [vmem:[%s2347 + $0x3c] sm:$0xf]
  %v2364 = vld [vmem:[%s2347 + $0x40] sm:$0xf]
  %v2365 = vld [vmem:[%s2347 + $0x44] sm:$0xf]
  %v2366 = vld [vmem:[%s2347 + $0x48] sm:$0xf]
  %v2367 = vld [vmem:[%s2347 + $0x4c] sm:$0xf]
  %v2368 = vld [vmem:[%s2347 + $0x50] sm:$0xf]
  %v2369 = vld [vmem:[%s2347 + $0x54] sm:$0xf]
  %v2370 = vld [vmem:[%s2347 + $0x58] sm:$0xf]
  %v2371 = vld [vmem:[%s2347 + $0x5c] sm:$0xf]
  %v2372 = vld [vmem:[%s2347 + $0x60] sm:$0xf]
  %v2373 = vld [vmem:[%s2347 + $0x64] sm:$0xf]
  %v2374 = vld [vmem:[%s2347 + $0x68] sm:$0xf]
  %v2375 = vld [vmem:[%s2347 + $0x6c] sm:$0xf]
  %v2376 = vld [vmem:[%s2347 + $0x70] sm:$0xf]
  %v2377 = vld [vmem:[%s2347 + $0x74] sm:$0xf]
  %v2378 = vld [vmem:[%s2347 + $0x78] sm:$0xf]
  %v2379 = vld [vmem:[%s2347 + $0x7c] sm:$0xf]
  %v2380 = vld [vmem:[%s2347 + $0x80] sm:$0xf]
  %v2381 = vld [vmem:[%s2347 + $0x84] sm:$0xf]
  %v2382 = vld [vmem:[%s2347 + $0x88] sm:$0xf]
  %v2383 = vld [vmem:[%s2347 + $0x8c] sm:$0xf]
  %v2384 = vld [vmem:[%s2347 + $0x90] sm:$0xf]
  %v2385 = vld [vmem:[%s2347 + $0x94] sm:$0xf]
  %v2386 = vld [vmem:[%s2347 + $0x98] sm:$0xf]
  %v2387 = vld [vmem:[%s2347 + $0x9c] sm:$0xf]
  %v2388 = vld [vmem:[%s2347 + $0xa0] sm:$0xf]
  %v2389 = vld [vmem:[%s2347 + $0xa4] sm:$0xf]
  %v2390 = vld [vmem:[%s2347 + $0xa8] sm:$0xf]
  %v2391 = vld [vmem:[%s2347 + $0xac] sm:$0xf]
  %v2392 = vld [vmem:[%s2347 + $0xb0] sm:$0xf]
  %v2393 = vld [vmem:[%s2347 + $0xb4] sm:$0xf]
  %v2394 = vld [vmem:[%s2347 + $0xb8] sm:$0xf]
  %v2395 = vld [vmem:[%s2347 + $0xbc] sm:$0xf]
  %v2396 = vpack.c.b16 %v2093, %v2091
  %v2397 = vpack.c.b16 %v2317, %v2315
  %v2398 = vpack.c.b16 %v2318, %v2316
  %v2399 = vpack.c.b16 %v2097, %v2095
  %v2400 = vpack.c.b16 %v2321, %v2319
  %v2401 = vpack.c.b16 %v2322, %v2320
  %v2402 = vpack.c.b16 %v2101, %v2099
  %v2403 = vpack.c.b16 %v2325, %v2323
  %v2404 = vpack.c.b16 %v2326, %v2324
  %v2405 = vpack.c.b16 %v2105, %v2103
  %v2406 = vpack.c.b16 %v2329, %v2327
  %v2407 = vpack.c.b16 %v2330, %v2328
  %v2408 = vpack.c.b16 %v2109, %v2107
  %v2409 = vpack.c.b16 %v2333, %v2331
  %v2410 = vpack.c.b16 %v2334, %v2332
  %v2411 = vpack.c.b16 %v2113, %v2111
  %v2412 = vpack.c.b16 %v2337, %v2335
  %v2413 = vpack.c.b16 %v2338, %v2336
  %v2414 = vpack.c.b16 %v2117, %v2115
  %v2415 = vpack.c.b16 %v2341, %v2339
  %v2416 = vpack.c.b16 %v2342, %v2340
  %v2417 = vpack.c.b16 %v2121, %v2119
  %v2418 = vpack.c.b16 %v2345, %v2343
  %v2419 = vpack.c.b16 %v2346, %v2344
  %v2492 = vunpack.c.l.b16 %v2348
  %v2493 = vunpack.c.l.b16 %v2349
  %v2494 = vunpack.c.l.b16 %v2350
  %v2495 = vunpack.c.l.b16 %v2351
  %v2496 = vunpack.c.l.b16 %v2352
  %v2497 = vunpack.c.l.b16 %v2353
  %v2498 = vunpack.c.l.b16 %v2354
  %v2499 = vunpack.c.l.b16 %v2355
  %v2500 = vunpack.c.l.b16 %v2356
  %v2501 = vunpack.c.l.b16 %v2357
  %v2502 = vunpack.c.l.b16 %v2358
  %v2503 = vunpack.c.l.b16 %v2359
  %v2504 = vunpack.c.l.b16 %v2360
  %v2505 = vunpack.c.l.b16 %v2361
  %v2506 = vunpack.c.l.b16 %v2362
  %v2507 = vunpack.c.l.b16 %v2363
  %v2508 = vunpack.c.l.b16 %v2364
  %v2509 = vunpack.c.l.b16 %v2365
  %v2510 = vunpack.c.l.b16 %v2366
  %v2511 = vunpack.c.l.b16 %v2367
  %v2512 = vunpack.c.l.b16 %v2368
  %v2513 = vunpack.c.l.b16 %v2369
  %v2514 = vunpack.c.l.b16 %v2370
  %v2515 = vunpack.c.l.b16 %v2371
  %v2516 = vunpack.c.l.b16 %v2372
  %v2517 = vunpack.c.l.b16 %v2373
  %v2518 = vunpack.c.l.b16 %v2374
  %v2519 = vunpack.c.l.b16 %v2375
  %v2520 = vunpack.c.l.b16 %v2376
  %v2521 = vunpack.c.l.b16 %v2377
  %v2522 = vunpack.c.l.b16 %v2378
  %v2523 = vunpack.c.l.b16 %v2379
  %v2524 = vunpack.c.l.b16 %v2380
  %v2525 = vunpack.c.l.b16 %v2381
  %v2526 = vunpack.c.l.b16 %v2382
  %v2527 = vunpack.c.l.b16 %v2383
  %v2528 = vunpack.c.l.b16 %v2384
  %v2529 = vunpack.c.l.b16 %v2385
  %v2530 = vunpack.c.l.b16 %v2386
  %v2531 = vunpack.c.l.b16 %v2387
  %v2532 = vunpack.c.l.b16 %v2388
  %v2533 = vunpack.c.l.b16 %v2389
  %v2534 = vunpack.c.l.b16 %v2390
  %v2535 = vunpack.c.l.b16 %v2391
  %v2536 = vunpack.c.l.b16 %v2392
  %v2537 = vunpack.c.l.b16 %v2393
  %v2538 = vunpack.c.l.b16 %v2394
  %v2539 = vunpack.c.l.b16 %v2395
  %v2540 = vpack.c.b16 %v2493, %v2492
  %v2541 = vpack.c.b16 %v2495, %v2494
  %v2542 = vpack.c.b16 %v2497, %v2496
  %v2543 = vpack.c.b16 %v2499, %v2498
  %v2544 = vpack.c.b16 %v2501, %v2500
  %v2545 = vpack.c.b16 %v2503, %v2502
  %v2546 = vpack.c.b16 %v2505, %v2504
  %v2547 = vpack.c.b16 %v2507, %v2506
  %v2548 = vpack.c.b16 %v2509, %v2508
  %v2549 = vpack.c.b16 %v2511, %v2510
  %v2550 = vpack.c.b16 %v2513, %v2512
  %v2551 = vpack.c.b16 %v2515, %v2514
  %v2552 = vpack.c.b16 %v2517, %v2516
  %v2553 = vpack.c.b16 %v2519, %v2518
  %v2554 = vpack.c.b16 %v2521, %v2520
  %v2555 = vpack.c.b16 %v2523, %v2522
  %v2556 = vpack.c.b16 %v2525, %v2524
  %v2557 = vpack.c.b16 %v2527, %v2526
  %v2558 = vpack.c.b16 %v2529, %v2528
  %v2559 = vpack.c.b16 %v2531, %v2530
  %v2560 = vpack.c.b16 %v2533, %v2532
  %v2561 = vpack.c.b16 %v2535, %v2534
  %v2562 = vpack.c.b16 %v2537, %v2536
  %v2563 = vpack.c.b16 %v2539, %v2538
  %2588 = vmatprep.subr.bf16.mxu0 0
  %2589 = vmatpush1.bf16.msra.mxu0 %v2547
  %2590 = vmatprep.subr.bf16.mxu0 0
  %2591 = vmatpush1.bf16.msra.mxu0 %v2546
  %2592 = vmatprep.subr.bf16.mxu0 0
  %2593 = vmatpush1.bf16.msra.mxu0 %v2545
  %2594 = vmatprep.subr.bf16.mxu0 0
  %2595 = vmatpush1.bf16.msra.mxu0 %v2544
  %2596 = vmatprep.subr.bf16.mxu0 0
  %2597 = vmatpush1.bf16.msra.mxu0 %v2543
  %2598 = vmatprep.subr.bf16.mxu0 0
  %2599 = vmatpush1.bf16.msra.mxu0 %v2542
  %2600 = vmatprep.subr.bf16.mxu0 0
  %2601 = vmatpush1.bf16.msra.mxu0 %v2541
  %2602 = vmatprep.subr.bf16.mxu0 0
  %2603 = vmatpush1.bf16.msra.mxu0 %v2540
  %2604 = vmatprep.subr.bf16.mxu0 0
  %2605 = vmatpush2.bf16.msra.mxu0 %v2555
  %2606 = vmatprep.subr.bf16.mxu0 0
  %2607 = vmatpush2.bf16.msra.mxu0 %v2554
  %2608 = vmatprep.subr.bf16.mxu0 0
  %2609 = vmatpush2.bf16.msra.mxu0 %v2553
  %2610 = vmatprep.subr.bf16.mxu0 0
  %2611 = vmatpush2.bf16.msra.mxu0 %v2552
  %2612 = vmatprep.subr.bf16.mxu0 0
  %2613 = vmatpush2.bf16.msra.mxu0 %v2551
  %2614 = vmatprep.subr.bf16.mxu0 0
  %2615 = vmatpush2.bf16.msra.mxu0 %v2550
  %2616 = vmatprep.subr.bf16.mxu0 0
  %2617 = vmatpush2.bf16.msra.mxu0 %v2549
  %2618 = vmatprep.subr.bf16.mxu0 0
  %2619 = vmatpush2.bf16.msra.mxu0 %v2548
  %2620 = vmatprep.mubr.bf16.mxu0 %v2397
  %2621 = vmatmul.mubr.bf16.gmra.mxu0 %v2396
  %v2622 = vpop.f32.mrf.mxu0
  %v2623 = vadd.f32 0.0, %v2622
  %v2624 = vpop.f32.mrf.mxu0
  %v2625 = vpop.f32.mrf.mxu0
  %v2626 = vadd.f32 0.0, %v2625
  %v2627 = vpop.f32.mrf.mxu0
  %2628 = vmatprep.mubr.bf16.mxu0 %v2400
  %2629 = vmatmul.mubr.bf16.gmra.mxu0 %v2399
  %v2630 = vpop.f32.mrf.mxu0
  %v2631 = vadd.f32 0.0, %v2630
  %v2632 = vpop.f32.mrf.mxu0
  %v2633 = vpop.f32.mrf.mxu0
  %v2634 = vadd.f32 0.0, %v2633
  %v2635 = vpop.f32.mrf.mxu0
  %2636 = vmatprep.mubr.bf16.mxu0 %v2403
  %2637 = vmatmul.mubr.bf16.gmra.mxu0 %v2402
  %v2638 = vpop.f32.mrf.mxu0
  %v2639 = vadd.f32 0.0, %v2638
  %v2640 = vpop.f32.mrf.mxu0
  %v2641 = vpop.f32.mrf.mxu0
  %v2642 = vadd.f32 0.0, %v2641
  %v2643 = vpop.f32.mrf.mxu0
  %2644 = vmatprep.mubr.bf16.mxu0 %v2406
  %2645 = vmatmul.mubr.bf16.gmra.mxu0 %v2405
  %v2646 = vpop.f32.mrf.mxu0
  %v2647 = vadd.f32 0.0, %v2646
  %v2648 = vpop.f32.mrf.mxu0
  %v2649 = vpop.f32.mrf.mxu0
  %v2650 = vadd.f32 0.0, %v2649
  %v2651 = vpop.f32.mrf.mxu0
  %2652 = vmatprep.mubr.bf16.mxu0 %v2409
  %2653 = vmatmul.mubr.bf16.gmra.mxu0 %v2408
  %v2654 = vpop.f32.mrf.mxu0
  %v2655 = vadd.f32 0.0, %v2654
  %v2656 = vpop.f32.mrf.mxu0
  %v2657 = vpop.f32.mrf.mxu0
  %v2658 = vadd.f32 0.0, %v2657
  %v2659 = vpop.f32.mrf.mxu0
  %2660 = vmatprep.mubr.bf16.mxu0 %v2412
  %2661 = vmatmul.mubr.bf16.gmra.mxu0 %v2411
  %v2662 = vpop.f32.mrf.mxu0
  %v2663 = vadd.f32 0.0, %v2662
  %v2664 = vpop.f32.mrf.mxu0
  %v2665 = vpop.f32.mrf.mxu0
  %v2666 = vadd.f32 0.0, %v2665
  %v2667 = vpop.f32.mrf.mxu0
  %2668 = vmatprep.mubr.bf16.mxu0 %v2415
  %2669 = vmatmul.mubr.bf16.gmra.mxu0 %v2414
  %v2670 = vpop.f32.mrf.mxu0
  %v2671 = vadd.f32 0.0, %v2670
  %v2672 = vpop.f32.mrf.mxu0
  %v2673 = vpop.f32.mrf.mxu0
  %v2674 = vadd.f32 0.0, %v2673
  %v2675 = vpop.f32.mrf.mxu0
  %2676 = vmatprep.mubr.bf16.mxu0 %v2418
  %2677 = vmatmul.mubr.bf16.gmra.mxu0 %v2417
  %v2678 = vpop.f32.mrf.mxu0
  %v2679 = vadd.f32 0.0, %v2678
  %v2680 = vpop.f32.mrf.mxu0
  %v2681 = vpop.f32.mrf.mxu0
  %v2682 = vadd.f32 0.0, %v2681
  %v2683 = vpop.f32.mrf.mxu0
  %2684 = vdwg.mxu0
  %2685 = vmatprep.subr.bf16.mxu0 0
  %2686 = vmatpush1.bf16.msra.mxu0 %v2563
  %2687 = vmatprep.subr.bf16.mxu0 0
  %2688 = vmatpush1.bf16.msra.mxu0 %v2562
  %2689 = vmatprep.subr.bf16.mxu0 0
  %2690 = vmatpush1.bf16.msra.mxu0 %v2561
  %2691 = vmatprep.subr.bf16.mxu0 0
  %2692 = vmatpush1.bf16.msra.mxu0 %v2560
  %2693 = vmatprep.subr.bf16.mxu0 0
  %2694 = vmatpush1.bf16.msra.mxu0 %v2559
  %2695 = vmatprep.subr.bf16.mxu0 0
  %2696 = vmatpush1.bf16.msra.mxu0 %v2558
  %2697 = vmatprep.subr.bf16.mxu0 0
  %2698 = vmatpush1.bf16.msra.mxu0 %v2557
  %2699 = vmatprep.subr.bf16.mxu0 0
  %2700 = vmatpush1.bf16.msra.mxu0 %v2556
  %2701 = vmatprep.subr.bf16.mxu0 0
  %2702 = vmatpush2.bf16.msra.mxu0 0
  %2703 = vmatprep.subr.bf16.mxu0 0
  %2704 = vmatpush2.bf16.msra.mxu0 0
  %2705 = vmatprep.subr.bf16.mxu0 0
  %2706 = vmatpush2.bf16.msra.mxu0 0
  %2707 = vmatprep.subr.bf16.mxu0 0
  %2708 = vmatpush2.bf16.msra.mxu0 0
  %2709 = vmatprep.subr.bf16.mxu0 0
  %2710 = vmatpush2.bf16.msra.mxu0 0
  %2711 = vmatprep.subr.bf16.mxu0 0
  %2712 = vmatpush2.bf16.msra.mxu0 0
  %2713 = vmatprep.subr.bf16.mxu0 0
  %2714 = vmatpush2.bf16.msra.mxu0 0
  %2715 = vmatprep.subr.bf16.mxu0 0
  %2716 = vmatpush2.bf16.msra.mxu0 0
  %2717 = vmatprep.mubr.bf16.mxu0 0
  %2718 = vmatmul.mubr.bf16.gmra.mxu0 %v2398
  %v2719 = vpop.f32.mrf.mxu0
  %v2720 = vadd.f32 %v2623, %v2719
  %v2721 = vpop.f32.mrf.mxu0
  %v2722 = vpop.f32.mrf.mxu0
  %v2723 = vadd.f32 %v2626, %v2722
  %v2724 = vpop.f32.mrf.mxu0
  %2725 = vmatprep.mubr.bf16.mxu0 0
  %2726 = vmatmul.mubr.bf16.gmra.mxu0 %v2401
  %v2727 = vpop.f32.mrf.mxu0
  %v2728 = vadd.f32 %v2631, %v2727
  %v2729 = vpop.f32.mrf.mxu0
  %v2730 = vpop.f32.mrf.mxu0
  %v2731 = vadd.f32 %v2634, %v2730
  %v2732 = vpop.f32.mrf.mxu0
  %2733 = vmatprep.mubr.bf16.mxu0 0
  %2734 = vmatmul.mubr.bf16.gmra.mxu0 %v2404
  %v2735 = vpop.f32.mrf.mxu0
  %v2736 = vadd.f32 %v2639, %v2735
  %v2737 = vpop.f32.mrf.mxu0
  %v2738 = vpop.f32.mrf.mxu0
  %v2739 = vadd.f32 %v2642, %v2738
  %v2740 = vpop.f32.mrf.mxu0
  %2741 = vmatprep.mubr.bf16.mxu0 0
  %2742 = vmatmul.mubr.bf16.gmra.mxu0 %v2407
  %v2743 = vpop.f32.mrf.mxu0
  %v2744 = vadd.f32 %v2647, %v2743
  %v2745 = vpop.f32.mrf.mxu0
  %v2746 = vpop.f32.mrf.mxu0
  %v2747 = vadd.f32 %v2650, %v2746
  %v2748 = vpop.f32.mrf.mxu0
  %2749 = vmatprep.mubr.bf16.mxu0 0
  %2750 = vmatmul.mubr.bf16.gmra.mxu0 %v2410
  %v2751 = vpop.f32.mrf.mxu0
  %v2752 = vadd.f32 %v2655, %v2751
  %v2753 = vpop.f32.mrf.mxu0
  %v2754 = vpop.f32.mrf.mxu0
  %v2755 = vadd.f32 %v2658, %v2754
  %v2756 = vpop.f32.mrf.mxu0
  %2757 = vmatprep.mubr.bf16.mxu0 0
  %2758 = vmatmul.mubr.bf16.gmra.mxu0 %v2413
  %v2759 = vpop.f32.mrf.mxu0
  %v2760 = vadd.f32 %v2663, %v2759
  %v2761 = vpop.f32.mrf.mxu0
  %v2762 = vpop.f32.mrf.mxu0
  %v2763 = vadd.f32 %v2666, %v2762
  %v2764 = vpop.f32.mrf.mxu0
  %2765 = vmatprep.mubr.bf16.mxu0 0
  %2766 = vmatmul.mubr.bf16.gmra.mxu0 %v2416
  %v2767 = vpop.f32.mrf.mxu0
  %v2768 = vadd.f32 %v2671, %v2767
  %v2769 = vpop.f32.mrf.mxu0
  %v2770 = vpop.f32.mrf.mxu0
  %v2771 = vadd.f32 %v2674, %v2770
  %v2772 = vpop.f32.mrf.mxu0
  %2773 = vmatprep.mubr.bf16.mxu0 0
  %2774 = vmatmul.mubr.bf16.gmra.mxu0 %v2419
  %v2775 = vpop.f32.mrf.mxu0
  %v2776 = vadd.f32 %v2679, %v2775
  %v2777 = vpop.f32.mrf.mxu0
  %v2778 = vpop.f32.mrf.mxu0
  %v2779 = vadd.f32 %v2682, %v2778
  %v2780 = vpop.f32.mrf.mxu0
  %2781 = vdwg.mxu0
  %v2782 = vadd.f32 %v1948, %v2720
  %v2783 = vadd.f32 %v1951, %v2723
  %v2784 = vadd.f32 %v1956, %v2728
  %v2785 = vadd.f32 %v1959, %v2731
  %v2786 = vadd.f32 %v1964, %v2736
  %v2787 = vadd.f32 %v1967, %v2739
  %v2788 = vadd.f32 %v1972, %v2744
  %v2789 = vadd.f32 %v1975, %v2747
  %v2790 = vadd.f32 %v1980, %v2752
  %v2791 = vadd.f32 %v1983, %v2755
  %v2792 = vadd.f32 %v1988, %v2760
  %v2793 = vadd.f32 %v1991, %v2763
  %v2794 = vadd.f32 %v1996, %v2768
  %v2795 = vadd.f32 %v1999, %v2771
  %v2796 = vadd.f32 %v2004, %v2776
  %v2797 = vadd.f32 %v2007, %v2779
  %v2798 = vpack.c.bf16 %v2783, %v2782
  %v2799 = vpack.c.bf16 %v2785, %v2784
  %v2800 = vpack.c.bf16 %v2787, %v2786
  %v2801 = vpack.c.bf16 %v2789, %v2788
  %v2802 = vpack.c.bf16 %v2791, %v2790
  %v2803 = vpack.c.bf16 %v2793, %v2792
  %v2804 = vpack.c.bf16 %v2795, %v2794
  %v2805 = vpack.c.bf16 %v2797, %v2796
  %v2814 = vunpack.c.l.b16 %v2798
  %v2815 = vunpack.c.h.b16 %v2798
  %v2816 = vunpack.c.l.b16 %v2799
  %v2817 = vunpack.c.h.b16 %v2799
  %v2818 = vunpack.c.l.b16 %v2800
  %v2819 = vunpack.c.h.b16 %v2800
  %v2820 = vunpack.c.l.b16 %v2801
  %v2821 = vunpack.c.h.b16 %v2801
  %v2822 = vunpack.c.l.b16 %v2802
  %v2823 = vunpack.c.h.b16 %v2802
  %v2824 = vunpack.c.l.b16 %v2803
  %v2825 = vunpack.c.h.b16 %v2803
  %v2826 = vunpack.c.l.b16 %v2804
  %v2827 = vunpack.c.h.b16 %v2804
  %v2828 = vunpack.c.l.b16 %v2805
  %v2829 = vunpack.c.h.b16 %v2805
  %v2830 = vpack.c.b16 %v2814, %v2814
  %v2831 = vpack.c.b16 %v2815, %v2815
  %v2832 = vpack.c.b16 %v2816, %v2816
  %v2833 = vpack.c.b16 %v2817, %v2817
  %v2834 = vpack.c.b16 %v2818, %v2818
  %v2835 = vpack.c.b16 %v2819, %v2819
  %v2836 = vpack.c.b16 %v2820, %v2820
  %v2837 = vpack.c.b16 %v2821, %v2821
  %v2838 = vpack.c.b16 %v2822, %v2822
  %v2839 = vpack.c.b16 %v2823, %v2823
  %v2840 = vpack.c.b16 %v2824, %v2824
  %v2841 = vpack.c.b16 %v2825, %v2825
  %v2842 = vpack.c.b16 %v2826, %v2826
  %v2843 = vpack.c.b16 %v2827, %v2827
  %v2844 = vpack.c.b16 %v2828, %v2828
  %v2845 = vpack.c.b16 %v2829, %v2829
  %2862 = vst [vmem:[%s4] sm:$0xf] %v2830
  %2863 = vst [vmem:[%s4 + $0x4] sm:$0xf] %v2831
  %2864 = vst [vmem:[%s4 + $0x8] sm:$0xf] %v2832
  %2865 = vst [vmem:[%s4 + $0xc] sm:$0xf] %v2833
  %2866 = vst [vmem:[%s4 + $0x10] sm:$0xf] %v2834
  %2867 = vst [vmem:[%s4 + $0x14] sm:$0xf] %v2835
  %2868 = vst [vmem:[%s4 + $0x18] sm:$0xf] %v2836
  %2869 = vst [vmem:[%s4 + $0x1c] sm:$0xf] %v2837
  %2870 = vst [vmem:[%s4 + $0x20] sm:$0xf] %v2838
  %2871 = vst [vmem:[%s4 + $0x24] sm:$0xf] %v2839
  %2872 = vst [vmem:[%s4 + $0x28] sm:$0xf] %v2840
  %2873 = vst [vmem:[%s4 + $0x2c] sm:$0xf] %v2841
  %2874 = vst [vmem:[%s4 + $0x30] sm:$0xf] %v2842
  %2875 = vst [vmem:[%s4 + $0x34] sm:$0xf] %v2843
  %2876 = vst [vmem:[%s4 + $0x38] sm:$0xf] %v2844
  %2877 = vst [vmem:[%s4 + $0x3c] sm:$0xf] %v2845
  %v2878 = vadd.f32 %v2782, %v2783
  %v2879 = vadd.f32 %v2878, %v2784
  %v2880 = vadd.f32 %v2879, %v2785
  %v2881 = vadd.f32 %v2880, %v2786
  %v2882 = vadd.f32 %v2881, %v2787
  %v2883 = vadd.f32 %v2882, %v2788
  %v2884 = vadd.f32 %v2883, %v2789
  %v2885 = vadd.f32 %v2884, %v2790
  %v2886 = vadd.f32 %v2885, %v2791
  %v2887 = vadd.f32 %v2886, %v2792
  %v2888 = vadd.f32 %v2887, %v2793
  %v2889 = vadd.f32 %v2888, %v2794
  %v2890 = vadd.f32 %v2889, %v2795
  %v2891 = vadd.f32 %v2890, %v2796
  %v2892 = vadd.f32 %v2891, %v2797
  %v2893 = vrot.slane %v2892, 4
  %v2894 = vadd.f32 %v2892, %v2893
  %v2895 = vrot.slane %v2894, 2
  %v2896 = vadd.f32 %v2894, %v2895
  %v2897 = vrot.slane %v2896, 1
  %v2898 = vadd.f32 %v2896, %v2897
  %v2899 = vmul.f32 %v2782, %v2782
  %v2900 = vmul.f32 %v2783, %v2783
  %v2901 = vmul.f32 %v2784, %v2784
  %v2902 = vmul.f32 %v2785, %v2785
  %v2903 = vmul.f32 %v2786, %v2786
  %v2904 = vmul.f32 %v2787, %v2787
  %v2905 = vmul.f32 %v2788, %v2788
  %v2906 = vmul.f32 %v2789, %v2789
  %v2907 = vmul.f32 %v2790, %v2790
  %v2908 = vmul.f32 %v2791, %v2791
  %v2909 = vmul.f32 %v2792, %v2792
  %v2910 = vmul.f32 %v2793, %v2793
  %v2911 = vmul.f32 %v2794, %v2794
  %v2912 = vmul.f32 %v2795, %v2795
  %v2913 = vmul.f32 %v2796, %v2796
  %v2914 = vmul.f32 %v2797, %v2797
  %v2915 = vadd.f32 %v2899, %v2900
  %v2916 = vadd.f32 %v2915, %v2901
  %v2917 = vadd.f32 %v2916, %v2902
  %v2918 = vadd.f32 %v2917, %v2903
  %v2919 = vadd.f32 %v2918, %v2904
  %v2920 = vadd.f32 %v2919, %v2905
  %v2921 = vadd.f32 %v2920, %v2906
  %v2922 = vadd.f32 %v2921, %v2907
  %v2923 = vadd.f32 %v2922, %v2908
  %v2924 = vadd.f32 %v2923, %v2909
  %v2925 = vadd.f32 %v2924, %v2910
  %v2926 = vadd.f32 %v2925, %v2911
  %v2927 = vadd.f32 %v2926, %v2912
  %v2928 = vadd.f32 %v2927, %v2913
  %v2929 = vadd.f32 %v2928, %v2914
  %v2930 = vrot.slane %v2929, 4
  %v2931 = vadd.f32 %v2929, %v2930
  %v2932 = vrot.slane %v2931, 2
  %v2933 = vadd.f32 %v2931, %v2932
  %v2934 = vrot.slane %v2933, 1
  %v2935 = vadd.f32 %v2933, %v2934
  %vm2936 = vcmask 1040384
  %v2937 = vsel %vm2936, %v2898, %v2935
  %2938 = vst [vmem:[%s5] sm:$0x3] %v2937
  // Predicated region
  $region22: #{block_forward.5} parent=0 // pred_check
    _
  $region23: #{block_forward.5} parent=0 // pred_check_branch
    %2940 = sbr.rel (0) target = $region25
  $region24: #{block_forward.5} parent=0 // pred_region
    _
  $region25: #{block_forward.5} parent=0 // pred_fallthru
    _
  // Predicated region
  $region26: #{block_forward.5} parent=0 // pred_check
    _
  $region27: #{block_forward.5} parent=0 // pred_check_branch
    %2942 = sbr.rel (0) target = $region29
  $region28: #{block_forward.5} parent=0 // pred_region
    _
  $region29: #{block_forward.5} parent=0 // pred_fallthru
    _
  // Predicated region
  $region30: #{block_forward.5} parent=0 // pred_check
    _
  $region31: #{block_forward.5} parent=0 // pred_check_branch
    %2944 = sbr.rel (0) target = $region33
  $region32: #{block_forward.5} parent=0 // pred_region
    _
  $region33: #{block_forward.5} parent=0 // pred_fallthru
    _
  // Predicated region
  $region34: #{block_forward.5} parent=0 // pred_check
    _
  $region35: #{block_forward.5} parent=0 // pred_check_branch
    %2946 = sbr.rel (0) target = $region37
  $region36: #{block_forward.5} parent=0 // pred_region
    _
  $region37: #{block_forward.5} parent=0 // pred_fallthru
    _

</llo_original>
